<compile_context>
chip_gen: v5e
topology: v5e:2x2
jax: 0.10.0
libtpu: 0.0.40
codegen_flags: <defaults>
</compile_context>

<pallas_src>
import jax
import jax.numpy as jnp
from jax.experimental import pallas as pl
from jax.experimental.pallas import tpu as pltpu


# ----------------------------- LSTM kernel ----------------------------------
def _lstm_kernel(x_ref, len_ref, h0_ref, c0_ref, w_ih_ref, w_hh_ref, b_ref,
                 out_ref, gxi, gxf, gxg, gxo, h_s, c_s):
    """Whole-sequence LSTM.  PyTorch gate order: i, f, g, o (leading axis)."""
    T, B, E = x_ref.shape
    H = h0_ref.shape[1]

    # --- hoisted input projection: one (T*B, E) x (E, H) MXU matmul per gate.
    x2d = x_ref[...].reshape(T * B, E)
    for g, dst in ((0, gxi), (1, gxf), (2, gxg), (3, gxo)):
        dst[...] = (jnp.dot(x2d, w_ih_ref[g],
                            preferred_element_type=jnp.float32)
                    + b_ref[g]).reshape(T, B, H)

    h_s[...] = h0_ref[...].astype(jnp.float32)
    c_s[...] = c0_ref[...].astype(jnp.float32)

    lens = len_ref[...]                       # (B, 1) int32, read once
    # Recurrent weights are loop-invariant: load once.
    w_i = w_hh_ref[0]
    w_f = w_hh_ref[1]
    w_g = w_hh_ref[2]
    w_o = w_hh_ref[3]

    def step(t, carry):
        h = h_s[...]
        c = c_s[...]
        # Serial region: only the recurrent matmuls + gate elementwise math.
        i_g = jax.nn.sigmoid(gxi[t] + jnp.dot(h, w_i, preferred_element_type=jnp.float32))
        f_g = jax.nn.sigmoid(gxf[t] + jnp.dot(h, w_f, preferred_element_type=jnp.float32))
        g_g = jnp.tanh(gxg[t] + jnp.dot(h, w_g, preferred_element_type=jnp.float32))
        o_g = jax.nn.sigmoid(gxo[t] + jnp.dot(h, w_o, preferred_element_type=jnp.float32))
        c_new = f_g * c + i_g * g_g
        h_new = o_g * jnp.tanh(c_new)
        # pack_padded: freeze state for t >= length[b]; pad_packed: emit zeros.
        mask = t < lens                                        # (B, 1) bool
        h_s[...] = jnp.where(mask, h_new, h)
        c_s[...] = jnp.where(mask, c_new, c)
        out_ref[t] = jnp.where(mask, h_new, 0.0).astype(out_ref.dtype)
        return carry

    # Short fixed trip count -> unroll for LLO scheduler visibility.
    jax.lax.fori_loop(0, T, step, 0, unroll=True)


def lstm_pallas(x_tm, lengths_b1, h0, c0, w_ih, w_hh, b):
    """x_tm: (T, B, E) time-major embeddings.  Returns (T, B, H) hidden states."""
    T, B, E = x_tm.shape
    H = h0.shape[1]
    # NOTE: with the small demo H the (B, H) stores are sub-128-lane; for a
    # real model pick H as a multiple of 128 so stores are lane-dense.
    return pl.pallas_call(
        _lstm_kernel,
        out_shape=jax.ShapeDtypeStruct((T, B, H), jnp.float32),
        grid=(1,),
        in_specs=[
            pl.BlockSpec((T, B, E), lambda i: (0, 0, 0)),     # embeddings
            pl.BlockSpec((B, 1), lambda i: (0, 0)),           # lengths
            pl.BlockSpec((B, H), lambda i: (0, 0)),           # h0
            pl.BlockSpec((B, H), lambda i: (0, 0)),           # c0
            pl.BlockSpec((4, E, H), lambda i: (0, 0, 0)),     # W_ih (gate-major)
            pl.BlockSpec((4, H, H), lambda i: (0, 0, 0)),     # W_hh (gate-major)
            pl.BlockSpec((4, 1, H), lambda i: (0, 0, 0)),     # bias (b_ih + b_hh)
        ],
        out_specs=pl.BlockSpec((T, B, H), lambda i: (0, 0, 0)),
        scratch_shapes=[pltpu.VMEM((T, B, H), jnp.float32),   # gx_i
                        pltpu.VMEM((T, B, H), jnp.float32),   # gx_f
                        pltpu.VMEM((T, B, H), jnp.float32),   # gx_g
                        pltpu.VMEM((T, B, H), jnp.float32),   # gx_o
                        pltpu.VMEM((B, H), jnp.float32),      # h carry
                        pltpu.VMEM((B, H), jnp.float32)],     # c carry
        compiler_params=pltpu.CompilerParams(
            dimension_semantics=("arbitrary",)),
    )(x_tm, lengths_b1, h0, c0, w_ih, w_hh, b)


# ------------------------------ FC kernel -----------------------------------
def _fc_kernel(x_ref, w1_ref, b1_ref, w2_ref, b2_ref, out_ref):
    h1 = jnp.dot(x_ref[...], w1_ref[...], preferred_element_type=jnp.float32)
    h1 = jnp.maximum(h1 + b1_ref[...], 0.0)      # ReLU (Dropout = identity)
    out = jnp.dot(h1, w2_ref[...], preferred_element_type=jnp.float32) + b2_ref[...]
    out_ref[...] = out.astype(out_ref.dtype)


def fc_pallas(x2d, w1, b1, w2, b2, *, tn=512, tv=256):
    """Tiled Linear->ReLU->Linear over rows (tn) and vocab (tv)."""
    N, H = x2d.shape
    H2 = w1.shape[1]
    V = w2.shape[1]
    tn = min(tn, N)          # small demo shapes fall back to a single block
    tv = min(tv, V)
    grid = (pl.cdiv(N, tn), pl.cdiv(V, tv))
    return pl.pallas_call(
        _fc_kernel,
        out_shape=jax.ShapeDtypeStruct((N, V), jnp.float32),
        grid=grid,
        in_specs=[
            pl.BlockSpec((tn, H), lambda i, j: (i, 0)),       # activations
            pl.BlockSpec((H, H2), lambda i, j: (0, 0)),       # fc1 weight (resident)
            pl.BlockSpec((1, H2), lambda i, j: (0, 0)),       # fc1 bias
            pl.BlockSpec((H2, tv), lambda i, j: (0, j)),      # fc2 weight tile
            pl.BlockSpec((1, tv), lambda i, j: (0, j)),       # fc2 bias tile
        ],
        out_specs=pl.BlockSpec((tn, tv), lambda i, j: (i, j)),
        compiler_params=pltpu.CompilerParams(
            dimension_semantics=("parallel", "parallel")),
    )(x2d, w1, b1, w2, b2)


# ---------------------------- Decoder forward -------------------------------
def decoder_forward(params, features, captions, lengths):
    """features = (h, c), each (B, H).  captions: (B, T) int32.  lengths: list[int]."""
    h0, c0 = features
    # Embedding gather directly in time-major order (no (B,T,E) transpose).
    x_tm = jnp.take(params["embed"], captions.T, axis=0)        # (T, B, E)
    hs_tm = lstm_pallas(x_tm, lengths_arr(lengths), h0, c0,
                        params["w_ih"], params["w_hh"], params["b_lstm"])  # (T, B, H)
    t_max = int(max(lengths))                 # pad_packed_sequence pads to max(lengths)
    # Transpose the (small) hidden states once, not the (large) logits.
    hs = jnp.transpose(hs_tm[:t_max], (1, 0, 2))                # (B, Tmax, H)
    B, T, H = hs.shape
    out2d = fc_pallas(hs.reshape(B * T, H),
                      params["fc1_w"], params["fc1_b"],
                      params["fc2_w"], params["fc2_b"])
    return out2d.reshape(B, T, -1)                              # (B, Tmax, vocab)


def lengths_arr(lengths):
    return jnp.asarray(lengths, dtype=jnp.int32).reshape(-1, 1)


# ------------------------- pure-JAX reference -------------------------------
def ref_forward(params, features, captions, lengths):
    h0, c0 = features
    x = jnp.take(params["embed"], captions, axis=0)             # (B, T, E)
    B, T, E = x.shape
    H = h0.shape[1]
    len_arr = jnp.asarray(lengths, jnp.int32)
    w_ih, w_hh, b = params["w_ih"], params["w_hh"], params["b_lstm"]

    def step(carry, inp):
        h, c = carry
        x_t, t = inp
        i_g = jax.nn.sigmoid(x_t @ w_ih[0] + h @ w_hh[0] + b[0])
        f_g = jax.nn.sigmoid(x_t @ w_ih[1] + h @ w_hh[1] + b[1])
        g_g = jnp.tanh(x_t @ w_ih[2] + h @ w_hh[2] + b[2])
        o_g = jax.nn.sigmoid(x_t @ w_ih[3] + h @ w_hh[3] + b[3])
        c_new = f_g * c + i_g * g_g
        h_new = o_g * jnp.tanh(c_new)
        mask = (t < len_arr)[:, None]
        return (jnp.where(mask, h_new, h), jnp.where(mask, c_new, c)), \
            jnp.where(mask, h_new, 0.0)

    (_, _), hs = jax.lax.scan(step, (h0, c0),
                              (jnp.transpose(x, (1, 0, 2)), jnp.arange(T)))
    hs = jnp.transpose(hs, (1, 0, 2))[:, :int(max(lengths))]
    h1 = jnp.maximum(hs @ params["fc1_w"] + params["fc1_b"], 0.0)
    return h1 @ params["fc2_w"] + params["fc2_b"]


# --------------------------------- main --------------------------------------
if __name__ == "__main__":
    # Small, module-consistent shapes.
    vocab_size = 50
    embed_size = 32
    lstm_hidden = 32
    fc_hidden = int(lstm_hidden * 0.5)   # 16
    B, T = 4, 8
    lengths = [8, 6, 5, 3]

    key = jax.random.PRNGKey(0)
    ks = jax.random.split(key, 12)

    params = {
        "embed": jax.random.normal(ks[0], (vocab_size, embed_size), jnp.float32) * 0.1,
        # PyTorch stores weight_ih_l0 as (4H, E) with gates [i,f,g,o] stacked;
        # here pre-split/transposed to gate-major (4, E, H) / (4, H, H).
        "w_ih": jax.random.normal(ks[1], (4, embed_size, lstm_hidden), jnp.float32) * 0.1,
        "w_hh": jax.random.normal(ks[2], (4, lstm_hidden, lstm_hidden), jnp.float32) * 0.1,
        # combined bias_ih + bias_hh, gate-major
        "b_lstm": jax.random.normal(ks[3], (4, 1, lstm_hidden), jnp.float32) * 0.1,
        "fc1_w": jax.random.normal(ks[4], (lstm_hidden, fc_hidden), jnp.float32) * 0.1,
        "fc1_b": jax.random.normal(ks[5], (1, fc_hidden), jnp.float32) * 0.1,
        "fc2_w": jax.random.normal(ks[6], (fc_hidden, vocab_size), jnp.float32) * 0.1,
        "fc2_b": jax.random.normal(ks[7], (1, vocab_size), jnp.float32) * 0.1,
    }

    captions = jax.random.randint(ks[8], (B, T), 0, vocab_size, dtype=jnp.int32)
    h0 = jax.random.normal(ks[9], (B, lstm_hidden), jnp.float32) * 0.1
    c0 = jax.random.normal(ks[10], (B, lstm_hidden), jnp.float32) * 0.1
    features = (h0, c0)

    out = decoder_forward(params, features, captions, lengths)
    out = jax.block_until_ready(out)

    ref = jax.block_until_ready(ref_forward(params, features, captions, lengths))
    assert out.shape == (B, max(lengths), vocab_size), out.shape
    assert jnp.allclose(out, ref, atol=1e-4, rtol=1e-4), "mismatch vs reference"

    print("KERNEL_OK")
</pallas_src>

<mosaic_0001>
module attributes {stable_mosaic.version = 11 : i64} {
  func.func @_lstm_kernel(%arg0: i32, %arg1: memref<8x4x32xf32, #tpu.memory_space<vmem>>, %arg2: memref<4x1xi32, #tpu.memory_space<vmem>>, %arg3: memref<4x32xf32, #tpu.memory_space<vmem>>, %arg4: memref<4x32xf32, #tpu.memory_space<vmem>>, %arg5: memref<4x32x32xf32, #tpu.memory_space<vmem>>, %arg6: memref<4x32x32xf32, #tpu.memory_space<vmem>>, %arg7: memref<4x1x32xf32, #tpu.memory_space<vmem>>, %arg8: memref<8x4x32xf32, #tpu.memory_space<vmem>>, %arg9: memref<8x4x32xf32, #tpu.memory_space<vmem>>, %arg10: memref<8x4x32xf32, #tpu.memory_space<vmem>>, %arg11: memref<8x4x32xf32, #tpu.memory_space<vmem>>, %arg12: memref<8x4x32xf32, #tpu.memory_space<vmem>>, %arg13: memref<4x32xf32, #tpu.memory_space<vmem>>, %arg14: memref<4x32xf32, #tpu.memory_space<vmem>>) attributes {dimension_semantics = [#tpu.dimension_semantics<arbitrary>], iteration_bounds = array<i64: 1>, scalar_prefetch = 0 : i64, scratch_operands = 6 : i64, tpu.core_type = #tpu.core_type<tc>, window_params = [{pipeline_mode = #tpu.pipeline_mode<synchronous>, transform_indices = @transform_0, window_bounds = array<i64: 8, 4, 32>}, {pipeline_mode = #tpu.pipeline_mode<synchronous>, transform_indices = @transform_1, window_bounds = array<i64: 4, 1>}, {pipeline_mode = #tpu.pipeline_mode<synchronous>, transform_indices = @transform_2, window_bounds = array<i64: 4, 32>}, {pipeline_mode = #tpu.pipeline_mode<synchronous>, transform_indices = @transform_3, window_bounds = array<i64: 4, 32>}, {pipeline_mode = #tpu.pipeline_mode<synchronous>, transform_indices = @transform_4, window_bounds = array<i64: 4, 32, 32>}, {pipeline_mode = #tpu.pipeline_mode<synchronous>, transform_indices = @transform_5, window_bounds = array<i64: 4, 32, 32>}, {pipeline_mode = #tpu.pipeline_mode<synchronous>, transform_indices = @transform_6, window_bounds = array<i64: 4, 1, 32>}, {pipeline_mode = #tpu.pipeline_mode<synchronous>, transform_indices = @transform_7, window_bounds = array<i64: 8, 4, 32>}]} {
    %c0 = arith.constant 0 : index
    %c0_0 = arith.constant 0 : index
    %c0_1 = arith.constant 0 : index
    %0 = vector.load %arg1[%c0, %c0_0, %c0_1] : memref<8x4x32xf32, #tpu.memory_space<vmem>>, vector<8x4x32xf32>
    %1 = vector.shape_cast %0 : vector<8x4x32xf32> to vector<32x32xf32>
    %c0_2 = arith.constant 0 : index
    %c0_3 = arith.constant 0 : index
    %c0_4 = arith.constant 0 : index
    %2 = vector.load %arg5[%c0_2, %c0_3, %c0_4] : memref<4x32x32xf32, #tpu.memory_space<vmem>>, vector<1x32x32xf32>
    %3 = vector.shape_cast %2 : vector<1x32x32xf32> to vector<32x32xf32>
    %cst = arith.constant dense<0.000000e+00> : vector<32x32xf32>
    %4 = tpu.matmul %1, %3, %cst {dimension_numbers = #tpu.dot_dimension_numbers<[1], [0], [0], [1], [0, 0, 1, 1], [], []>} : vector<32x32xf32>, vector<32x32xf32>, vector<32x32xf32> -> vector<32x32xf32>
    %c0_5 = arith.constant 0 : index
    %c0_6 = arith.constant 0 : index
    %c0_7 = arith.constant 0 : index
    %5 = vector.load %arg7[%c0_5, %c0_6, %c0_7] : memref<4x1x32xf32, #tpu.memory_space<vmem>>, vector<1x1x32xf32>
    %6 = vector.shape_cast %5 : vector<1x1x32xf32> to vector<1x32xf32>
    %7 = vector.broadcast %6 : vector<1x32xf32> to vector<32x32xf32>
    %8 = arith.addf %4, %7 : vector<32x32xf32>
    %9 = vector.shape_cast %8 : vector<32x32xf32> to vector<8x4x32xf32>
    %c0_8 = arith.constant 0 : index
    %c0_9 = arith.constant 0 : index
    %c0_10 = arith.constant 0 : index
    %10 = vector.load %arg9[%c0_8, %c0_9, %c0_10] : memref<8x4x32xf32, #tpu.memory_space<vmem>>, vector<8x4x32xf32>
    tpu.vector_store %arg9[%c0_8, %c0_9, %c0_10], %9 {strides = array<i32>} : memref<8x4x32xf32, #tpu.memory_space<vmem>>, vector<8x4x32xf32>,
    %c1 = arith.constant 1 : index
    %c0_11 = arith.constant 0 : index
    %c0_12 = arith.constant 0 : index
    %11 = vector.load %arg5[%c1, %c0_11, %c0_12] : memref<4x32x32xf32, #tpu.memory_space<vmem>>, vector<1x32x32xf32>
    %12 = vector.shape_cast %11 : vector<1x32x32xf32> to vector<32x32xf32>
    %cst_13 = arith.constant dense<0.000000e+00> : vector<32x32xf32>
    %13 = tpu.matmul %1, %12, %cst_13 {dimension_numbers = #tpu.dot_dimension_numbers<[1], [0], [0], [1], [0, 0, 1, 1], [], []>} : vector<32x32xf32>, vector<32x32xf32>, vector<32x32xf32> -> vector<32x32xf32>
    %c1_14 = arith.constant 1 : index
    %c0_15 = arith.constant 0 : index
    %c0_16 = arith.constant 0 : index
    %14 = vector.load %arg7[%c1_14, %c0_15, %c0_16] : memref<4x1x32xf32, #tpu.memory_space<vmem>>, vector<1x1x32xf32>
    %15 = vector.shape_cast %14 : vector<1x1x32xf32> to vector<1x32xf32>
    %16 = vector.broadcast %15 : vector<1x32xf32> to vector<32x32xf32>
    %17 = arith.addf %13, %16 : vector<32x32xf32>
    %18 = vector.shape_cast %17 : vector<32x32xf32> to vector<8x4x32xf32>
    %c0_17 = arith.constant 0 : index
    %c0_18 = arith.constant 0 : index
    %c0_19 = arith.constant 0 : index
    %19 = vector.load %arg10[%c0_17, %c0_18, %c0_19] : memref<8x4x32xf32, #tpu.memory_space<vmem>>, vector<8x4x32xf32>
    tpu.vector_store %arg10[%c0_17, %c0_18, %c0_19], %18 {strides = array<i32>} : memref<8x4x32xf32, #tpu.memory_space<vmem>>, vector<8x4x32xf32>,
    %c2 = arith.constant 2 : index
    %c0_20 = arith.constant 0 : index
    %c0_21 = arith.constant 0 : index
    %20 = vector.load %arg5[%c2, %c0_20, %c0_21] : memref<4x32x32xf32, #tpu.memory_space<vmem>>, vector<1x32x32xf32>
    %21 = vector.shape_cast %20 : vector<1x32x32xf32> to vector<32x32xf32>
    %cst_22 = arith.constant dense<0.000000e+00> : vector<32x32xf32>
    %22 = tpu.matmul %1, %21, %cst_22 {dimension_numbers = #tpu.dot_dimension_numbers<[1], [0], [0], [1], [0, 0, 1, 1], [], []>} : vector<32x32xf32>, vector<32x32xf32>, vector<32x32xf32> -> vector<32x32xf32>
    %c2_23 = arith.constant 2 : index
    %c0_24 = arith.constant 0 : index
    %c0_25 = arith.constant 0 : index
    %23 = vector.load %arg7[%c2_23, %c0_24, %c0_25] : memref<4x1x32xf32, #tpu.memory_space<vmem>>, vector<1x1x32xf32>
    %24 = vector.shape_cast %23 : vector<1x1x32xf32> to vector<1x32xf32>
    %25 = vector.broadcast %24 : vector<1x32xf32> to vector<32x32xf32>
    %26 = arith.addf %22, %25 : vector<32x32xf32>
    %27 = vector.shape_cast %26 : vector<32x32xf32> to vector<8x4x32xf32>
    %c0_26 = arith.constant 0 : index
    %c0_27 = arith.constant 0 : index
    %c0_28 = arith.constant 0 : index
    %28 = vector.load %arg11[%c0_26, %c0_27, %c0_28] : memref<8x4x32xf32, #tpu.memory_space<vmem>>, vector<8x4x32xf32>
    tpu.vector_store %arg11[%c0_26, %c0_27, %c0_28], %27 {strides = array<i32>} : memref<8x4x32xf32, #tpu.memory_space<vmem>>, vector<8x4x32xf32>,
    %c3 = arith.constant 3 : index
    %c0_29 = arith.constant 0 : index
    %c0_30 = arith.constant 0 : index
    %29 = vector.load %arg5[%c3, %c0_29, %c0_30] : memref<4x32x32xf32, #tpu.memory_space<vmem>>, vector<1x32x32xf32>
    %30 = vector.shape_cast %29 : vector<1x32x32xf32> to vector<32x32xf32>
    %cst_31 = arith.constant dense<0.000000e+00> : vector<32x32xf32>
    %31 = tpu.matmul %1, %30, %cst_31 {dimension_numbers = #tpu.dot_dimension_numbers<[1], [0], [0], [1], [0, 0, 1, 1], [], []>} : vector<32x32xf32>, vector<32x32xf32>, vector<32x32xf32> -> vector<32x32xf32>
    %c3_32 = arith.constant 3 : index
    %c0_33 = arith.constant 0 : index
    %c0_34 = arith.constant 0 : index
    %32 = vector.load %arg7[%c3_32, %c0_33, %c0_34] : memref<4x1x32xf32, #tpu.memory_space<vmem>>, vector<1x1x32xf32>
    %33 = vector.shape_cast %32 : vector<1x1x32xf32> to vector<1x32xf32>
    %34 = vector.broadcast %33 : vector<1x32xf32> to vector<32x32xf32>
    %35 = arith.addf %31, %34 : vector<32x32xf32>
    %36 = vector.shape_cast %35 : vector<32x32xf32> to vector<8x4x32xf32>
    %c0_35 = arith.constant 0 : index
    %c0_36 = arith.constant 0 : index
    %c0_37 = arith.constant 0 : index
    %37 = vector.load %arg12[%c0_35, %c0_36, %c0_37] : memref<8x4x32xf32, #tpu.memory_space<vmem>>, vector<8x4x32xf32>
    tpu.vector_store %arg12[%c0_35, %c0_36, %c0_37], %36 {strides = array<i32>} : memref<8x4x32xf32, #tpu.memory_space<vmem>>, vector<8x4x32xf32>,
    %c0_38 = arith.constant 0 : index
    %c0_39 = arith.constant 0 : index
    %38 = vector.load %arg3[%c0_38, %c0_39] : memref<4x32xf32, #tpu.memory_space<vmem>>, vector<4x32xf32>
    %c0_40 = arith.constant 0 : index
    %c0_41 = arith.constant 0 : index
    %39 = vector.load %arg13[%c0_40, %c0_41] : memref<4x32xf32, #tpu.memory_space<vmem>>, vector<4x32xf32>
    tpu.vector_store %arg13[%c0_40, %c0_41], %38 {strides = array<i32>} : memref<4x32xf32, #tpu.memory_space<vmem>>, vector<4x32xf32>,
    %c0_42 = arith.constant 0 : index
    %c0_43 = arith.constant 0 : index
    %40 = vector.load %arg4[%c0_42, %c0_43] : memref<4x32xf32, #tpu.memory_space<vmem>>, vector<4x32xf32>
    %c0_44 = arith.constant 0 : index
    %c0_45 = arith.constant 0 : index
    %41 = vector.load %arg14[%c0_44, %c0_45] : memref<4x32xf32, #tpu.memory_space<vmem>>, vector<4x32xf32>
    tpu.vector_store %arg14[%c0_44, %c0_45], %40 {strides = array<i32>} : memref<4x32xf32, #tpu.memory_space<vmem>>, vector<4x32xf32>,
    %c0_46 = arith.constant 0 : index
    %c0_47 = arith.constant 0 : index
    %42 = vector.load %arg2[%c0_46, %c0_47] : memref<4x1xi32, #tpu.memory_space<vmem>>, vector<4x1xi32>
    %c0_48 = arith.constant 0 : index
    %c0_49 = arith.constant 0 : index
    %c0_50 = arith.constant 0 : index
    %43 = vector.load %arg6[%c0_48, %c0_49, %c0_50] : memref<4x32x32xf32, #tpu.memory_space<vmem>>, vector<1x32x32xf32>
    %44 = vector.shape_cast %43 : vector<1x32x32xf32> to vector<32x32xf32>
    %c1_51 = arith.constant 1 : index
    %c0_52 = arith.constant 0 : index
    %c0_53 = arith.constant 0 : index
    %45 = vector.load %arg6[%c1_51, %c0_52, %c0_53] : memref<4x32x32xf32, #tpu.memory_space<vmem>>, vector<1x32x32xf32>
    %46 = vector.shape_cast %45 : vector<1x32x32xf32> to vector<32x32xf32>
    %c2_54 = arith.constant 2 : index
    %c0_55 = arith.constant 0 : index
    %c0_56 = arith.constant 0 : index
    %47 = vector.load %arg6[%c2_54, %c0_55, %c0_56] : memref<4x32x32xf32, #tpu.memory_space<vmem>>, vector<1x32x32xf32>
    %48 = vector.shape_cast %47 : vector<1x32x32xf32> to vector<32x32xf32>
    %c3_57 = arith.constant 3 : index
    %c0_58 = arith.constant 0 : index
    %c0_59 = arith.constant 0 : index
    %49 = vector.load %arg6[%c3_57, %c0_58, %c0_59] : memref<4x32x32xf32, #tpu.memory_space<vmem>>, vector<1x32x32xf32>
    %50 = vector.shape_cast %49 : vector<1x32x32xf32> to vector<32x32xf32>
    %c0_i32 = arith.constant 0 : i32
    %c0_60 = arith.constant 0 : index
    %c0_61 = arith.constant 0 : index
    %51 = vector.load %arg13[%c0_60, %c0_61] : memref<4x32xf32, #tpu.memory_space<vmem>>, vector<4x32xf32>
    %c0_62 = arith.constant 0 : index
    %c0_63 = arith.constant 0 : index
    %52 = vector.load %arg14[%c0_62, %c0_63] : memref<4x32xf32, #tpu.memory_space<vmem>>, vector<4x32xf32>
    %53 = arith.index_cast %c0_i32 : i32 to index
    %c0_64 = arith.constant 0 : index
    %c0_65 = arith.constant 0 : index
    %54 = vector.load %arg9[%53, %c0_64, %c0_65] : memref<8x4x32xf32, #tpu.memory_space<vmem>>, vector<1x4x32xf32>
    %55 = vector.shape_cast %54 : vector<1x4x32xf32> to vector<4x32xf32>
    %cst_66 = arith.constant dense<0.000000e+00> : vector<4x32xf32>
    %56 = tpu.matmul %51, %44, %cst_66 {dimension_numbers = #tpu.dot_dimension_numbers<[1], [0], [0], [1], [0, 0, 1, 1], [], []>} : vector<4x32xf32>, vector<32x32xf32>, vector<4x32xf32> -> vector<4x32xf32>
    %57 = arith.addf %55, %56 : vector<4x32xf32>
    %58 = arith.negf %57 : vector<4x32xf32>
    %59 = math.exp %58 : vector<4x32xf32>
    %cst_67 = arith.constant 1.000000e+00 : f32
    %60 = vector.broadcast %cst_67 : f32 to vector<4x32xf32>
    %61 = arith.addf %60, %59 : vector<4x32xf32>
    %62 = arith.divf %60, %61 : vector<4x32xf32>
    %63 = arith.index_cast %c0_i32 : i32 to index
    %c0_68 = arith.constant 0 : index
    %c0_69 = arith.constant 0 : index
    %64 = vector.load %arg10[%63, %c0_68, %c0_69] : memref<8x4x32xf32, #tpu.memory_space<vmem>>, vector<1x4x32xf32>
    %65 = vector.shape_cast %64 : vector<1x4x32xf32> to vector<4x32xf32>
    %cst_70 = arith.constant dense<0.000000e+00> : vector<4x32xf32>
    %66 = tpu.matmul %51, %46, %cst_70 {dimension_numbers = #tpu.dot_dimension_numbers<[1], [0], [0], [1], [0, 0, 1, 1], [], []>} : vector<4x32xf32>, vector<32x32xf32>, vector<4x32xf32> -> vector<4x32xf32>
    %67 = arith.addf %65, %66 : vector<4x32xf32>
    %68 = arith.negf %67 : vector<4x32xf32>
    %69 = math.exp %68 : vector<4x32xf32>
    %cst_71 = arith.constant 1.000000e+00 : f32
    %70 = vector.broadcast %cst_71 : f32 to vector<4x32xf32>
    %71 = arith.addf %70, %69 : vector<4x32xf32>
    %72 = arith.divf %70, %71 : vector<4x32xf32>
    %73 = arith.index_cast %c0_i32 : i32 to index
    %c0_72 = arith.constant 0 : index
    %c0_73 = arith.constant 0 : index
    %74 = vector.load %arg11[%73, %c0_72, %c0_73] : memref<8x4x32xf32, #tpu.memory_space<vmem>>, vector<1x4x32xf32>
    %75 = vector.shape_cast %74 : vector<1x4x32xf32> to vector<4x32xf32>
    %cst_74 = arith.constant dense<0.000000e+00> : vector<4x32xf32>
    %76 = tpu.matmul %51, %48, %cst_74 {dimension_numbers = #tpu.dot_dimension_numbers<[1], [0], [0], [1], [0, 0, 1, 1], [], []>} : vector<4x32xf32>, vector<32x32xf32>, vector<4x32xf32> -> vector<4x32xf32>
    %77 = arith.addf %75, %76 : vector<4x32xf32>
    %78 = math.tanh %77 : vector<4x32xf32>
    %79 = arith.index_cast %c0_i32 : i32 to index
    %c0_75 = arith.constant 0 : index
    %c0_76 = arith.constant 0 : index
    %80 = vector.load %arg12[%79, %c0_75, %c0_76] : memref<8x4x32xf32, #tpu.memory_space<vmem>>, vector<1x4x32xf32>
    %81 = vector.shape_cast %80 : vector<1x4x32xf32> to vector<4x32xf32>
    %cst_77 = arith.constant dense<0.000000e+00> : vector<4x32xf32>
    %82 = tpu.matmul %51, %50, %cst_77 {dimension_numbers = #tpu.dot_dimension_numbers<[1], [0], [0], [1], [0, 0, 1, 1], [], []>} : vector<4x32xf32>, vector<32x32xf32>, vector<4x32xf32> -> vector<4x32xf32>
    %83 = arith.addf %81, %82 : vector<4x32xf32>
    %84 = arith.negf %83 : vector<4x32xf32>
    %85 = math.exp %84 : vector<4x32xf32>
    %cst_78 = arith.constant 1.000000e+00 : f32
    %86 = vector.broadcast %cst_78 : f32 to vector<4x32xf32>
    %87 = arith.addf %86, %85 : vector<4x32xf32>
    %88 = arith.divf %86, %87 : vector<4x32xf32>
    %89 = arith.mulf %72, %52 : vector<4x32xf32>
    %90 = arith.mulf %62, %78 : vector<4x32xf32>
    %91 = arith.addf %89, %90 : vector<4x32xf32>
    %92 = math.tanh %91 : vector<4x32xf32>
    %93 = arith.mulf %88, %92 : vector<4x32xf32>
    %94 = vector.broadcast %c0_i32 : i32 to vector<4x1xi32>
    %95 = arith.cmpi slt, %94, %42 : vector<4x1xi32>
    %96 = vector.shape_cast %95 : vector<4x1xi1> to vector<4x1xi1>
    %97 = vector.broadcast %96 : vector<4x1xi1> to vector<4x32xi1>
    %98 = arith.select %97, %93, %51 : vector<4x32xi1>, vector<4x32xf32>
    %c0_79 = arith.constant 0 : index
    %c0_80 = arith.constant 0 : index
    %99 = vector.load %arg13[%c0_79, %c0_80] : memref<4x32xf32, #tpu.memory_space<vmem>>, vector<4x32xf32>
    tpu.vector_store %arg13[%c0_79, %c0_80], %98 {strides = array<i32>} : memref<4x32xf32, #tpu.memory_space<vmem>>, vector<4x32xf32>,
    %100 = vector.shape_cast %95 : vector<4x1xi1> to vector<4x1xi1>
    %101 = vector.broadcast %100 : vector<4x1xi1> to vector<4x32xi1>
    %102 = arith.select %101, %91, %52 : vector<4x32xi1>, vector<4x32xf32>
    %c0_81 = arith.constant 0 : index
    %c0_82 = arith.constant 0 : index
    %103 = vector.load %arg14[%c0_81, %c0_82] : memref<4x32xf32, #tpu.memory_space<vmem>>, vector<4x32xf32>
    tpu.vector_store %arg14[%c0_81, %c0_82], %102 {strides = array<i32>} : memref<4x32xf32, #tpu.memory_space<vmem>>, vector<4x32xf32>,
    %cst_83 = arith.constant 0.000000e+00 : f32
    %104 = vector.shape_cast %95 : vector<4x1xi1> to vector<4x1xi1>
    %105 = vector.broadcast %104 : vector<4x1xi1> to vector<4x32xi1>
    %106 = vector.broadcast %cst_83 : f32 to vector<4x32xf32>
    %107 = arith.select %105, %93, %106 : vector<4x32xi1>, vector<4x32xf32>
    %108 = arith.index_cast %c0_i32 : i32 to index
    %c0_84 = arith.constant 0 : index
    %c0_85 = arith.constant 0 : index
    %109 = vector.load %arg8[%108, %c0_84, %c0_85] : memref<8x4x32xf32, #tpu.memory_space<vmem>>, vector<1x4x32xf32>
    %110 = vector.shape_cast %109 : vector<1x4x32xf32> to vector<4x32xf32>
    %111 = vector.shape_cast %107 : vector<4x32xf32> to vector<1x4x32xf32>
    tpu.vector_store %arg8[%108, %c0_84, %c0_85], %111 {strides = array<i32>} : memref<8x4x32xf32, #tpu.memory_space<vmem>>, vector<1x4x32xf32>,
    %c1_i32 = arith.constant 1 : i32
    %c0_86 = arith.constant 0 : index
    %c0_87 = arith.constant 0 : index
    %112 = vector.load %arg13[%c0_86, %c0_87] : memref<4x32xf32, #tpu.memory_space<vmem>>, vector<4x32xf32>
    %c0_88 = arith.constant 0 : index
    %c0_89 = arith.constant 0 : index
    %113 = vector.load %arg14[%c0_88, %c0_89] : memref<4x32xf32, #tpu.memory_space<vmem>>, vector<4x32xf32>
    %114 = arith.index_cast %c1_i32 : i32 to index
    %c0_90 = arith.constant 0 : index
    %c0_91 = arith.constant 0 : index
    %115 = vector.load %arg9[%114, %c0_90, %c0_91] : memref<8x4x32xf32, #tpu.memory_space<vmem>>, vector<1x4x32xf32>
    %116 = vector.shape_cast %115 : vector<1x4x32xf32> to vector<4x32xf32>
    %cst_92 = arith.constant dense<0.000000e+00> : vector<4x32xf32>
    %117 = tpu.matmul %112, %44, %cst_92 {dimension_numbers = #tpu.dot_dimension_numbers<[1], [0], [0], [1], [0, 0, 1, 1], [], []>} : vector<4x32xf32>, vector<32x32xf32>, vector<4x32xf32> -> vector<4x32xf32>
    %118 = arith.addf %116, %117 : vector<4x32xf32>
    %119 = arith.negf %118 : vector<4x32xf32>
    %120 = math.exp %119 : vector<4x32xf32>
    %cst_93 = arith.constant 1.000000e+00 : f32
    %121 = vector.broadcast %cst_93 : f32 to vector<4x32xf32>
    %122 = arith.addf %121, %120 : vector<4x32xf32>
    %123 = arith.divf %121, %122 : vector<4x32xf32>
    %124 = arith.index_cast %c1_i32 : i32 to index
    %c0_94 = arith.constant 0 : index
    %c0_95 = arith.constant 0 : index
    %125 = vector.load %arg10[%124, %c0_94, %c0_95] : memref<8x4x32xf32, #tpu.memory_space<vmem>>, vector<1x4x32xf32>
    %126 = vector.shape_cast %125 : vector<1x4x32xf32> to vector<4x32xf32>
    %cst_96 = arith.constant dense<0.000000e+00> : vector<4x32xf32>
    %127 = tpu.matmul %112, %46, %cst_96 {dimension_numbers = #tpu.dot_dimension_numbers<[1], [0], [0], [1], [0, 0, 1, 1], [], []>} : vector<4x32xf32>, vector<32x32xf32>, vector<4x32xf32> -> vector<4x32xf32>
    %128 = arith.addf %126, %127 : vector<4x32xf32>
    %129 = arith.negf %128 : vector<4x32xf32>
    %130 = math.exp %129 : vector<4x32xf32>
    %cst_97 = arith.constant 1.000000e+00 : f32
    %131 = vector.broadcast %cst_97 : f32 to vector<4x32xf32>
    %132 = arith.addf %131, %130 : vector<4x32xf32>
    %133 = arith.divf %131, %132 : vector<4x32xf32>
    %134 = arith.index_cast %c1_i32 : i32 to index
    %c0_98 = arith.constant 0 : index
    %c0_99 = arith.constant 0 : index
    %135 = vector.load %arg11[%134, %c0_98, %c0_99] : memref<8x4x32xf32, #tpu.memory_space<vmem>>, vector<1x4x32xf32>
    %136 = vector.shape_cast %135 : vector<1x4x32xf32> to vector<4x32xf32>
    %cst_100 = arith.constant dense<0.000000e+00> : vector<4x32xf32>
    %137 = tpu.matmul %112, %48, %cst_100 {dimension_numbers = #tpu.dot_dimension_numbers<[1], [0], [0], [1], [0, 0, 1, 1], [], []>} : vector<4x32xf32>, vector<32x32xf32>, vector<4x32xf32> -> vector<4x32xf32>
    %138 = arith.addf %136, %137 : vector<4x32xf32>
    %139 = math.tanh %138 : vector<4x32xf32>
    %140 = arith.index_cast %c1_i32 : i32 to index
    %c0_101 = arith.constant 0 : index
    %c0_102 = arith.constant 0 : index
    %141 = vector.load %arg12[%140, %c0_101, %c0_102] : memref<8x4x32xf32, #tpu.memory_space<vmem>>, vector<1x4x32xf32>
    %142 = vector.shape_cast %141 : vector<1x4x32xf32> to vector<4x32xf32>
    %cst_103 = arith.constant dense<0.000000e+00> : vector<4x32xf32>
    %143 = tpu.matmul %112, %50, %cst_103 {dimension_numbers = #tpu.dot_dimension_numbers<[1], [0], [0], [1], [0, 0, 1, 1], [], []>} : vector<4x32xf32>, vector<32x32xf32>, vector<4x32xf32> -> vector<4x32xf32>
    %144 = arith.addf %142, %143 : vector<4x32xf32>
    %145 = arith.negf %144 : vector<4x32xf32>
    %146 = math.exp %145 : vector<4x32xf32>
    %cst_104 = arith.constant 1.000000e+00 : f32
    %147 = vector.broadcast %cst_104 : f32 to vector<4x32xf32>
    %148 = arith.addf %147, %146 : vector<4x32xf32>
    %149 = arith.divf %147, %148 : vector<4x32xf32>
    %150 = arith.mulf %133, %113 : vector<4x32xf32>
    %151 = arith.mulf %123, %139 : vector<4x32xf32>
    %152 = arith.addf %150, %151 : vector<4x32xf32>
    %153 = math.tanh %152 : vector<4x32xf32>
    %154 = arith.mulf %149, %153 : vector<4x32xf32>
    %155 = vector.broadcast %c1_i32 : i32 to vector<4x1xi32>
    %156 = arith.cmpi slt, %155, %42 : vector<4x1xi32>
    %157 = vector.shape_cast %156 : vector<4x1xi1> to vector<4x1xi1>
    %158 = vector.broadcast %157 : vector<4x1xi1> to vector<4x32xi1>
    %159 = arith.select %158, %154, %112 : vector<4x32xi1>, vector<4x32xf32>
    %c0_105 = arith.constant 0 : index
    %c0_106 = arith.constant 0 : index
    %160 = vector.load %arg13[%c0_105, %c0_106] : memref<4x32xf32, #tpu.memory_space<vmem>>, vector<4x32xf32>
    tpu.vector_store %arg13[%c0_105, %c0_106], %159 {strides = array<i32>} : memref<4x32xf32, #tpu.memory_space<vmem>>, vector<4x32xf32>,
    %161 = vector.shape_cast %156 : vector<4x1xi1> to vector<4x1xi1>
    %162 = vector.broadcast %161 : vector<4x1xi1> to vector<4x32xi1>
    %163 = arith.select %162, %152, %113 : vector<4x32xi1>, vector<4x32xf32>
    %c0_107 = arith.constant 0 : index
    %c0_108 = arith.constant 0 : index
    %164 = vector.load %arg14[%c0_107, %c0_108] : memref<4x32xf32, #tpu.memory_space<vmem>>, vector<4x32xf32>
    tpu.vector_store %arg14[%c0_107, %c0_108], %163 {strides = array<i32>} : memref<4x32xf32, #tpu.memory_space<vmem>>, vector<4x32xf32>,
    %cst_109 = arith.constant 0.000000e+00 : f32
    %165 = vector.shape_cast %156 : vector<4x1xi1> to vector<4x1xi1>
    %166 = vector.broadcast %165 : vector<4x1xi1> to vector<4x32xi1>
    %167 = vector.broadcast %cst_109 : f32 to vector<4x32xf32>
    %168 = arith.select %166, %154, %167 : vector<4x32xi1>, vector<4x32xf32>
    %169 = arith.index_cast %c1_i32 : i32 to index
    %c0_110 = arith.constant 0 : index
    %c0_111 = arith.constant 0 : index
    %170 = vector.load %arg8[%169, %c0_110, %c0_111] : memref<8x4x32xf32, #tpu.memory_space<vmem>>, vector<1x4x32xf32>
    %171 = vector.shape_cast %170 : vector<1x4x32xf32> to vector<4x32xf32>
    %172 = vector.shape_cast %168 : vector<4x32xf32> to vector<1x4x32xf32>
    tpu.vector_store %arg8[%169, %c0_110, %c0_111], %172 {strides = array<i32>} : memref<8x4x32xf32, #tpu.memory_space<vmem>>, vector<1x4x32xf32>,
    %c2_i32 = arith.constant 2 : i32
    %c0_112 = arith.constant 0 : index
    %c0_113 = arith.constant 0 : index
    %173 = vector.load %arg13[%c0_112, %c0_113] : memref<4x32xf32, #tpu.memory_space<vmem>>, vector<4x32xf32>
    %c0_114 = arith.constant 0 : index
    %c0_115 = arith.constant 0 : index
    %174 = vector.load %arg14[%c0_114, %c0_115] : memref<4x32xf32, #tpu.memory_space<vmem>>, vector<4x32xf32>
    %175 = arith.index_cast %c2_i32 : i32 to index
    %c0_116 = arith.constant 0 : index
    %c0_117 = arith.constant 0 : index
    %176 = vector.load %arg9[%175, %c0_116, %c0_117] : memref<8x4x32xf32, #tpu.memory_space<vmem>>, vector<1x4x32xf32>
    %177 = vector.shape_cast %176 : vector<1x4x32xf32> to vector<4x32xf32>
    %cst_118 = arith.constant dense<0.000000e+00> : vector<4x32xf32>
    %178 = tpu.matmul %173, %44, %cst_118 {dimension_numbers = #tpu.dot_dimension_numbers<[1], [0], [0], [1], [0, 0, 1, 1], [], []>} : vector<4x32xf32>, vector<32x32xf32>, vector<4x32xf32> -> vector<4x32xf32>
    %179 = arith.addf %177, %178 : vector<4x32xf32>
    %180 = arith.negf %179 : vector<4x32xf32>
    %181 = math.exp %180 : vector<4x32xf32>
    %cst_119 = arith.constant 1.000000e+00 : f32
    %182 = vector.broadcast %cst_119 : f32 to vector<4x32xf32>
    %183 = arith.addf %182, %181 : vector<4x32xf32>
    %184 = arith.divf %182, %183 : vector<4x32xf32>
    %185 = arith.index_cast %c2_i32 : i32 to index
    %c0_120 = arith.constant 0 : index
    %c0_121 = arith.constant 0 : index
    %186 = vector.load %arg10[%185, %c0_120, %c0_121] : memref<8x4x32xf32, #tpu.memory_space<vmem>>, vector<1x4x32xf32>
    %187 = vector.shape_cast %186 : vector<1x4x32xf32> to vector<4x32xf32>
    %cst_122 = arith.constant dense<0.000000e+00> : vector<4x32xf32>
    %188 = tpu.matmul %173, %46, %cst_122 {dimension_numbers = #tpu.dot_dimension_numbers<[1], [0], [0], [1], [0, 0, 1, 1], [], []>} : vector<4x32xf32>, vector<32x32xf32>, vector<4x32xf32> -> vector<4x32xf32>
    %189 = arith.addf %187, %188 : vector<4x32xf32>
    %190 = arith.negf %189 : vector<4x32xf32>
    %191 = math.exp %190 : vector<4x32xf32>
    %cst_123 = arith.constant 1.000000e+00 : f32
    %192 = vector.broadcast %cst_123 : f32 to vector<4x32xf32>
    %193 = arith.addf %192, %191 : vector<4x32xf32>
    %194 = arith.divf %192, %193 : vector<4x32xf32>
    %195 = arith.index_cast %c2_i32 : i32 to index
    %c0_124 = arith.constant 0 : index
    %c0_125 = arith.constant 0 : index
    %196 = vector.load %arg11[%195, %c0_124, %c0_125] : memref<8x4x32xf32, #tpu.memory_space<vmem>>, vector<1x4x32xf32>
    %197 = vector.shape_cast %196 : vector<1x4x32xf32> to vector<4x32xf32>
    %cst_126 = arith.constant dense<0.000000e+00> : vector<4x32xf32>
    %198 = tpu.matmul %173, %48, %cst_126 {dimension_numbers = #tpu.dot_dimension_numbers<[1], [0], [0], [1], [0, 0, 1, 1], [], []>} : vector<4x32xf32>, vector<32x32xf32>, vector<4x32xf32> -> vector<4x32xf32>
    %199 = arith.addf %197, %198 : vector<4x32xf32>
    %200 = math.tanh %199 : vector<4x32xf32>
    %201 = arith.index_cast %c2_i32 : i32 to index
    %c0_127 = arith.constant 0 : index
    %c0_128 = arith.constant 0 : index
    %202 = vector.load %arg12[%201, %c0_127, %c0_128] : memref<8x4x32xf32, #tpu.memory_space<vmem>>, vector<1x4x32xf32>
    %203 = vector.shape_cast %202 : vector<1x4x32xf32> to vector<4x32xf32>
    %cst_129 = arith.constant dense<0.000000e+00> : vector<4x32xf32>
    %204 = tpu.matmul %173, %50, %cst_129 {dimension_numbers = #tpu.dot_dimension_numbers<[1], [0], [0], [1], [0, 0, 1, 1], [], []>} : vector<4x32xf32>, vector<32x32xf32>, vector<4x32xf32> -> vector<4x32xf32>
    %205 = arith.addf %203, %204 : vector<4x32xf32>
    %206 = arith.negf %205 : vector<4x32xf32>
    %207 = math.exp %206 : vector<4x32xf32>
    %cst_130 = arith.constant 1.000000e+00 : f32
    %208 = vector.broadcast %cst_130 : f32 to vector<4x32xf32>
    %209 = arith.addf %208, %207 : vector<4x32xf32>
    %210 = arith.divf %208, %209 : vector<4x32xf32>
    %211 = arith.mulf %194, %174 : vector<4x32xf32>
    %212 = arith.mulf %184, %200 : vector<4x32xf32>
    %213 = arith.addf %211, %212 : vector<4x32xf32>
    %214 = math.tanh %213 : vector<4x32xf32>
    %215 = arith.mulf %210, %214 : vector<4x32xf32>
    %216 = vector.broadcast %c2_i32 : i32 to vector<4x1xi32>
    %217 = arith.cmpi slt, %216, %42 : vector<4x1xi32>
    %218 = vector.shape_cast %217 : vector<4x1xi1> to vector<4x1xi1>
    %219 = vector.broadcast %218 : vector<4x1xi1> to vector<4x32xi1>
    %220 = arith.select %219, %215, %173 : vector<4x32xi1>, vector<4x32xf32>
    %c0_131 = arith.constant 0 : index
    %c0_132 = arith.constant 0 : index
    %221 = vector.load %arg13[%c0_131, %c0_132] : memref<4x32xf32, #tpu.memory_space<vmem>>, vector<4x32xf32>
    tpu.vector_store %arg13[%c0_131, %c0_132], %220 {strides = array<i32>} : memref<4x32xf32, #tpu.memory_space<vmem>>, vector<4x32xf32>,
    %222 = vector.shape_cast %217 : vector<4x1xi1> to vector<4x1xi1>
    %223 = vector.broadcast %222 : vector<4x1xi1> to vector<4x32xi1>
    %224 = arith.select %223, %213, %174 : vector<4x32xi1>, vector<4x32xf32>
    %c0_133 = arith.constant 0 : index
    %c0_134 = arith.constant 0 : index
    %225 = vector.load %arg14[%c0_133, %c0_134] : memref<4x32xf32, #tpu.memory_space<vmem>>, vector<4x32xf32>
    tpu.vector_store %arg14[%c0_133, %c0_134], %224 {strides = array<i32>} : memref<4x32xf32, #tpu.memory_space<vmem>>, vector<4x32xf32>,
    %cst_135 = arith.constant 0.000000e+00 : f32
    %226 = vector.shape_cast %217 : vector<4x1xi1> to vector<4x1xi1>
    %227 = vector.broadcast %226 : vector<4x1xi1> to vector<4x32xi1>
    %228 = vector.broadcast %cst_135 : f32 to vector<4x32xf32>
    %229 = arith.select %227, %215, %228 : vector<4x32xi1>, vector<4x32xf32>
    %230 = arith.index_cast %c2_i32 : i32 to index
    %c0_136 = arith.constant 0 : index
    %c0_137 = arith.constant 0 : index
    %231 = vector.load %arg8[%230, %c0_136, %c0_137] : memref<8x4x32xf32, #tpu.memory_space<vmem>>, vector<1x4x32xf32>
    %232 = vector.shape_cast %231 : vector<1x4x32xf32> to vector<4x32xf32>
    %233 = vector.shape_cast %229 : vector<4x32xf32> to vector<1x4x32xf32>
    tpu.vector_store %arg8[%230, %c0_136, %c0_137], %233 {strides = array<i32>} : memref<8x4x32xf32, #tpu.memory_space<vmem>>, vector<1x4x32xf32>,
    %c3_i32 = arith.constant 3 : i32
    %c0_138 = arith.constant 0 : index
    %c0_139 = arith.constant 0 : index
    %234 = vector.load %arg13[%c0_138, %c0_139] : memref<4x32xf32, #tpu.memory_space<vmem>>, vector<4x32xf32>
    %c0_140 = arith.constant 0 : index
    %c0_141 = arith.constant 0 : index
    %235 = vector.load %arg14[%c0_140, %c0_141] : memref<4x32xf32, #tpu.memory_space<vmem>>, vector<4x32xf32>
    %236 = arith.index_cast %c3_i32 : i32 to index
    %c0_142 = arith.constant 0 : index
    %c0_143 = arith.constant 0 : index
    %237 = vector.load %arg9[%236, %c0_142, %c0_143] : memref<8x4x32xf32, #tpu.memory_space<vmem>>, vector<1x4x32xf32>
    %238 = vector.shape_cast %237 : vector<1x4x32xf32> to vector<4x32xf32>
    %cst_144 = arith.constant dense<0.000000e+00> : vector<4x32xf32>
    %239 = tpu.matmul %234, %44, %cst_144 {dimension_numbers = #tpu.dot_dimension_numbers<[1], [0], [0], [1], [0, 0, 1, 1], [], []>} : vector<4x32xf32>, vector<32x32xf32>, vector<4x32xf32> -> vector<4x32xf32>
    %240 = arith.addf %238, %239 : vector<4x32xf32>
    %241 = arith.negf %240 : vector<4x32xf32>
    %242 = math.exp %241 : vector<4x32xf32>
    %cst_145 = arith.constant 1.000000e+00 : f32
    %243 = vector.broadcast %cst_145 : f32 to vector<4x32xf32>
    %244 = arith.addf %243, %242 : vector<4x32xf32>
    %245 = arith.divf %243, %244 : vector<4x32xf32>
    %246 = arith.index_cast %c3_i32 : i32 to index
    %c0_146 = arith.constant 0 : index
    %c0_147 = arith.constant 0 : index
    %247 = vector.load %arg10[%246, %c0_146, %c0_147] : memref<8x4x32xf32, #tpu.memory_space<vmem>>, vector<1x4x32xf32>
    %248 = vector.shape_cast %247 : vector<1x4x32xf32> to vector<4x32xf32>
    %cst_148 = arith.constant dense<0.000000e+00> : vector<4x32xf32>
    %249 = tpu.matmul %234, %46, %cst_148 {dimension_numbers = #tpu.dot_dimension_numbers<[1], [0], [0], [1], [0, 0, 1, 1], [], []>} : vector<4x32xf32>, vector<32x32xf32>, vector<4x32xf32> -> vector<4x32xf32>
    %250 = arith.addf %248, %249 : vector<4x32xf32>
    %251 = arith.negf %250 : vector<4x32xf32>
    %252 = math.exp %251 : vector<4x32xf32>
    %cst_149 = arith.constant 1.000000e+00 : f32
    %253 = vector.broadcast %cst_149 : f32 to vector<4x32xf32>
    %254 = arith.addf %253, %252 : vector<4x32xf32>
    %255 = arith.divf %253, %254 : vector<4x32xf32>
    %256 = arith.index_cast %c3_i32 : i32 to index
    %c0_150 = arith.constant 0 : index
    %c0_151 = arith.constant 0 : index
    %257 = vector.load %arg11[%256, %c0_150, %c0_151] : memref<8x4x32xf32, #tpu.memory_space<vmem>>, vector<1x4x32xf32>
    %258 = vector.shape_cast %257 : vector<1x4x32xf32> to vector<4x32xf32>
    %cst_152 = arith.constant dense<0.000000e+00> : vector<4x32xf32>
    %259 = tpu.matmul %234, %48, %cst_152 {dimension_numbers = #tpu.dot_dimension_numbers<[1], [0], [0], [1], [0, 0, 1, 1], [], []>} : vector<4x32xf32>, vector<32x32xf32>, vector<4x32xf32> -> vector<4x32xf32>
    %260 = arith.addf %258, %259 : vector<4x32xf32>
    %261 = math.tanh %260 : vector<4x32xf32>
    %262 = arith.index_cast %c3_i32 : i32 to index
    %c0_153 = arith.constant 0 : index
    %c0_154 = arith.constant 0 : index
    %263 = vector.load %arg12[%262, %c0_153, %c0_154] : memref<8x4x32xf32, #tpu.memory_space<vmem>>, vector<1x4x32xf32>
    %264 = vector.shape_cast %263 : vector<1x4x32xf32> to vector<4x32xf32>
    %cst_155 = arith.constant dense<0.000000e+00> : vector<4x32xf32>
    %265 = tpu.matmul %234, %50, %cst_155 {dimension_numbers = #tpu.dot_dimension_numbers<[1], [0], [0], [1], [0, 0, 1, 1], [], []>} : vector<4x32xf32>, vector<32x32xf32>, vector<4x32xf32> -> vector<4x32xf32>
    %266 = arith.addf %264, %265 : vector<4x32xf32>
    %267 = arith.negf %266 : vector<4x32xf32>
    %268 = math.exp %267 : vector<4x32xf32>
    %cst_156 = arith.constant 1.000000e+00 : f32
    %269 = vector.broadcast %cst_156 : f32 to vector<4x32xf32>
    %270 = arith.addf %269, %268 : vector<4x32xf32>
    %271 = arith.divf %269, %270 : vector<4x32xf32>
    %272 = arith.mulf %255, %235 : vector<4x32xf32>
    %273 = arith.mulf %245, %261 : vector<4x32xf32>
    %274 = arith.addf %272, %273 : vector<4x32xf32>
    %275 = math.tanh %274 : vector<4x32xf32>
    %276 = arith.mulf %271, %275 : vector<4x32xf32>
    %277 = vector.broadcast %c3_i32 : i32 to vector<4x1xi32>
    %278 = arith.cmpi slt, %277, %42 : vector<4x1xi32>
    %279 = vector.shape_cast %278 : vector<4x1xi1> to vector<4x1xi1>
    %280 = vector.broadcast %279 : vector<4x1xi1> to vector<4x32xi1>
    %281 = arith.select %280, %276, %234 : vector<4x32xi1>, vector<4x32xf32>
    %c0_157 = arith.constant 0 : index
    %c0_158 = arith.constant 0 : index
    %282 = vector.load %arg13[%c0_157, %c0_158] : memref<4x32xf32, #tpu.memory_space<vmem>>, vector<4x32xf32>
    tpu.vector_store %arg13[%c0_157, %c0_158], %281 {strides = array<i32>} : memref<4x32xf32, #tpu.memory_space<vmem>>, vector<4x32xf32>,
    %283 = vector.shape_cast %278 : vector<4x1xi1> to vector<4x1xi1>
    %284 = vector.broadcast %283 : vector<4x1xi1> to vector<4x32xi1>
    %285 = arith.select %284, %274, %235 : vector<4x32xi1>, vector<4x32xf32>
    %c0_159 = arith.constant 0 : index
    %c0_160 = arith.constant 0 : index
    %286 = vector.load %arg14[%c0_159, %c0_160] : memref<4x32xf32, #tpu.memory_space<vmem>>, vector<4x32xf32>
    tpu.vector_store %arg14[%c0_159, %c0_160], %285 {strides = array<i32>} : memref<4x32xf32, #tpu.memory_space<vmem>>, vector<4x32xf32>,
    %cst_161 = arith.constant 0.000000e+00 : f32
    %287 = vector.shape_cast %278 : vector<4x1xi1> to vector<4x1xi1>
    %288 = vector.broadcast %287 : vector<4x1xi1> to vector<4x32xi1>
    %289 = vector.broadcast %cst_161 : f32 to vector<4x32xf32>
    %290 = arith.select %288, %276, %289 : vector<4x32xi1>, vector<4x32xf32>
    %291 = arith.index_cast %c3_i32 : i32 to index
    %c0_162 = arith.constant 0 : index
    %c0_163 = arith.constant 0 : index
    %292 = vector.load %arg8[%291, %c0_162, %c0_163] : memref<8x4x32xf32, #tpu.memory_space<vmem>>, vector<1x4x32xf32>
    %293 = vector.shape_cast %292 : vector<1x4x32xf32> to vector<4x32xf32>
    %294 = vector.shape_cast %290 : vector<4x32xf32> to vector<1x4x32xf32>
    tpu.vector_store %arg8[%291, %c0_162, %c0_163], %294 {strides = array<i32>} : memref<8x4x32xf32, #tpu.memory_space<vmem>>, vector<1x4x32xf32>,
    %c4_i32 = arith.constant 4 : i32
    %c0_164 = arith.constant 0 : index
    %c0_165 = arith.constant 0 : index
    %295 = vector.load %arg13[%c0_164, %c0_165] : memref<4x32xf32, #tpu.memory_space<vmem>>, vector<4x32xf32>
    %c0_166 = arith.constant 0 : index
    %c0_167 = arith.constant 0 : index
    %296 = vector.load %arg14[%c0_166, %c0_167] : memref<4x32xf32, #tpu.memory_space<vmem>>, vector<4x32xf32>
    %297 = arith.index_cast %c4_i32 : i32 to index
    %c0_168 = arith.constant 0 : index
    %c0_169 = arith.constant 0 : index
    %298 = vector.load %arg9[%297, %c0_168, %c0_169] : memref<8x4x32xf32, #tpu.memory_space<vmem>>, vector<1x4x32xf32>
    %299 = vector.shape_cast %298 : vector<1x4x32xf32> to vector<4x32xf32>
    %cst_170 = arith.constant dense<0.000000e+00> : vector<4x32xf32>
    %300 = tpu.matmul %295, %44, %cst_170 {dimension_numbers = #tpu.dot_dimension_numbers<[1], [0], [0], [1], [0, 0, 1, 1], [], []>} : vector<4x32xf32>, vector<32x32xf32>, vector<4x32xf32> -> vector<4x32xf32>
    %301 = arith.addf %299, %300 : vector<4x32xf32>
    %302 = arith.negf %301 : vector<4x32xf32>
    %303 = math.exp %302 : vector<4x32xf32>
    %cst_171 = arith.constant 1.000000e+00 : f32
    %304 = vector.broadcast %cst_171 : f32 to vector<4x32xf32>
    %305 = arith.addf %304, %303 : vector<4x32xf32>
    %306 = arith.divf %304, %305 : vector<4x32xf32>
    %307 = arith.index_cast %c4_i32 : i32 to index
    %c0_172 = arith.constant 0 : index
    %c0_173 = arith.constant 0 : index
    %308 = vector.load %arg10[%307, %c0_172, %c0_173] : memref<8x4x32xf32, #tpu.memory_space<vmem>>, vector<1x4x32xf32>
    %309 = vector.shape_cast %308 : vector<1x4x32xf32> to vector<4x32xf32>
    %cst_174 = arith.constant dense<0.000000e+00> : vector<4x32xf32>
    %310 = tpu.matmul %295, %46, %cst_174 {dimension_numbers = #tpu.dot_dimension_numbers<[1], [0], [0], [1], [0, 0, 1, 1], [], []>} : vector<4x32xf32>, vector<32x32xf32>, vector<4x32xf32> -> vector<4x32xf32>
    %311 = arith.addf %309, %310 : vector<4x32xf32>
    %312 = arith.negf %311 : vector<4x32xf32>
    %313 = math.exp %312 : vector<4x32xf32>
    %cst_175 = arith.constant 1.000000e+00 : f32
    %314 = vector.broadcast %cst_175 : f32 to vector<4x32xf32>
    %315 = arith.addf %314, %313 : vector<4x32xf32>
    %316 = arith.divf %314, %315 : vector<4x32xf32>
    %317 = arith.index_cast %c4_i32 : i32 to index
    %c0_176 = arith.constant 0 : index
    %c0_177 = arith.constant 0 : index
    %318 = vector.load %arg11[%317, %c0_176, %c0_177] : memref<8x4x32xf32, #tpu.memory_space<vmem>>, vector<1x4x32xf32>
    %319 = vector.shape_cast %318 : vector<1x4x32xf32> to vector<4x32xf32>
    %cst_178 = arith.constant dense<0.000000e+00> : vector<4x32xf32>
    %320 = tpu.matmul %295, %48, %cst_178 {dimension_numbers = #tpu.dot_dimension_numbers<[1], [0], [0], [1], [0, 0, 1, 1], [], []>} : vector<4x32xf32>, vector<32x32xf32>, vector<4x32xf32> -> vector<4x32xf32>
    %321 = arith.addf %319, %320 : vector<4x32xf32>
    %322 = math.tanh %321 : vector<4x32xf32>
    %323 = arith.index_cast %c4_i32 : i32 to index
    %c0_179 = arith.constant 0 : index
    %c0_180 = arith.constant 0 : index
    %324 = vector.load %arg12[%323, %c0_179, %c0_180] : memref<8x4x32xf32, #tpu.memory_space<vmem>>, vector<1x4x32xf32>
    %325 = vector.shape_cast %324 : vector<1x4x32xf32> to vector<4x32xf32>
    %cst_181 = arith.constant dense<0.000000e+00> : vector<4x32xf32>
    %326 = tpu.matmul %295, %50, %cst_181 {dimension_numbers = #tpu.dot_dimension_numbers<[1], [0], [0], [1], [0, 0, 1, 1], [], []>} : vector<4x32xf32>, vector<32x32xf32>, vector<4x32xf32> -> vector<4x32xf32>
    %327 = arith.addf %325, %326 : vector<4x32xf32>
    %328 = arith.negf %327 : vector<4x32xf32>
    %329 = math.exp %328 : vector<4x32xf32>
    %cst_182 = arith.constant 1.000000e+00 : f32
    %330 = vector.broadcast %cst_182 : f32 to vector<4x32xf32>
    %331 = arith.addf %330, %329 : vector<4x32xf32>
    %332 = arith.divf %330, %331 : vector<4x32xf32>
    %333 = arith.mulf %316, %296 : vector<4x32xf32>
    %334 = arith.mulf %306, %322 : vector<4x32xf32>
    %335 = arith.addf %333, %334 : vector<4x32xf32>
    %336 = math.tanh %335 : vector<4x32xf32>
    %337 = arith.mulf %332, %336 : vector<4x32xf32>
    %338 = vector.broadcast %c4_i32 : i32 to vector<4x1xi32>
    %339 = arith.cmpi slt, %338, %42 : vector<4x1xi32>
    %340 = vector.shape_cast %339 : vector<4x1xi1> to vector<4x1xi1>
    %341 = vector.broadcast %340 : vector<4x1xi1> to vector<4x32xi1>
    %342 = arith.select %341, %337, %295 : vector<4x32xi1>, vector<4x32xf32>
    %c0_183 = arith.constant 0 : index
    %c0_184 = arith.constant 0 : index
    %343 = vector.load %arg13[%c0_183, %c0_184] : memref<4x32xf32, #tpu.memory_space<vmem>>, vector<4x32xf32>
    tpu.vector_store %arg13[%c0_183, %c0_184], %342 {strides = array<i32>} : memref<4x32xf32, #tpu.memory_space<vmem>>, vector<4x32xf32>,
    %344 = vector.shape_cast %339 : vector<4x1xi1> to vector<4x1xi1>
    %345 = vector.broadcast %344 : vector<4x1xi1> to vector<4x32xi1>
    %346 = arith.select %345, %335, %296 : vector<4x32xi1>, vector<4x32xf32>
    %c0_185 = arith.constant 0 : index
    %c0_186 = arith.constant 0 : index
    %347 = vector.load %arg14[%c0_185, %c0_186] : memref<4x32xf32, #tpu.memory_space<vmem>>, vector<4x32xf32>
    tpu.vector_store %arg14[%c0_185, %c0_186], %346 {strides = array<i32>} : memref<4x32xf32, #tpu.memory_space<vmem>>, vector<4x32xf32>,
    %cst_187 = arith.constant 0.000000e+00 : f32
    %348 = vector.shape_cast %339 : vector<4x1xi1> to vector<4x1xi1>
    %349 = vector.broadcast %348 : vector<4x1xi1> to vector<4x32xi1>
    %350 = vector.broadcast %cst_187 : f32 to vector<4x32xf32>
    %351 = arith.select %349, %337, %350 : vector<4x32xi1>, vector<4x32xf32>
    %352 = arith.index_cast %c4_i32 : i32 to index
    %c0_188 = arith.constant 0 : index
    %c0_189 = arith.constant 0 : index
    %353 = vector.load %arg8[%352, %c0_188, %c0_189] : memref<8x4x32xf32, #tpu.memory_space<vmem>>, vector<1x4x32xf32>
    %354 = vector.shape_cast %353 : vector<1x4x32xf32> to vector<4x32xf32>
    %355 = vector.shape_cast %351 : vector<4x32xf32> to vector<1x4x32xf32>
    tpu.vector_store %arg8[%352, %c0_188, %c0_189], %355 {strides = array<i32>} : memref<8x4x32xf32, #tpu.memory_space<vmem>>, vector<1x4x32xf32>,
    %c5_i32 = arith.constant 5 : i32
    %c0_190 = arith.constant 0 : index
    %c0_191 = arith.constant 0 : index
    %356 = vector.load %arg13[%c0_190, %c0_191] : memref<4x32xf32, #tpu.memory_space<vmem>>, vector<4x32xf32>
    %c0_192 = arith.constant 0 : index
    %c0_193 = arith.constant 0 : index
    %357 = vector.load %arg14[%c0_192, %c0_193] : memref<4x32xf32, #tpu.memory_space<vmem>>, vector<4x32xf32>
    %358 = arith.index_cast %c5_i32 : i32 to index
    %c0_194 = arith.constant 0 : index
    %c0_195 = arith.constant 0 : index
    %359 = vector.load %arg9[%358, %c0_194, %c0_195] : memref<8x4x32xf32, #tpu.memory_space<vmem>>, vector<1x4x32xf32>
    %360 = vector.shape_cast %359 : vector<1x4x32xf32> to vector<4x32xf32>
    %cst_196 = arith.constant dense<0.000000e+00> : vector<4x32xf32>
    %361 = tpu.matmul %356, %44, %cst_196 {dimension_numbers = #tpu.dot_dimension_numbers<[1], [0], [0], [1], [0, 0, 1, 1], [], []>} : vector<4x32xf32>, vector<32x32xf32>, vector<4x32xf32> -> vector<4x32xf32>
    %362 = arith.addf %360, %361 : vector<4x32xf32>
    %363 = arith.negf %362 : vector<4x32xf32>
    %364 = math.exp %363 : vector<4x32xf32>
    %cst_197 = arith.constant 1.000000e+00 : f32
    %365 = vector.broadcast %cst_197 : f32 to vector<4x32xf32>
    %366 = arith.addf %365, %364 : vector<4x32xf32>
    %367 = arith.divf %365, %366 : vector<4x32xf32>
    %368 = arith.index_cast %c5_i32 : i32 to index
    %c0_198 = arith.constant 0 : index
    %c0_199 = arith.constant 0 : index
    %369 = vector.load %arg10[%368, %c0_198, %c0_199] : memref<8x4x32xf32, #tpu.memory_space<vmem>>, vector<1x4x32xf32>
    %370 = vector.shape_cast %369 : vector<1x4x32xf32> to vector<4x32xf32>
    %cst_200 = arith.constant dense<0.000000e+00> : vector<4x32xf32>
    %371 = tpu.matmul %356, %46, %cst_200 {dimension_numbers = #tpu.dot_dimension_numbers<[1], [0], [0], [1], [0, 0, 1, 1], [], []>} : vector<4x32xf32>, vector<32x32xf32>, vector<4x32xf32> -> vector<4x32xf32>
    %372 = arith.addf %370, %371 : vector<4x32xf32>
    %373 = arith.negf %372 : vector<4x32xf32>
    %374 = math.exp %373 : vector<4x32xf32>
    %cst_201 = arith.constant 1.000000e+00 : f32
    %375 = vector.broadcast %cst_201 : f32 to vector<4x32xf32>
    %376 = arith.addf %375, %374 : vector<4x32xf32>
    %377 = arith.divf %375, %376 : vector<4x32xf32>
    %378 = arith.index_cast %c5_i32 : i32 to index
    %c0_202 = arith.constant 0 : index
    %c0_203 = arith.constant 0 : index
    %379 = vector.load %arg11[%378, %c0_202, %c0_203] : memref<8x4x32xf32, #tpu.memory_space<vmem>>, vector<1x4x32xf32>
    %380 = vector.shape_cast %379 : vector<1x4x32xf32> to vector<4x32xf32>
    %cst_204 = arith.constant dense<0.000000e+00> : vector<4x32xf32>
    %381 = tpu.matmul %356, %48, %cst_204 {dimension_numbers = #tpu.dot_dimension_numbers<[1], [0], [0], [1], [0, 0, 1, 1], [], []>} : vector<4x32xf32>, vector<32x32xf32>, vector<4x32xf32> -> vector<4x32xf32>
    %382 = arith.addf %380, %381 : vector<4x32xf32>
    %383 = math.tanh %382 : vector<4x32xf32>
    %384 = arith.index_cast %c5_i32 : i32 to index
    %c0_205 = arith.constant 0 : index
    %c0_206 = arith.constant 0 : index
    %385 = vector.load %arg12[%384, %c0_205, %c0_206] : memref<8x4x32xf32, #tpu.memory_space<vmem>>, vector<1x4x32xf32>
    %386 = vector.shape_cast %385 : vector<1x4x32xf32> to vector<4x32xf32>
    %cst_207 = arith.constant dense<0.000000e+00> : vector<4x32xf32>
    %387 = tpu.matmul %356, %50, %cst_207 {dimension_numbers = #tpu.dot_dimension_numbers<[1], [0], [0], [1], [0, 0, 1, 1], [], []>} : vector<4x32xf32>, vector<32x32xf32>, vector<4x32xf32> -> vector<4x32xf32>
    %388 = arith.addf %386, %387 : vector<4x32xf32>
    %389 = arith.negf %388 : vector<4x32xf32>
    %390 = math.exp %389 : vector<4x32xf32>
    %cst_208 = arith.constant 1.000000e+00 : f32
    %391 = vector.broadcast %cst_208 : f32 to vector<4x32xf32>
    %392 = arith.addf %391, %390 : vector<4x32xf32>
    %393 = arith.divf %391, %392 : vector<4x32xf32>
    %394 = arith.mulf %377, %357 : vector<4x32xf32>
    %395 = arith.mulf %367, %383 : vector<4x32xf32>
    %396 = arith.addf %394, %395 : vector<4x32xf32>
    %397 = math.tanh %396 : vector<4x32xf32>
    %398 = arith.mulf %393, %397 : vector<4x32xf32>
    %399 = vector.broadcast %c5_i32 : i32 to vector<4x1xi32>
    %400 = arith.cmpi slt, %399, %42 : vector<4x1xi32>
    %401 = vector.shape_cast %400 : vector<4x1xi1> to vector<4x1xi1>
    %402 = vector.broadcast %401 : vector<4x1xi1> to vector<4x32xi1>
    %403 = arith.select %402, %398, %356 : vector<4x32xi1>, vector<4x32xf32>
    %c0_209 = arith.constant 0 : index
    %c0_210 = arith.constant 0 : index
    %404 = vector.load %arg13[%c0_209, %c0_210] : memref<4x32xf32, #tpu.memory_space<vmem>>, vector<4x32xf32>
    tpu.vector_store %arg13[%c0_209, %c0_210], %403 {strides = array<i32>} : memref<4x32xf32, #tpu.memory_space<vmem>>, vector<4x32xf32>,
    %405 = vector.shape_cast %400 : vector<4x1xi1> to vector<4x1xi1>
    %406 = vector.broadcast %405 : vector<4x1xi1> to vector<4x32xi1>
    %407 = arith.select %406, %396, %357 : vector<4x32xi1>, vector<4x32xf32>
    %c0_211 = arith.constant 0 : index
    %c0_212 = arith.constant 0 : index
    %408 = vector.load %arg14[%c0_211, %c0_212] : memref<4x32xf32, #tpu.memory_space<vmem>>, vector<4x32xf32>
    tpu.vector_store %arg14[%c0_211, %c0_212], %407 {strides = array<i32>} : memref<4x32xf32, #tpu.memory_space<vmem>>, vector<4x32xf32>,
    %cst_213 = arith.constant 0.000000e+00 : f32
    %409 = vector.shape_cast %400 : vector<4x1xi1> to vector<4x1xi1>
    %410 = vector.broadcast %409 : vector<4x1xi1> to vector<4x32xi1>
    %411 = vector.broadcast %cst_213 : f32 to vector<4x32xf32>
    %412 = arith.select %410, %398, %411 : vector<4x32xi1>, vector<4x32xf32>
    %413 = arith.index_cast %c5_i32 : i32 to index
    %c0_214 = arith.constant 0 : index
    %c0_215 = arith.constant 0 : index
    %414 = vector.load %arg8[%413, %c0_214, %c0_215] : memref<8x4x32xf32, #tpu.memory_space<vmem>>, vector<1x4x32xf32>
    %415 = vector.shape_cast %414 : vector<1x4x32xf32> to vector<4x32xf32>
    %416 = vector.shape_cast %412 : vector<4x32xf32> to vector<1x4x32xf32>
    tpu.vector_store %arg8[%413, %c0_214, %c0_215], %416 {strides = array<i32>} : memref<8x4x32xf32, #tpu.memory_space<vmem>>, vector<1x4x32xf32>,
    %c6_i32 = arith.constant 6 : i32
    %c0_216 = arith.constant 0 : index
    %c0_217 = arith.constant 0 : index
    %417 = vector.load %arg13[%c0_216, %c0_217] : memref<4x32xf32, #tpu.memory_space<vmem>>, vector<4x32xf32>
    %c0_218 = arith.constant 0 : index
    %c0_219 = arith.constant 0 : index
    %418 = vector.load %arg14[%c0_218, %c0_219] : memref<4x32xf32, #tpu.memory_space<vmem>>, vector<4x32xf32>
    %419 = arith.index_cast %c6_i32 : i32 to index
    %c0_220 = arith.constant 0 : index
    %c0_221 = arith.constant 0 : index
    %420 = vector.load %arg9[%419, %c0_220, %c0_221] : memref<8x4x32xf32, #tpu.memory_space<vmem>>, vector<1x4x32xf32>
    %421 = vector.shape_cast %420 : vector<1x4x32xf32> to vector<4x32xf32>
    %cst_222 = arith.constant dense<0.000000e+00> : vector<4x32xf32>
    %422 = tpu.matmul %417, %44, %cst_222 {dimension_numbers = #tpu.dot_dimension_numbers<[1], [0], [0], [1], [0, 0, 1, 1], [], []>} : vector<4x32xf32>, vector<32x32xf32>, vector<4x32xf32> -> vector<4x32xf32>
    %423 = arith.addf %421, %422 : vector<4x32xf32>
    %424 = arith.negf %423 : vector<4x32xf32>
    %425 = math.exp %424 : vector<4x32xf32>
    %cst_223 = arith.constant 1.000000e+00 : f32
    %426 = vector.broadcast %cst_223 : f32 to vector<4x32xf32>
    %427 = arith.addf %426, %425 : vector<4x32xf32>
    %428 = arith.divf %426, %427 : vector<4x32xf32>
    %429 = arith.index_cast %c6_i32 : i32 to index
    %c0_224 = arith.constant 0 : index
    %c0_225 = arith.constant 0 : index
    %430 = vector.load %arg10[%429, %c0_224, %c0_225] : memref<8x4x32xf32, #tpu.memory_space<vmem>>, vector<1x4x32xf32>
    %431 = vector.shape_cast %430 : vector<1x4x32xf32> to vector<4x32xf32>
    %cst_226 = arith.constant dense<0.000000e+00> : vector<4x32xf32>
    %432 = tpu.matmul %417, %46, %cst_226 {dimension_numbers = #tpu.dot_dimension_numbers<[1], [0], [0], [1], [0, 0, 1, 1], [], []>} : vector<4x32xf32>, vector<32x32xf32>, vector<4x32xf32> -> vector<4x32xf32>
    %433 = arith.addf %431, %432 : vector<4x32xf32>
    %434 = arith.negf %433 : vector<4x32xf32>
    %435 = math.exp %434 : vector<4x32xf32>
    %cst_227 = arith.constant 1.000000e+00 : f32
    %436 = vector.broadcast %cst_227 : f32 to vector<4x32xf32>
    %437 = arith.addf %436, %435 : vector<4x32xf32>
    %438 = arith.divf %436, %437 : vector<4x32xf32>
    %439 = arith.index_cast %c6_i32 : i32 to index
    %c0_228 = arith.constant 0 : index
    %c0_229 = arith.constant 0 : index
    %440 = vector.load %arg11[%439, %c0_228, %c0_229] : memref<8x4x32xf32, #tpu.memory_space<vmem>>, vector<1x4x32xf32>
    %441 = vector.shape_cast %440 : vector<1x4x32xf32> to vector<4x32xf32>
    %cst_230 = arith.constant dense<0.000000e+00> : vector<4x32xf32>
    %442 = tpu.matmul %417, %48, %cst_230 {dimension_numbers = #tpu.dot_dimension_numbers<[1], [0], [0], [1], [0, 0, 1, 1], [], []>} : vector<4x32xf32>, vector<32x32xf32>, vector<4x32xf32> -> vector<4x32xf32>
    %443 = arith.addf %441, %442 : vector<4x32xf32>
    %444 = math.tanh %443 : vector<4x32xf32>
    %445 = arith.index_cast %c6_i32 : i32 to index
    %c0_231 = arith.constant 0 : index
    %c0_232 = arith.constant 0 : index
    %446 = vector.load %arg12[%445, %c0_231, %c0_232] : memref<8x4x32xf32, #tpu.memory_space<vmem>>, vector<1x4x32xf32>
    %447 = vector.shape_cast %446 : vector<1x4x32xf32> to vector<4x32xf32>
    %cst_233 = arith.constant dense<0.000000e+00> : vector<4x32xf32>
    %448 = tpu.matmul %417, %50, %cst_233 {dimension_numbers = #tpu.dot_dimension_numbers<[1], [0], [0], [1], [0, 0, 1, 1], [], []>} : vector<4x32xf32>, vector<32x32xf32>, vector<4x32xf32> -> vector<4x32xf32>
    %449 = arith.addf %447, %448 : vector<4x32xf32>
    %450 = arith.negf %449 : vector<4x32xf32>
    %451 = math.exp %450 : vector<4x32xf32>
    %cst_234 = arith.constant 1.000000e+00 : f32
    %452 = vector.broadcast %cst_234 : f32 to vector<4x32xf32>
    %453 = arith.addf %452, %451 : vector<4x32xf32>
    %454 = arith.divf %452, %453 : vector<4x32xf32>
    %455 = arith.mulf %438, %418 : vector<4x32xf32>
    %456 = arith.mulf %428, %444 : vector<4x32xf32>
    %457 = arith.addf %455, %456 : vector<4x32xf32>
    %458 = math.tanh %457 : vector<4x32xf32>
    %459 = arith.mulf %454, %458 : vector<4x32xf32>
    %460 = vector.broadcast %c6_i32 : i32 to vector<4x1xi32>
    %461 = arith.cmpi slt, %460, %42 : vector<4x1xi32>
    %462 = vector.shape_cast %461 : vector<4x1xi1> to vector<4x1xi1>
    %463 = vector.broadcast %462 : vector<4x1xi1> to vector<4x32xi1>
    %464 = arith.select %463, %459, %417 : vector<4x32xi1>, vector<4x32xf32>
    %c0_235 = arith.constant 0 : index
    %c0_236 = arith.constant 0 : index
    %465 = vector.load %arg13[%c0_235, %c0_236] : memref<4x32xf32, #tpu.memory_space<vmem>>, vector<4x32xf32>
    tpu.vector_store %arg13[%c0_235, %c0_236], %464 {strides = array<i32>} : memref<4x32xf32, #tpu.memory_space<vmem>>, vector<4x32xf32>,
    %466 = vector.shape_cast %461 : vector<4x1xi1> to vector<4x1xi1>
    %467 = vector.broadcast %466 : vector<4x1xi1> to vector<4x32xi1>
    %468 = arith.select %467, %457, %418 : vector<4x32xi1>, vector<4x32xf32>
    %c0_237 = arith.constant 0 : index
    %c0_238 = arith.constant 0 : index
    %469 = vector.load %arg14[%c0_237, %c0_238] : memref<4x32xf32, #tpu.memory_space<vmem>>, vector<4x32xf32>
    tpu.vector_store %arg14[%c0_237, %c0_238], %468 {strides = array<i32>} : memref<4x32xf32, #tpu.memory_space<vmem>>, vector<4x32xf32>,
    %cst_239 = arith.constant 0.000000e+00 : f32
    %470 = vector.shape_cast %461 : vector<4x1xi1> to vector<4x1xi1>
    %471 = vector.broadcast %470 : vector<4x1xi1> to vector<4x32xi1>
    %472 = vector.broadcast %cst_239 : f32 to vector<4x32xf32>
    %473 = arith.select %471, %459, %472 : vector<4x32xi1>, vector<4x32xf32>
    %474 = arith.index_cast %c6_i32 : i32 to index
    %c0_240 = arith.constant 0 : index
    %c0_241 = arith.constant 0 : index
    %475 = vector.load %arg8[%474, %c0_240, %c0_241] : memref<8x4x32xf32, #tpu.memory_space<vmem>>, vector<1x4x32xf32>
    %476 = vector.shape_cast %475 : vector<1x4x32xf32> to vector<4x32xf32>
    %477 = vector.shape_cast %473 : vector<4x32xf32> to vector<1x4x32xf32>
    tpu.vector_store %arg8[%474, %c0_240, %c0_241], %477 {strides = array<i32>} : memref<8x4x32xf32, #tpu.memory_space<vmem>>, vector<1x4x32xf32>,
    %c7_i32 = arith.constant 7 : i32
    %c0_242 = arith.constant 0 : index
    %c0_243 = arith.constant 0 : index
    %478 = vector.load %arg13[%c0_242, %c0_243] : memref<4x32xf32, #tpu.memory_space<vmem>>, vector<4x32xf32>
    %c0_244 = arith.constant 0 : index
    %c0_245 = arith.constant 0 : index
    %479 = vector.load %arg14[%c0_244, %c0_245] : memref<4x32xf32, #tpu.memory_space<vmem>>, vector<4x32xf32>
    %480 = arith.index_cast %c7_i32 : i32 to index
    %c0_246 = arith.constant 0 : index
    %c0_247 = arith.constant 0 : index
    %481 = vector.load %arg9[%480, %c0_246, %c0_247] : memref<8x4x32xf32, #tpu.memory_space<vmem>>, vector<1x4x32xf32>
    %482 = vector.shape_cast %481 : vector<1x4x32xf32> to vector<4x32xf32>
    %cst_248 = arith.constant dense<0.000000e+00> : vector<4x32xf32>
    %483 = tpu.matmul %478, %44, %cst_248 {dimension_numbers = #tpu.dot_dimension_numbers<[1], [0], [0], [1], [0, 0, 1, 1], [], []>} : vector<4x32xf32>, vector<32x32xf32>, vector<4x32xf32> -> vector<4x32xf32>
    %484 = arith.addf %482, %483 : vector<4x32xf32>
    %485 = arith.negf %484 : vector<4x32xf32>
    %486 = math.exp %485 : vector<4x32xf32>
    %cst_249 = arith.constant 1.000000e+00 : f32
    %487 = vector.broadcast %cst_249 : f32 to vector<4x32xf32>
    %488 = arith.addf %487, %486 : vector<4x32xf32>
    %489 = arith.divf %487, %488 : vector<4x32xf32>
    %490 = arith.index_cast %c7_i32 : i32 to index
    %c0_250 = arith.constant 0 : index
    %c0_251 = arith.constant 0 : index
    %491 = vector.load %arg10[%490, %c0_250, %c0_251] : memref<8x4x32xf32, #tpu.memory_space<vmem>>, vector<1x4x32xf32>
    %492 = vector.shape_cast %491 : vector<1x4x32xf32> to vector<4x32xf32>
    %cst_252 = arith.constant dense<0.000000e+00> : vector<4x32xf32>
    %493 = tpu.matmul %478, %46, %cst_252 {dimension_numbers = #tpu.dot_dimension_numbers<[1], [0], [0], [1], [0, 0, 1, 1], [], []>} : vector<4x32xf32>, vector<32x32xf32>, vector<4x32xf32> -> vector<4x32xf32>
    %494 = arith.addf %492, %493 : vector<4x32xf32>
    %495 = arith.negf %494 : vector<4x32xf32>
    %496 = math.exp %495 : vector<4x32xf32>
    %cst_253 = arith.constant 1.000000e+00 : f32
    %497 = vector.broadcast %cst_253 : f32 to vector<4x32xf32>
    %498 = arith.addf %497, %496 : vector<4x32xf32>
    %499 = arith.divf %497, %498 : vector<4x32xf32>
    %500 = arith.index_cast %c7_i32 : i32 to index
    %c0_254 = arith.constant 0 : index
    %c0_255 = arith.constant 0 : index
    %501 = vector.load %arg11[%500, %c0_254, %c0_255] : memref<8x4x32xf32, #tpu.memory_space<vmem>>, vector<1x4x32xf32>
    %502 = vector.shape_cast %501 : vector<1x4x32xf32> to vector<4x32xf32>
    %cst_256 = arith.constant dense<0.000000e+00> : vector<4x32xf32>
    %503 = tpu.matmul %478, %48, %cst_256 {dimension_numbers = #tpu.dot_dimension_numbers<[1], [0], [0], [1], [0, 0, 1, 1], [], []>} : vector<4x32xf32>, vector<32x32xf32>, vector<4x32xf32> -> vector<4x32xf32>
    %504 = arith.addf %502, %503 : vector<4x32xf32>
    %505 = math.tanh %504 : vector<4x32xf32>
    %506 = arith.index_cast %c7_i32 : i32 to index
    %c0_257 = arith.constant 0 : index
    %c0_258 = arith.constant 0 : index
    %507 = vector.load %arg12[%506, %c0_257, %c0_258] : memref<8x4x32xf32, #tpu.memory_space<vmem>>, vector<1x4x32xf32>
    %508 = vector.shape_cast %507 : vector<1x4x32xf32> to vector<4x32xf32>
    %cst_259 = arith.constant dense<0.000000e+00> : vector<4x32xf32>
    %509 = tpu.matmul %478, %50, %cst_259 {dimension_numbers = #tpu.dot_dimension_numbers<[1], [0], [0], [1], [0, 0, 1, 1], [], []>} : vector<4x32xf32>, vector<32x32xf32>, vector<4x32xf32> -> vector<4x32xf32>
    %510 = arith.addf %508, %509 : vector<4x32xf32>
    %511 = arith.negf %510 : vector<4x32xf32>
    %512 = math.exp %511 : vector<4x32xf32>
    %cst_260 = arith.constant 1.000000e+00 : f32
    %513 = vector.broadcast %cst_260 : f32 to vector<4x32xf32>
    %514 = arith.addf %513, %512 : vector<4x32xf32>
    %515 = arith.divf %513, %514 : vector<4x32xf32>
    %516 = arith.mulf %499, %479 : vector<4x32xf32>
    %517 = arith.mulf %489, %505 : vector<4x32xf32>
    %518 = arith.addf %516, %517 : vector<4x32xf32>
    %519 = math.tanh %518 : vector<4x32xf32>
    %520 = arith.mulf %515, %519 : vector<4x32xf32>
    %521 = vector.broadcast %c7_i32 : i32 to vector<4x1xi32>
    %522 = arith.cmpi slt, %521, %42 : vector<4x1xi32>
    %523 = vector.shape_cast %522 : vector<4x1xi1> to vector<4x1xi1>
    %524 = vector.broadcast %523 : vector<4x1xi1> to vector<4x32xi1>
    %525 = arith.select %524, %520, %478 : vector<4x32xi1>, vector<4x32xf32>
    %c0_261 = arith.constant 0 : index
    %c0_262 = arith.constant 0 : index
    %526 = vector.load %arg13[%c0_261, %c0_262] : memref<4x32xf32, #tpu.memory_space<vmem>>, vector<4x32xf32>
    tpu.vector_store %arg13[%c0_261, %c0_262], %525 {strides = array<i32>} : memref<4x32xf32, #tpu.memory_space<vmem>>, vector<4x32xf32>,
    %527 = vector.shape_cast %522 : vector<4x1xi1> to vector<4x1xi1>
    %528 = vector.broadcast %527 : vector<4x1xi1> to vector<4x32xi1>
    %529 = arith.select %528, %518, %479 : vector<4x32xi1>, vector<4x32xf32>
    %c0_263 = arith.constant 0 : index
    %c0_264 = arith.constant 0 : index
    %530 = vector.load %arg14[%c0_263, %c0_264] : memref<4x32xf32, #tpu.memory_space<vmem>>, vector<4x32xf32>
    tpu.vector_store %arg14[%c0_263, %c0_264], %529 {strides = array<i32>} : memref<4x32xf32, #tpu.memory_space<vmem>>, vector<4x32xf32>,
    %cst_265 = arith.constant 0.000000e+00 : f32
    %531 = vector.shape_cast %522 : vector<4x1xi1> to vector<4x1xi1>
    %532 = vector.broadcast %531 : vector<4x1xi1> to vector<4x32xi1>
    %533 = vector.broadcast %cst_265 : f32 to vector<4x32xf32>
    %534 = arith.select %532, %520, %533 : vector<4x32xi1>, vector<4x32xf32>
    %535 = arith.index_cast %c7_i32 : i32 to index
    %c0_266 = arith.constant 0 : index
    %c0_267 = arith.constant 0 : index
    %536 = vector.load %arg8[%535, %c0_266, %c0_267] : memref<8x4x32xf32, #tpu.memory_space<vmem>>, vector<1x4x32xf32>
    %537 = vector.shape_cast %536 : vector<1x4x32xf32> to vector<4x32xf32>
    %538 = vector.shape_cast %534 : vector<4x32xf32> to vector<1x4x32xf32>
    tpu.vector_store %arg8[%535, %c0_266, %c0_267], %538 {strides = array<i32>} : memref<8x4x32xf32, #tpu.memory_space<vmem>>, vector<1x4x32xf32>,
    %c8_i32 = arith.constant 8 : i32
    return
  }
  func.func @transform_0(%arg0: i32) -> (i32, i32, i32) {
    %c0_i32 = arith.constant 0 : i32
    %c0_i32_0 = arith.constant 0 : i32
    %c0_i32_1 = arith.constant 0 : i32
    %c0_i32_2 = arith.constant 0 : i32
    return %c0_i32, %c0_i32_0, %c0_i32_1 : i32, i32, i32
  }
  func.func @transform_1(%arg0: i32) -> (i32, i32) {
    %c0_i32 = arith.constant 0 : i32
    %c0_i32_0 = arith.constant 0 : i32
    %c0_i32_1 = arith.constant 0 : i32
    return %c0_i32, %c0_i32_0 : i32, i32
  }
  func.func @transform_2(%arg0: i32) -> (i32, i32) {
    %c0_i32 = arith.constant 0 : i32
    %c0_i32_0 = arith.constant 0 : i32
    %c0_i32_1 = arith.constant 0 : i32
    return %c0_i32, %c0_i32_0 : i32, i32
  }
  func.func @transform_3(%arg0: i32) -> (i32, i32) {
    %c0_i32 = arith.constant 0 : i32
    %c0_i32_0 = arith.constant 0 : i32
    %c0_i32_1 = arith.constant 0 : i32
    return %c0_i32, %c0_i32_0 : i32, i32
  }
  func.func @transform_4(%arg0: i32) -> (i32, i32, i32) {
    %c0_i32 = arith.constant 0 : i32
    %c0_i32_0 = arith.constant 0 : i32
    %c0_i32_1 = arith.constant 0 : i32
    %c0_i32_2 = arith.constant 0 : i32
    return %c0_i32, %c0_i32_0, %c0_i32_1 : i32, i32, i32
  }
  func.func @transform_5(%arg0: i32) -> (i32, i32, i32) {
    %c0_i32 = arith.constant 0 : i32
    %c0_i32_0 = arith.constant 0 : i32
    %c0_i32_1 = arith.constant 0 : i32
    %c0_i32_2 = arith.constant 0 : i32
    return %c0_i32, %c0_i32_0, %c0_i32_1 : i32, i32, i32
  }
  func.func @transform_6(%arg0: i32) -> (i32, i32, i32) {
    %c0_i32 = arith.constant 0 : i32
    %c0_i32_0 = arith.constant 0 : i32
    %c0_i32_1 = arith.constant 0 : i32
    %c0_i32_2 = arith.constant 0 : i32
    return %c0_i32, %c0_i32_0, %c0_i32_1 : i32, i32, i32
  }
  func.func @transform_7(%arg0: i32) -> (i32, i32, i32) {
    %c0_i32 = arith.constant 0 : i32
    %c0_i32_0 = arith.constant 0 : i32
    %c0_i32_1 = arith.constant 0 : i32
    %c0_i32_2 = arith.constant 0 : i32
    return %c0_i32, %c0_i32_0, %c0_i32_1 : i32, i32, i32
  }
}

</mosaic_0001>

<llo_original>
// kernel: tpu_custom_call.1
$region0: #{tpu_custom_call.1}
  #allocation0 [shape = 'u32[]', space=smem, size = 0x4, offset = 0x4, fixed_abs, tag = 'smem constant byte address 0x4 - core index']
  #allocation1 [shape = 'u32[72,128]{1,0:T(1,128)}', space=vmem, size = 0x9000, scoped, tag = 'internal scratch']
  #allocation2 [shape = 'f32[8,4,32]{2,1,0:T(4,128)}', space=vmem, size = 0x4000, scoped, tag = 'scratch operand']
  #allocation3 [shape = 'f32[8,4,32]{2,1,0:T(4,128)}', space=vmem, size = 0x4000, scoped, tag = 'scratch operand']
  #allocation4 [shape = 'f32[8,4,32]{2,1,0:T(4,128)}', space=vmem, size = 0x4000, scoped, tag = 'scratch operand']
  #allocation5 [shape = 'f32[8,4,32]{2,1,0:T(4,128)}', space=vmem, size = 0x4000, scoped, tag = 'scratch operand']
  #allocation6 [shape = 'f32[4,32]{1,0:T(4,128)}', space=vmem, size = 0x800, scoped, tag = 'scratch operand']
  #allocation7 [shape = 'f32[4,32]{1,0:T(4,128)}', space=vmem, size = 0x800, scoped, tag = 'scratch operand']
  %s0 = inlined_call_operand.hbm [shape: f32[8,4,32], index: 0, kind: input, shape index: {}]
  %s1 = inlined_call_operand.vmem [shape: s32[4,1], index: 1, kind: input, shape index: {}]
  %s2 = inlined_call_operand.vmem [shape: f32[4,32], index: 2, kind: input, shape index: {}]
  %s3 = inlined_call_operand.hbm [shape: f32[4,32], index: 3, kind: input, shape index: {}]
  %s4 = inlined_call_operand.hbm [shape: f32[4,32,32], index: 4, kind: input, shape index: {}]
  %s5 = inlined_call_operand.hbm [shape: f32[4,32,32], index: 5, kind: input, shape index: {}]
  %s6 = inlined_call_operand.vmem [shape: f32[4,1,32], index: 6, kind: input, shape index: {}]
  %s7 = inlined_call_operand.hbm [shape: f32[8,4,32], index: 7, kind: output, shape index: {}]
  %s8 = sld [smem:[#allocation0]]
  $region54: #{tpu_custom_call.1} parent=0
    _
  %s10 = ssub.s32 1, %s8
  %s11 = scalar_select 0, %s10, %s8
  $region1: #{tpu_custom_call.1} parent=0
    #allocation8 [shape = 'u8[16384]{0}', space=vmem, size = 0x4000, scoped, tag = 'input window, operand 0, single buffered']
    #allocation9 [shape = 's32[1]{0}', space=sflag, size = 0x4, scoped, tag = 'scoped memory for tpu_custom_call.1']
    #allocation10 [shape = 's32[1]{0}', space=sflag, size = 0x4, scoped, tag = 'scoped memory for tpu_custom_call.1']
    #allocation11 [shape = 'u8[2048]{0}', space=vmem, size = 0x800, scoped, tag = 'input window, operand 3, single buffered']
    #allocation12 [shape = 's32[1]{0}', space=sflag, size = 0x4, scoped, tag = 'scoped memory for tpu_custom_call.1']
    #allocation13 [shape = 'u8[65536]{0}', space=vmem, size = 0x10000, scoped, tag = 'input window, operand 4, single buffered']
    #allocation14 [shape = 'u8[65536]{0}', space=vmem, size = 0x10000, scoped, tag = 'input window, operand 5, single buffered']
    #allocation15 [shape = 's32[1]{0}', space=sflag, size = 0x4, scoped, tag = 'scoped memory for tpu_custom_call.1']
    #allocation16 [shape = 'u8[16384]{0}', space=vmem, size = 0x4000, scoped, tag = 'output window, operand 0, single buffered']
    %12 = vsyncpa [#allocation9], 0
    %13 = vsyncpa [#allocation12], 0
    %14 = vsyncpa [#allocation15], 0
    %15 = vsyncpa [#allocation10], 0
    // Predicated region
    $region2: #{tpu_custom_call.1} parent=1 // pred_check
      _
    $region3: #{tpu_custom_call.1} parent=1 // pred_check_branch
      %17 = sbr.rel (0) target = $region5
    $region4: #{tpu_custom_call.1} parent=1 // pred_region
      %19 = vsyncadd [#allocation9], 0
      %s20 = sshll.u32 %s0, 4
      %s21 = int_to_ptr.hbm [resolvable:$true] %s20
      %s22 = sshll.u32 [#allocation8], 4
      %s23 = int_to_ptr.vmem [resolvable:$true] %s22
      %28 = dma.hbm_to_vmem [thread:$0]  %s21, 512, %s23, [#allocation9], 64, 64, 4
    $region5: #{tpu_custom_call.1} parent=1 // pred_fallthru
      _
    // Predicated region
    $region6: #{tpu_custom_call.1} parent=1 // pred_check
      _
    $region7: #{tpu_custom_call.1} parent=1 // pred_check_branch
      %30 = sbr.rel (0) target = $region9
    $region8: #{tpu_custom_call.1} parent=1 // pred_region
      _
    $region9: #{tpu_custom_call.1} parent=1 // pred_fallthru
      _
    // Predicated region
    $region10: #{tpu_custom_call.1} parent=1 // pred_check
      _
    $region11: #{tpu_custom_call.1} parent=1 // pred_check_branch
      %32 = sbr.rel (0) target = $region13
    $region12: #{tpu_custom_call.1} parent=1 // pred_region
      _
    $region13: #{tpu_custom_call.1} parent=1 // pred_fallthru
      _
    // Predicated region
    $region14: #{tpu_custom_call.1} parent=1 // pred_check
      _
    $region15: #{tpu_custom_call.1} parent=1 // pred_check_branch
      %34 = sbr.rel (0) target = $region17
    $region16: #{tpu_custom_call.1} parent=1 // pred_region
      %36 = vsyncadd [#allocation12], 0
      %s38 = sshll.u32 %s3, 4
      %s39 = int_to_ptr.hbm [resolvable:$true] %s38
      %s40 = sshll.u32 [#allocation11], 4
      %s41 = int_to_ptr.vmem [resolvable:$true] %s40
      %43 = dma.hbm_to_vmem [thread:$0]  %s39, 64, %s41, [#allocation12]
    $region17: #{tpu_custom_call.1} parent=1 // pred_fallthru
      _
    // Predicated region
    $region18: #{tpu_custom_call.1} parent=1 // pred_check
      _
    $region19: #{tpu_custom_call.1} parent=1 // pred_check_branch
      %45 = sbr.rel (0) target = $region21
    $region20: #{tpu_custom_call.1} parent=1 // pred_region
      %47 = vsyncadd [#allocation12], 0
      %s48 = sshll.u32 %s4, 4
      %s49 = int_to_ptr.hbm [resolvable:$true] %s48
      %s50 = sshll.u32 [#allocation13], 4
      %s51 = int_to_ptr.vmem [resolvable:$true] %s50
      %56 = dma.hbm_to_vmem [thread:$0]  %s49, 2048, %s51, [#allocation12], 128, 128, 8
    $region21: #{tpu_custom_call.1} parent=1 // pred_fallthru
      _
    // Predicated region
    $region22: #{tpu_custom_call.1} parent=1 // pred_check
      _
    $region23: #{tpu_custom_call.1} parent=1 // pred_check_branch
      %58 = sbr.rel (0) target = $region25
    $region24: #{tpu_custom_call.1} parent=1 // pred_region
      %60 = vsyncadd [#allocation15], 0
      %s61 = sshll.u32 %s5, 4
      %s62 = int_to_ptr.hbm [resolvable:$true] %s61
      %s63 = sshll.u32 [#allocation14], 4
      %s64 = int_to_ptr.vmem [resolvable:$true] %s63
      %69 = dma.hbm_to_vmem [thread:$0]  %s62, 2048, %s64, [#allocation15], 128, 128, 8
    $region25: #{tpu_custom_call.1} parent=1 // pred_fallthru
      _
    // Predicated region
    $region26: #{tpu_custom_call.1} parent=1 // pred_check
      _
    $region27: #{tpu_custom_call.1} parent=1 // pred_check_branch
      %71 = sbr.rel (0) target = $region29
    $region28: #{tpu_custom_call.1} parent=1 // pred_region
      _
    $region29: #{tpu_custom_call.1} parent=1 // pred_fallthru
      _
    // Predicated region
    $region30: #{tpu_custom_call.1} parent=1 // pred_check
      _
    $region31: #{tpu_custom_call.1} parent=1 // pred_check_branch
      %73 = sbr.rel (0) target = $region33
    $region32: #{tpu_custom_call.1} parent=1 // pred_region
      %75 = dma.done [#allocation9], 512
    $region33: #{tpu_custom_call.1} parent=1 // pred_fallthru
      _
    // Predicated region
    $region34: #{tpu_custom_call.1} parent=1 // pred_check
      _
    $region35: #{tpu_custom_call.1} parent=1 // pred_check_branch
      %77 = sbr.rel (0) target = $region37
    $region36: #{tpu_custom_call.1} parent=1 // pred_region
      %79 = dma.done [#allocation12], 64
    $region37: #{tpu_custom_call.1} parent=1 // pred_fallthru
      _
    // Predicated region
    $region38: #{tpu_custom_call.1} parent=1 // pred_check
      _
    $region39: #{tpu_custom_call.1} parent=1 // pred_check_branch
      %81 = sbr.rel (0) target = $region41
    $region40: #{tpu_custom_call.1} parent=1 // pred_region
      %83 = dma.done [#allocation12], 2048
    $region41: #{tpu_custom_call.1} parent=1 // pred_fallthru
      _
    // Predicated region
    $region42: #{tpu_custom_call.1} parent=1 // pred_check
      _
    $region43: #{tpu_custom_call.1} parent=1 // pred_check_branch
      %85 = sbr.rel (0) target = $region45
    $region44: #{tpu_custom_call.1} parent=1 // pred_region
      %87 = dma.done [#allocation15], 2048
    $region45: #{tpu_custom_call.1} parent=1 // pred_fallthru
      _
    %v88 = vld [vmem:[#allocation8] sm:$0xf]
    %v89 = vld [vmem:[#allocation8 + $0x4] sm:$0xf]
    %v90 = vld [vmem:[#allocation8 + $0x8] sm:$0xf]
    %v91 = vld [vmem:[#allocation8 + $0xc] sm:$0xf]
    %v92 = vld [vmem:[#allocation8 + $0x10] sm:$0xf]
    %v93 = vld [vmem:[#allocation8 + $0x14] sm:$0xf]
    %v94 = vld [vmem:[#allocation8 + $0x18] sm:$0xf]
    %v95 = vld [vmem:[#allocation8 + $0x1c] sm:$0xf]
    %v96 = vld [vmem:[#allocation13] sm:$0xff]
    %v97 = vld [vmem:[#allocation13 + $0x8] sm:$0xff]
    %v98 = vld [vmem:[#allocation13 + $0x10] sm:$0xff]
    %v99 = vld [vmem:[#allocation13 + $0x18] sm:$0xff]
    %v100 = vld [vmem:[%s6] sm:$0x1]
    %v102 = vperm.slane %v100, 0
    %112 = vst [vmem:[#allocation1] ss:$2 sm:$0xff] %v88
    %s113 = scalar_lea.vmem [#allocation1], 1
    %114 = vst [vmem:[%s113] ss:$2 sm:$0xff] %v89
    %s115 = scalar_lea.vmem [#allocation1], 16
    %116 = vst [vmem:[%s115] ss:$2 sm:$0xff] %v90
    %s117 = scalar_lea.vmem [#allocation1], 17
    %118 = vst [vmem:[%s117] ss:$2 sm:$0xff] %v91
    %s119 = scalar_lea.vmem [#allocation1], 32
    %120 = vst [vmem:[%s119] ss:$2 sm:$0xff] %v92
    %s121 = scalar_lea.vmem [#allocation1], 33
    %122 = vst [vmem:[%s121] ss:$2 sm:$0xff] %v93
    %s123 = scalar_lea.vmem [#allocation1], 48
    %124 = vst [vmem:[%s123] ss:$2 sm:$0xff] %v94
    %s125 = scalar_lea.vmem [#allocation1], 49
    %126 = vst [vmem:[%s125] ss:$2 sm:$0xff] %v95
    %v127 = vld.sshfl [vmem:[#allocation1] sm:$0xff pattern:$0x75316420]
    %v128 = vld.sshfl [vmem:[#allocation1 + $0x10] sm:$0xff pattern:$0x75316420]
    %v129 = vld.sshfl [vmem:[#allocation1 + $0x20] sm:$0xff pattern:$0x75316420]
    %v130 = vld.sshfl [vmem:[#allocation1 + $0x30] sm:$0xff pattern:$0x75316420]
    %vm131 = vcmask 261120
    %v132 = vsel %vm131, %v127, 0
    %v134 = vsel %vm131, %v128, 0
    %v136 = vsel %vm131, %v129, 0
    %v138 = vsel %vm131, %v130, 0
    %140 = vmatpush.msra.mxu0 0.0
    %141 = vmatpush.msra.mxu0 0.0
    %142 = vmatpush.msra.mxu0 0.0
    %143 = vmatpush.msra.mxu0 0.0
    %144 = vmatpush.msra.mxu0 0.0
    %145 = vmatpush.msra.mxu0 0.0
    %146 = vmatpush.msra.mxu0 0.0
    %147 = vmatpush.msra.mxu0 0.0
    %148 = vmatpush.msra.mxu0 0.0
    %149 = vmatpush.msra.mxu0 0.0
    %150 = vmatpush.msra.mxu0 0.0
    %151 = vmatpush.msra.mxu0 0.0
    %152 = vmatpush.msra.mxu0 %v99
    %153 = vmatpush.msra.mxu0 %v98
    %154 = vmatpush.msra.mxu0 %v97
    %155 = vmatpush.msra.mxu0 %v96
    %156 = vmatmul.f32.gmra.mxu0 %v132
    %v157 = vpop.f32.mrf.mxu0
    %v158 = vadd.f32 %v102, %v157
    %159 = vmatmul.f32.gmra.mxu0 %v134
    %v160 = vpop.f32.mrf.mxu0
    %v161 = vadd.f32 %v102, %v160
    %162 = vmatmul.f32.gmra.mxu0 %v136
    %v163 = vpop.f32.mrf.mxu0
    %v164 = vadd.f32 %v102, %v163
    %165 = vmatmul.f32.gmra.mxu0 %v138
    %v166 = vpop.f32.mrf.mxu0
    %v167 = vadd.f32 %v102, %v166
    %168 = vdwg.mxu0
    %v173 = vrot.slane %v158, 4
    %v174 = vrot.slane %v161, 4
    %v175 = vrot.slane %v164, 4
    %v176 = vrot.slane %v167, 4
    %vm181 = vcmask 257024
    %182 = vst.msk [vmem:[#allocation2] sm:$0xf] %vm181, %v158
    %183 = vst.msk [vmem:[#allocation2 + $0x4] sm:$0xf] %vm181, %v173
    %184 = vst.msk [vmem:[#allocation2 + $0x8] sm:$0xf] %vm181, %v161
    %185 = vst.msk [vmem:[#allocation2 + $0xc] sm:$0xf] %vm181, %v174
    %186 = vst.msk [vmem:[#allocation2 + $0x10] sm:$0xf] %vm181, %v164
    %187 = vst.msk [vmem:[#allocation2 + $0x14] sm:$0xf] %vm181, %v175
    %188 = vst.msk [vmem:[#allocation2 + $0x18] sm:$0xf] %vm181, %v167
    %189 = vst.msk [vmem:[#allocation2 + $0x1c] sm:$0xf] %vm181, %v176
    %s190 = scalar_lea.vmem [#allocation13], 32
    %v191 = vld [vmem:[%s190] sm:$0xff]
    %v192 = vld [vmem:[%s190 + $0x8] sm:$0xff]
    %v193 = vld [vmem:[%s190 + $0x10] sm:$0xff]
    %v194 = vld [vmem:[%s190 + $0x18] sm:$0xff]
    %s195 = scalar_lea.vmem %s6, 1
    %v196 = vld [vmem:[%s195] sm:$0x1]
    %v198 = vperm.slane %v196, 0
    %200 = vst [vmem:[#allocation1] ss:$2 sm:$0xff] %v88
    %s201 = scalar_lea.vmem [#allocation1], 1
    %202 = vst [vmem:[%s201] ss:$2 sm:$0xff] %v89
    %s203 = scalar_lea.vmem [#allocation1], 16
    %204 = vst [vmem:[%s203] ss:$2 sm:$0xff] %v90
    %s205 = scalar_lea.vmem [#allocation1], 17
    %206 = vst [vmem:[%s205] ss:$2 sm:$0xff] %v91
    %s207 = scalar_lea.vmem [#allocation1], 32
    %208 = vst [vmem:[%s207] ss:$2 sm:$0xff] %v92
    %s209 = scalar_lea.vmem [#allocation1], 33
    %210 = vst [vmem:[%s209] ss:$2 sm:$0xff] %v93
    %s211 = scalar_lea.vmem [#allocation1], 48
    %212 = vst [vmem:[%s211] ss:$2 sm:$0xff] %v94
    %s213 = scalar_lea.vmem [#allocation1], 49
    %214 = vst [vmem:[%s213] ss:$2 sm:$0xff] %v95
    %v215 = vld.sshfl [vmem:[#allocation1] sm:$0xff pattern:$0x75316420]
    %v216 = vld.sshfl [vmem:[#allocation1 + $0x10] sm:$0xff pattern:$0x75316420]
    %v217 = vld.sshfl [vmem:[#allocation1 + $0x20] sm:$0xff pattern:$0x75316420]
    %v218 = vld.sshfl [vmem:[#allocation1 + $0x30] sm:$0xff pattern:$0x75316420]
    %v219 = vsel %vm131, %v215, 0
    %v221 = vsel %vm131, %v216, 0
    %v223 = vsel %vm131, %v217, 0
    %v225 = vsel %vm131, %v218, 0
    %227 = vmatpush.msra.mxu0 0.0
    %228 = vmatpush.msra.mxu0 0.0
    %229 = vmatpush.msra.mxu0 0.0
    %230 = vmatpush.msra.mxu0 0.0
    %231 = vmatpush.msra.mxu0 0.0
    %232 = vmatpush.msra.mxu0 0.0
    %233 = vmatpush.msra.mxu0 0.0
    %234 = vmatpush.msra.mxu0 0.0
    %235 = vmatpush.msra.mxu0 0.0
    %236 = vmatpush.msra.mxu0 0.0
    %237 = vmatpush.msra.mxu0 0.0
    %238 = vmatpush.msra.mxu0 0.0
    %239 = vmatpush.msra.mxu0 %v194
    %240 = vmatpush.msra.mxu0 %v193
    %241 = vmatpush.msra.mxu0 %v192
    %242 = vmatpush.msra.mxu0 %v191
    %243 = vmatmul.f32.gmra.mxu0 %v219
    %v244 = vpop.f32.mrf.mxu0
    %v245 = vadd.f32 %v198, %v244
    %246 = vmatmul.f32.gmra.mxu0 %v221
    %v247 = vpop.f32.mrf.mxu0
    %v248 = vadd.f32 %v198, %v247
    %249 = vmatmul.f32.gmra.mxu0 %v223
    %v250 = vpop.f32.mrf.mxu0
    %v251 = vadd.f32 %v198, %v250
    %252 = vmatmul.f32.gmra.mxu0 %v225
    %v253 = vpop.f32.mrf.mxu0
    %v254 = vadd.f32 %v198, %v253
    %255 = vdwg.mxu0
    %v260 = vrot.slane %v245, 4
    %v261 = vrot.slane %v248, 4
    %v262 = vrot.slane %v251, 4
    %v263 = vrot.slane %v254, 4
    %268 = vst.msk [vmem:[#allocation3] sm:$0xf] %vm181, %v245
    %269 = vst.msk [vmem:[#allocation3 + $0x4] sm:$0xf] %vm181, %v260
    %270 = vst.msk [vmem:[#allocation3 + $0x8] sm:$0xf] %vm181, %v248
    %271 = vst.msk [vmem:[#allocation3 + $0xc] sm:$0xf] %vm181, %v261
    %272 = vst.msk [vmem:[#allocation3 + $0x10] sm:$0xf] %vm181, %v251
    %273 = vst.msk [vmem:[#allocation3 + $0x14] sm:$0xf] %vm181, %v262
    %274 = vst.msk [vmem:[#allocation3 + $0x18] sm:$0xf] %vm181, %v254
    %275 = vst.msk [vmem:[#allocation3 + $0x1c] sm:$0xf] %vm181, %v263
    %s276 = scalar_lea.vmem [#allocation13], 64
    %v277 = vld [vmem:[%s276] sm:$0xff]
    %v278 = vld [vmem:[%s276 + $0x8] sm:$0xff]
    %v279 = vld [vmem:[%s276 + $0x10] sm:$0xff]
    %v280 = vld [vmem:[%s276 + $0x18] sm:$0xff]
    %s281 = scalar_lea.vmem %s6, 2
    %v282 = vld [vmem:[%s281] sm:$0x1]
    %v284 = vperm.slane %v282, 0
    %286 = vst [vmem:[#allocation1] ss:$2 sm:$0xff] %v88
    %s287 = scalar_lea.vmem [#allocation1], 1
    %288 = vst [vmem:[%s287] ss:$2 sm:$0xff] %v89
    %s289 = scalar_lea.vmem [#allocation1], 16
    %290 = vst [vmem:[%s289] ss:$2 sm:$0xff] %v90
    %s291 = scalar_lea.vmem [#allocation1], 17
    %292 = vst [vmem:[%s291] ss:$2 sm:$0xff] %v91
    %s293 = scalar_lea.vmem [#allocation1], 32
    %294 = vst [vmem:[%s293] ss:$2 sm:$0xff] %v92
    %s295 = scalar_lea.vmem [#allocation1], 33
    %296 = vst [vmem:[%s295] ss:$2 sm:$0xff] %v93
    %s297 = scalar_lea.vmem [#allocation1], 48
    %298 = vst [vmem:[%s297] ss:$2 sm:$0xff] %v94
    %s299 = scalar_lea.vmem [#allocation1], 49
    %300 = vst [vmem:[%s299] ss:$2 sm:$0xff] %v95
    %v301 = vld.sshfl [vmem:[#allocation1] sm:$0xff pattern:$0x75316420]
    %v302 = vld.sshfl [vmem:[#allocation1 + $0x10] sm:$0xff pattern:$0x75316420]
    %v303 = vld.sshfl [vmem:[#allocation1 + $0x20] sm:$0xff pattern:$0x75316420]
    %v304 = vld.sshfl [vmem:[#allocation1 + $0x30] sm:$0xff pattern:$0x75316420]
    %v305 = vsel %vm131, %v301, 0
    %v307 = vsel %vm131, %v302, 0
    %v309 = vsel %vm131, %v303, 0
    %v311 = vsel %vm131, %v304, 0
    %313 = vmatpush.msra.mxu0 0.0
    %314 = vmatpush.msra.mxu0 0.0
    %315 = vmatpush.msra.mxu0 0.0
    %316 = vmatpush.msra.mxu0 0.0
    %317 = vmatpush.msra.mxu0 0.0
    %318 = vmatpush.msra.mxu0 0.0
    %319 = vmatpush.msra.mxu0 0.0
    %320 = vmatpush.msra.mxu0 0.0
    %321 = vmatpush.msra.mxu0 0.0
    %322 = vmatpush.msra.mxu0 0.0
    %323 = vmatpush.msra.mxu0 0.0
    %324 = vmatpush.msra.mxu0 0.0
    %325 = vmatpush.msra.mxu0 %v280
    %326 = vmatpush.msra.mxu0 %v279
    %327 = vmatpush.msra.mxu0 %v278
    %328 = vmatpush.msra.mxu0 %v277
    %329 = vmatmul.f32.gmra.mxu0 %v305
    %v330 = vpop.f32.mrf.mxu0
    %v331 = vadd.f32 %v284, %v330
    %332 = vmatmul.f32.gmra.mxu0 %v307
    %v333 = vpop.f32.mrf.mxu0
    %v334 = vadd.f32 %v284, %v333
    %335 = vmatmul.f32.gmra.mxu0 %v309
    %v336 = vpop.f32.mrf.mxu0
    %v337 = vadd.f32 %v284, %v336
    %338 = vmatmul.f32.gmra.mxu0 %v311
    %v339 = vpop.f32.mrf.mxu0
    %v340 = vadd.f32 %v284, %v339
    %341 = vdwg.mxu0
    %v346 = vrot.slane %v331, 4
    %v347 = vrot.slane %v334, 4
    %v348 = vrot.slane %v337, 4
    %v349 = vrot.slane %v340, 4
    %354 = vst.msk [vmem:[#allocation4] sm:$0xf] %vm181, %v331
    %355 = vst.msk [vmem:[#allocation4 + $0x4] sm:$0xf] %vm181, %v346
    %356 = vst.msk [vmem:[#allocation4 + $0x8] sm:$0xf] %vm181, %v334
    %357 = vst.msk [vmem:[#allocation4 + $0xc] sm:$0xf] %vm181, %v347
    %358 = vst.msk [vmem:[#allocation4 + $0x10] sm:$0xf] %vm181, %v337
    %359 = vst.msk [vmem:[#allocation4 + $0x14] sm:$0xf] %vm181, %v348
    %360 = vst.msk [vmem:[#allocation4 + $0x18] sm:$0xf] %vm181, %v340
    %361 = vst.msk [vmem:[#allocation4 + $0x1c] sm:$0xf] %vm181, %v349
    %s362 = scalar_lea.vmem [#allocation13], 96
    %v363 = vld [vmem:[%s362] sm:$0xff]
    %v364 = vld [vmem:[%s362 + $0x8] sm:$0xff]
    %v365 = vld [vmem:[%s362 + $0x10] sm:$0xff]
    %v366 = vld [vmem:[%s362 + $0x18] sm:$0xff]
    %s367 = scalar_lea.vmem %s6, 3
    %v368 = vld [vmem:[%s367] sm:$0x1]
    %v370 = vperm.slane %v368, 0
    %372 = vst [vmem:[#allocation1] ss:$2 sm:$0xff] %v88
    %s373 = scalar_lea.vmem [#allocation1], 1
    %374 = vst [vmem:[%s373] ss:$2 sm:$0xff] %v89
    %s375 = scalar_lea.vmem [#allocation1], 16
    %376 = vst [vmem:[%s375] ss:$2 sm:$0xff] %v90
    %s377 = scalar_lea.vmem [#allocation1], 17
    %378 = vst [vmem:[%s377] ss:$2 sm:$0xff] %v91
    %s379 = scalar_lea.vmem [#allocation1], 32
    %380 = vst [vmem:[%s379] ss:$2 sm:$0xff] %v92
    %s381 = scalar_lea.vmem [#allocation1], 33
    %382 = vst [vmem:[%s381] ss:$2 sm:$0xff] %v93
    %s383 = scalar_lea.vmem [#allocation1], 48
    %384 = vst [vmem:[%s383] ss:$2 sm:$0xff] %v94
    %s385 = scalar_lea.vmem [#allocation1], 49
    %386 = vst [vmem:[%s385] ss:$2 sm:$0xff] %v95
    %v387 = vld.sshfl [vmem:[#allocation1] sm:$0xff pattern:$0x75316420]
    %v388 = vld.sshfl [vmem:[#allocation1 + $0x10] sm:$0xff pattern:$0x75316420]
    %v389 = vld.sshfl [vmem:[#allocation1 + $0x20] sm:$0xff pattern:$0x75316420]
    %v390 = vld.sshfl [vmem:[#allocation1 + $0x30] sm:$0xff pattern:$0x75316420]
    %v391 = vsel %vm131, %v387, 0
    %v393 = vsel %vm131, %v388, 0
    %v395 = vsel %vm131, %v389, 0
    %v397 = vsel %vm131, %v390, 0
    %399 = vmatpush.msra.mxu0 0.0
    %400 = vmatpush.msra.mxu0 0.0
    %401 = vmatpush.msra.mxu0 0.0
    %402 = vmatpush.msra.mxu0 0.0
    %403 = vmatpush.msra.mxu0 0.0
    %404 = vmatpush.msra.mxu0 0.0
    %405 = vmatpush.msra.mxu0 0.0
    %406 = vmatpush.msra.mxu0 0.0
    %407 = vmatpush.msra.mxu0 0.0
    %408 = vmatpush.msra.mxu0 0.0
    %409 = vmatpush.msra.mxu0 0.0
    %410 = vmatpush.msra.mxu0 0.0
    %411 = vmatpush.msra.mxu0 %v366
    %412 = vmatpush.msra.mxu0 %v365
    %413 = vmatpush.msra.mxu0 %v364
    %414 = vmatpush.msra.mxu0 %v363
    %415 = vmatmul.f32.gmra.mxu0 %v391
    %v416 = vpop.f32.mrf.mxu0
    %v417 = vadd.f32 %v370, %v416
    %418 = vmatmul.f32.gmra.mxu0 %v393
    %v419 = vpop.f32.mrf.mxu0
    %v420 = vadd.f32 %v370, %v419
    %421 = vmatmul.f32.gmra.mxu0 %v395
    %v422 = vpop.f32.mrf.mxu0
    %v423 = vadd.f32 %v370, %v422
    %424 = vmatmul.f32.gmra.mxu0 %v397
    %v425 = vpop.f32.mrf.mxu0
    %v426 = vadd.f32 %v370, %v425
    %427 = vdwg.mxu0
    %v432 = vrot.slane %v417, 4
    %v433 = vrot.slane %v420, 4
    %v434 = vrot.slane %v423, 4
    %v435 = vrot.slane %v426, 4
    %440 = vst.msk [vmem:[#allocation5] sm:$0xf] %vm181, %v417
    %441 = vst.msk [vmem:[#allocation5 + $0x4] sm:$0xf] %vm181, %v432
    %442 = vst.msk [vmem:[#allocation5 + $0x8] sm:$0xf] %vm181, %v420
    %443 = vst.msk [vmem:[#allocation5 + $0xc] sm:$0xf] %vm181, %v433
    %444 = vst.msk [vmem:[#allocation5 + $0x10] sm:$0xf] %vm181, %v423
    %445 = vst.msk [vmem:[#allocation5 + $0x14] sm:$0xf] %vm181, %v434
    %446 = vst.msk [vmem:[#allocation5 + $0x18] sm:$0xf] %vm181, %v426
    %447 = vst.msk [vmem:[#allocation5 + $0x1c] sm:$0xf] %vm181, %v435
    %v448 = vld [vmem:[%s2] sm:$0xf]
    %449 = vst.msk [vmem:[#allocation6] sm:$0xf] %vm181, %v448
    %v450 = vld [vmem:[#allocation11] sm:$0xf]
    %451 = vst.msk [vmem:[#allocation7] sm:$0xf] %vm181, %v450
    %v452 = vld [vmem:[%s1] sm:$0xf]
    %v453 = vld [vmem:[#allocation14] sm:$0xff]
    %v454 = vld [vmem:[#allocation14 + $0x8] sm:$0xff]
    %v455 = vld [vmem:[#allocation14 + $0x10] sm:$0xff]
    %v456 = vld [vmem:[#allocation14 + $0x18] sm:$0xff]
    %s457 = scalar_lea.vmem [#allocation14], 32
    %v458 = vld [vmem:[%s457] sm:$0xff]
    %v459 = vld [vmem:[%s457 + $0x8] sm:$0xff]
    %v460 = vld [vmem:[%s457 + $0x10] sm:$0xff]
    %v461 = vld [vmem:[%s457 + $0x18] sm:$0xff]
    %s462 = scalar_lea.vmem [#allocation14], 64
    %v463 = vld [vmem:[%s462] sm:$0xff]
    %v464 = vld [vmem:[%s462 + $0x8] sm:$0xff]
    %v465 = vld [vmem:[%s462 + $0x10] sm:$0xff]
    %v466 = vld [vmem:[%s462 + $0x18] sm:$0xff]
    %s467 = scalar_lea.vmem [#allocation14], 96
    %v468 = vld [vmem:[%s467] sm:$0xff]
    %v469 = vld [vmem:[%s467 + $0x8] sm:$0xff]
    %v470 = vld [vmem:[%s467 + $0x10] sm:$0xff]
    %v471 = vld [vmem:[%s467 + $0x18] sm:$0xff]
    %v472 = vld [vmem:[#allocation6] sm:$0xf]
    %v473 = vld [vmem:[#allocation7] sm:$0xf]
    %v474 = vld [vmem:[#allocation2] sm:$0xf]
    %v476 = vsel %vm131, %v472, 0
    %478 = vmatpush.msra.mxu0 0.0
    %479 = vmatpush.msra.mxu0 0.0
    %480 = vmatpush.msra.mxu0 0.0
    %481 = vmatpush.msra.mxu0 0.0
    %482 = vmatpush.msra.mxu0 0.0
    %483 = vmatpush.msra.mxu0 0.0
    %484 = vmatpush.msra.mxu0 0.0
    %485 = vmatpush.msra.mxu0 0.0
    %486 = vmatpush.msra.mxu0 0.0
    %487 = vmatpush.msra.mxu0 0.0
    %488 = vmatpush.msra.mxu0 0.0
    %489 = vmatpush.msra.mxu0 0.0
    %490 = vmatpush.msra.mxu0 %v456
    %491 = vmatpush.msra.mxu0 %v455
    %492 = vmatpush.msra.mxu0 %v454
    %493 = vmatpush.msra.mxu0 %v453
    %494 = vmatmul.f32.gmra.mxu0 %v476
    %v495 = vpop.f32.mrf.mxu0
    %v496 = vadd.f32 0.0, %v495
    %497 = vdwg.mxu0
    %v498 = vadd.f32 %v474, %v496
    %v499 = vxor.u32 %v498, 2147483648
    %v500 = vmul.f32 %v499, 1.442695
    %v501 = vpow.pop %v500
    %v502 = vadd.f32 %v501, 1.0
    %v503 = vrcp.pop %v502
    %v504 = vmul.f32 %v502, %v503
    %v505 = vsub.f32 1.0, %v504
    %v506 = vmul.f32 %v503, %v505
    %v507 = vadd.f32 %v503, %v506
    %vm508 = vweird.f32 %v502
    %vm509 = vweird.f32 %v503
    %vm510 = vmor %vm508, %vm509
    %v511 = vsel %vm510, %v503, %v507
    %v512 = vand.u32 2147483647, %v502
    %vm513 = vcmp.eq.f32.partialorder %v512, 8.507059e+37
    %v514 = vand.u32 %v502, 2147483648
    %v515 = vor.u32 1.1754944e-38, %v514
    %v516 = vsel %vm513, %v515, %v511
    %v517 = vmul.f32 1.0, %v516
    %v518 = vld [vmem:[#allocation3] sm:$0xf]
    %519 = vmatpush.msra.mxu0 0.0
    %520 = vmatpush.msra.mxu0 0.0
    %521 = vmatpush.msra.mxu0 0.0
    %522 = vmatpush.msra.mxu0 0.0
    %523 = vmatpush.msra.mxu0 0.0
    %524 = vmatpush.msra.mxu0 0.0
    %525 = vmatpush.msra.mxu0 0.0
    %526 = vmatpush.msra.mxu0 0.0
    %527 = vmatpush.msra.mxu0 0.0
    %528 = vmatpush.msra.mxu0 0.0
    %529 = vmatpush.msra.mxu0 0.0
    %530 = vmatpush.msra.mxu0 0.0
    %531 = vmatpush.msra.mxu0 %v461
    %532 = vmatpush.msra.mxu0 %v460
    %533 = vmatpush.msra.mxu0 %v459
    %534 = vmatpush.msra.mxu0 %v458
    %535 = vmatmul.f32.gmra.mxu0 %v476
    %v536 = vpop.f32.mrf.mxu0
    %v537 = vadd.f32 0.0, %v536
    %538 = vdwg.mxu0
    %v539 = vadd.f32 %v518, %v537
    %v540 = vxor.u32 %v539, 2147483648
    %v541 = vmul.f32 %v540, 1.442695
    %v542 = vpow.pop %v541
    %v543 = vadd.f32 %v542, 1.0
    %v544 = vrcp.pop %v543
    %v545 = vmul.f32 %v543, %v544
    %v546 = vsub.f32 1.0, %v545
    %v547 = vmul.f32 %v544, %v546
    %v548 = vadd.f32 %v544, %v547
    %vm549 = vweird.f32 %v543
    %vm550 = vweird.f32 %v544
    %vm551 = vmor %vm549, %vm550
    %v552 = vsel %vm551, %v544, %v548
    %v553 = vand.u32 2147483647, %v543
    %vm554 = vcmp.eq.f32.partialorder %v553, 8.507059e+37
    %v555 = vand.u32 %v543, 2147483648
    %v556 = vor.u32 1.1754944e-38, %v555
    %v557 = vsel %vm554, %v556, %v552
    %v558 = vmul.f32 1.0, %v557
    %v559 = vld [vmem:[#allocation4] sm:$0xf]
    %560 = vmatpush.msra.mxu0 0.0
    %561 = vmatpush.msra.mxu0 0.0
    %562 = vmatpush.msra.mxu0 0.0
    %563 = vmatpush.msra.mxu0 0.0
    %564 = vmatpush.msra.mxu0 0.0
    %565 = vmatpush.msra.mxu0 0.0
    %566 = vmatpush.msra.mxu0 0.0
    %567 = vmatpush.msra.mxu0 0.0
    %568 = vmatpush.msra.mxu0 0.0
    %569 = vmatpush.msra.mxu0 0.0
    %570 = vmatpush.msra.mxu0 0.0
    %571 = vmatpush.msra.mxu0 0.0
    %572 = vmatpush.msra.mxu0 %v466
    %573 = vmatpush.msra.mxu0 %v465
    %574 = vmatpush.msra.mxu0 %v464
    %575 = vmatpush.msra.mxu0 %v463
    %576 = vmatmul.f32.gmra.mxu0 %v476
    %v577 = vpop.f32.mrf.mxu0
    %v578 = vadd.f32 0.0, %v577
    %579 = vdwg.mxu0
    %v580 = vadd.f32 %v559, %v578
    %v581 = vtanh.pop %v580
    %v582 = vld [vmem:[#allocation5] sm:$0xf]
    %583 = vmatpush.msra.mxu0 0.0
    %584 = vmatpush.msra.mxu0 0.0
    %585 = vmatpush.msra.mxu0 0.0
    %586 = vmatpush.msra.mxu0 0.0
    %587 = vmatpush.msra.mxu0 0.0
    %588 = vmatpush.msra.mxu0 0.0
    %589 = vmatpush.msra.mxu0 0.0
    %590 = vmatpush.msra.mxu0 0.0
    %591 = vmatpush.msra.mxu0 0.0
    %592 = vmatpush.msra.mxu0 0.0
    %593 = vmatpush.msra.mxu0 0.0
    %594 = vmatpush.msra.mxu0 0.0
    %595 = vmatpush.msra.mxu0 %v471
    %596 = vmatpush.msra.mxu0 %v470
    %597 = vmatpush.msra.mxu0 %v469
    %598 = vmatpush.msra.mxu0 %v468
    %599 = vmatmul.f32.gmra.mxu0 %v476
    %v600 = vpop.f32.mrf.mxu0
    %v601 = vadd.f32 0.0, %v600
    %602 = vdwg.mxu0
    %v603 = vadd.f32 %v582, %v601
    %v604 = vxor.u32 %v603, 2147483648
    %v605 = vmul.f32 %v604, 1.442695
    %v606 = vpow.pop %v605
    %v607 = vadd.f32 %v606, 1.0
    %v608 = vrcp.pop %v607
    %v609 = vmul.f32 %v607, %v608
    %v610 = vsub.f32 1.0, %v609
    %v611 = vmul.f32 %v608, %v610
    %v612 = vadd.f32 %v608, %v611
    %vm613 = vweird.f32 %v607
    %vm614 = vweird.f32 %v608
    %vm615 = vmor %vm613, %vm614
    %v616 = vsel %vm615, %v608, %v612
    %v617 = vand.u32 2147483647, %v607
    %vm618 = vcmp.eq.f32.partialorder %v617, 8.507059e+37
    %v619 = vand.u32 %v607, 2147483648
    %v620 = vor.u32 1.1754944e-38, %v619
    %v621 = vsel %vm618, %v620, %v616
    %v622 = vmul.f32 1.0, %v621
    %v623 = vmul.f32 %v558, %v473
    %v624 = vmul.f32 %v517, %v581
    %v625 = vadd.f32 %v623, %v624
    %v626 = vtanh.pop %v625
    %v627 = vmul.f32 %v622, %v626
    %vm628 = vcmp.gt.s32.totalorder %v452, 0
    %v629 = vsel %vm628, 1, 0
    %630 = vset.pattern.permute.xlu0 0
    %631 = vperm.xlu0 %630, %v629
    %v632 = vpop.permute.xlu0 %631
    %vm633 = vcmp.eq.s32.totalorder %v632, 1
    %v634 = vsel %vm633, %v627, %v472
    %635 = vst.msk [vmem:[#allocation6] sm:$0xf] %vm181, %v634
    %v636 = vsel %vm633, %v625, %v473
    %637 = vst.msk [vmem:[#allocation7] sm:$0xf] %vm181, %v636
    %v638 = vsel %vm633, %v627, 0.0
    %639 = vst.msk [vmem:[#allocation16] sm:$0xf] %vm181, %v638
    %v640 = vld [vmem:[#allocation6] sm:$0xf]
    %v641 = vld [vmem:[#allocation7] sm:$0xf]
    %s642 = scalar_lea.vmem [#allocation2], 4
    %v643 = vld [vmem:[%s642] sm:$0xf]
    %v645 = vsel %vm131, %v640, 0
    %647 = vmatpush.msra.mxu0 0.0
    %648 = vmatpush.msra.mxu0 0.0
    %649 = vmatpush.msra.mxu0 0.0
    %650 = vmatpush.msra.mxu0 0.0
    %651 = vmatpush.msra.mxu0 0.0
    %652 = vmatpush.msra.mxu0 0.0
    %653 = vmatpush.msra.mxu0 0.0
    %654 = vmatpush.msra.mxu0 0.0
    %655 = vmatpush.msra.mxu0 0.0
    %656 = vmatpush.msra.mxu0 0.0
    %657 = vmatpush.msra.mxu0 0.0
    %658 = vmatpush.msra.mxu0 0.0
    %659 = vmatpush.msra.mxu0 %v456
    %660 = vmatpush.msra.mxu0 %v455
    %661 = vmatpush.msra.mxu0 %v454
    %662 = vmatpush.msra.mxu0 %v453
    %663 = vmatmul.f32.gmra.mxu0 %v645
    %v664 = vpop.f32.mrf.mxu0
    %v665 = vadd.f32 0.0, %v664
    %666 = vdwg.mxu0
    %v667 = vadd.f32 %v643, %v665
    %v668 = vxor.u32 %v667, 2147483648
    %v669 = vmul.f32 %v668, 1.442695
    %v670 = vpow.pop %v669
    %v671 = vadd.f32 %v670, 1.0
    %v672 = vrcp.pop %v671
    %v673 = vmul.f32 %v671, %v672
    %v674 = vsub.f32 1.0, %v673
    %v675 = vmul.f32 %v672, %v674
    %v676 = vadd.f32 %v672, %v675
    %vm677 = vweird.f32 %v671
    %vm678 = vweird.f32 %v672
    %vm679 = vmor %vm677, %vm678
    %v680 = vsel %vm679, %v672, %v676
    %v681 = vand.u32 2147483647, %v671
    %vm682 = vcmp.eq.f32.partialorder %v681, 8.507059e+37
    %v683 = vand.u32 %v671, 2147483648
    %v684 = vor.u32 1.1754944e-38, %v683
    %v685 = vsel %vm682, %v684, %v680
    %v686 = vmul.f32 1.0, %v685
    %s687 = scalar_lea.vmem [#allocation3], 4
    %v688 = vld [vmem:[%s687] sm:$0xf]
    %689 = vmatpush.msra.mxu0 0.0
    %690 = vmatpush.msra.mxu0 0.0
    %691 = vmatpush.msra.mxu0 0.0
    %692 = vmatpush.msra.mxu0 0.0
    %693 = vmatpush.msra.mxu0 0.0
    %694 = vmatpush.msra.mxu0 0.0
    %695 = vmatpush.msra.mxu0 0.0
    %696 = vmatpush.msra.mxu0 0.0
    %697 = vmatpush.msra.mxu0 0.0
    %698 = vmatpush.msra.mxu0 0.0
    %699 = vmatpush.msra.mxu0 0.0
    %700 = vmatpush.msra.mxu0 0.0
    %701 = vmatpush.msra.mxu0 %v461
    %702 = vmatpush.msra.mxu0 %v460
    %703 = vmatpush.msra.mxu0 %v459
    %704 = vmatpush.msra.mxu0 %v458
    %705 = vmatmul.f32.gmra.mxu0 %v645
    %v706 = vpop.f32.mrf.mxu0
    %v707 = vadd.f32 0.0, %v706
    %708 = vdwg.mxu0
    %v709 = vadd.f32 %v688, %v707
    %v710 = vxor.u32 %v709, 2147483648
    %v711 = vmul.f32 %v710, 1.442695
    %v712 = vpow.pop %v711
    %v713 = vadd.f32 %v712, 1.0
    %v714 = vrcp.pop %v713
    %v715 = vmul.f32 %v713, %v714
    %v716 = vsub.f32 1.0, %v715
    %v717 = vmul.f32 %v714, %v716
    %v718 = vadd.f32 %v714, %v717
    %vm719 = vweird.f32 %v713
    %vm720 = vweird.f32 %v714
    %vm721 = vmor %vm719, %vm720
    %v722 = vsel %vm721, %v714, %v718
    %v723 = vand.u32 2147483647, %v713
    %vm724 = vcmp.eq.f32.partialorder %v723, 8.507059e+37
    %v725 = vand.u32 %v713, 2147483648
    %v726 = vor.u32 1.1754944e-38, %v725
    %v727 = vsel %vm724, %v726, %v722
    %v728 = vmul.f32 1.0, %v727
    %s729 = scalar_lea.vmem [#allocation4], 4
    %v730 = vld [vmem:[%s729] sm:$0xf]
    %731 = vmatpush.msra.mxu0 0.0
    %732 = vmatpush.msra.mxu0 0.0
    %733 = vmatpush.msra.mxu0 0.0
    %734 = vmatpush.msra.mxu0 0.0
    %735 = vmatpush.msra.mxu0 0.0
    %736 = vmatpush.msra.mxu0 0.0
    %737 = vmatpush.msra.mxu0 0.0
    %738 = vmatpush.msra.mxu0 0.0
    %739 = vmatpush.msra.mxu0 0.0
    %740 = vmatpush.msra.mxu0 0.0
    %741 = vmatpush.msra.mxu0 0.0
    %742 = vmatpush.msra.mxu0 0.0
    %743 = vmatpush.msra.mxu0 %v466
    %744 = vmatpush.msra.mxu0 %v465
    %745 = vmatpush.msra.mxu0 %v464
    %746 = vmatpush.msra.mxu0 %v463
    %747 = vmatmul.f32.gmra.mxu0 %v645
    %v748 = vpop.f32.mrf.mxu0
    %v749 = vadd.f32 0.0, %v748
    %750 = vdwg.mxu0
    %v751 = vadd.f32 %v730, %v749
    %v752 = vtanh.pop %v751
    %s753 = scalar_lea.vmem [#allocation5], 4
    %v754 = vld [vmem:[%s753] sm:$0xf]
    %755 = vmatpush.msra.mxu0 0.0
    %756 = vmatpush.msra.mxu0 0.0
    %757 = vmatpush.msra.mxu0 0.0
    %758 = vmatpush.msra.mxu0 0.0
    %759 = vmatpush.msra.mxu0 0.0
    %760 = vmatpush.msra.mxu0 0.0
    %761 = vmatpush.msra.mxu0 0.0
    %762 = vmatpush.msra.mxu0 0.0
    %763 = vmatpush.msra.mxu0 0.0
    %764 = vmatpush.msra.mxu0 0.0
    %765 = vmatpush.msra.mxu0 0.0
    %766 = vmatpush.msra.mxu0 0.0
    %767 = vmatpush.msra.mxu0 %v471
    %768 = vmatpush.msra.mxu0 %v470
    %769 = vmatpush.msra.mxu0 %v469
    %770 = vmatpush.msra.mxu0 %v468
    %771 = vmatmul.f32.gmra.mxu0 %v645
    %v772 = vpop.f32.mrf.mxu0
    %v773 = vadd.f32 0.0, %v772
    %774 = vdwg.mxu0
    %v775 = vadd.f32 %v754, %v773
    %v776 = vxor.u32 %v775, 2147483648
    %v777 = vmul.f32 %v776, 1.442695
    %v778 = vpow.pop %v777
    %v779 = vadd.f32 %v778, 1.0
    %v780 = vrcp.pop %v779
    %v781 = vmul.f32 %v779, %v780
    %v782 = vsub.f32 1.0, %v781
    %v783 = vmul.f32 %v780, %v782
    %v784 = vadd.f32 %v780, %v783
    %vm785 = vweird.f32 %v779
    %vm786 = vweird.f32 %v780
    %vm787 = vmor %vm785, %vm786
    %v788 = vsel %vm787, %v780, %v784
    %v789 = vand.u32 2147483647, %v779
    %vm790 = vcmp.eq.f32.partialorder %v789, 8.507059e+37
    %v791 = vand.u32 %v779, 2147483648
    %v792 = vor.u32 1.1754944e-38, %v791
    %v793 = vsel %vm790, %v792, %v788
    %v794 = vmul.f32 1.0, %v793
    %v795 = vmul.f32 %v728, %v641
    %v796 = vmul.f32 %v686, %v752
    %v797 = vadd.f32 %v795, %v796
    %v798 = vtanh.pop %v797
    %v799 = vmul.f32 %v794, %v798
    %vm800 = vcmp.gt.s32.totalorder %v452, 1
    %v801 = vsel %vm800, 1, 0
    %802 = vset.pattern.permute.xlu0 0
    %803 = vperm.xlu0 %802, %v801
    %v804 = vpop.permute.xlu0 %803
    %vm805 = vcmp.eq.s32.totalorder %v804, 1
    %v806 = vsel %vm805, %v799, %v640
    %807 = vst.msk [vmem:[#allocation6] sm:$0xf] %vm181, %v806
    %v808 = vsel %vm805, %v797, %v641
    %809 = vst.msk [vmem:[#allocation7] sm:$0xf] %vm181, %v808
    %v810 = vsel %vm805, %v799, 0.0
    %s811 = scalar_lea.vmem [#allocation16], 4
    %812 = vst.msk [vmem:[%s811] sm:$0xf] %vm181, %v810
    %v813 = vld [vmem:[#allocation6] sm:$0xf]
    %v814 = vld [vmem:[#allocation7] sm:$0xf]
    %s815 = scalar_lea.vmem [#allocation2], 8
    %v816 = vld [vmem:[%s815] sm:$0xf]
    %v818 = vsel %vm131, %v813, 0
    %820 = vmatpush.msra.mxu0 0.0
    %821 = vmatpush.msra.mxu0 0.0
    %822 = vmatpush.msra.mxu0 0.0
    %823 = vmatpush.msra.mxu0 0.0
    %824 = vmatpush.msra.mxu0 0.0
    %825 = vmatpush.msra.mxu0 0.0
    %826 = vmatpush.msra.mxu0 0.0
    %827 = vmatpush.msra.mxu0 0.0
    %828 = vmatpush.msra.mxu0 0.0
    %829 = vmatpush.msra.mxu0 0.0
    %830 = vmatpush.msra.mxu0 0.0
    %831 = vmatpush.msra.mxu0 0.0
    %832 = vmatpush.msra.mxu0 %v456
    %833 = vmatpush.msra.mxu0 %v455
    %834 = vmatpush.msra.mxu0 %v454
    %835 = vmatpush.msra.mxu0 %v453
    %836 = vmatmul.f32.gmra.mxu0 %v818
    %v837 = vpop.f32.mrf.mxu0
    %v838 = vadd.f32 0.0, %v837
    %839 = vdwg.mxu0
    %v840 = vadd.f32 %v816, %v838
    %v841 = vxor.u32 %v840, 2147483648
    %v842 = vmul.f32 %v841, 1.442695
    %v843 = vpow.pop %v842
    %v844 = vadd.f32 %v843, 1.0
    %v845 = vrcp.pop %v844
    %v846 = vmul.f32 %v844, %v845
    %v847 = vsub.f32 1.0, %v846
    %v848 = vmul.f32 %v845, %v847
    %v849 = vadd.f32 %v845, %v848
    %vm850 = vweird.f32 %v844
    %vm851 = vweird.f32 %v845
    %vm852 = vmor %vm850, %vm851
    %v853 = vsel %vm852, %v845, %v849
    %v854 = vand.u32 2147483647, %v844
    %vm855 = vcmp.eq.f32.partialorder %v854, 8.507059e+37
    %v856 = vand.u32 %v844, 2147483648
    %v857 = vor.u32 1.1754944e-38, %v856
    %v858 = vsel %vm855, %v857, %v853
    %v859 = vmul.f32 1.0, %v858
    %s860 = scalar_lea.vmem [#allocation3], 8
    %v861 = vld [vmem:[%s860] sm:$0xf]
    %862 = vmatpush.msra.mxu0 0.0
    %863 = vmatpush.msra.mxu0 0.0
    %864 = vmatpush.msra.mxu0 0.0
    %865 = vmatpush.msra.mxu0 0.0
    %866 = vmatpush.msra.mxu0 0.0
    %867 = vmatpush.msra.mxu0 0.0
    %868 = vmatpush.msra.mxu0 0.0
    %869 = vmatpush.msra.mxu0 0.0
    %870 = vmatpush.msra.mxu0 0.0
    %871 = vmatpush.msra.mxu0 0.0
    %872 = vmatpush.msra.mxu0 0.0
    %873 = vmatpush.msra.mxu0 0.0
    %874 = vmatpush.msra.mxu0 %v461
    %875 = vmatpush.msra.mxu0 %v460
    %876 = vmatpush.msra.mxu0 %v459
    %877 = vmatpush.msra.mxu0 %v458
    %878 = vmatmul.f32.gmra.mxu0 %v818
    %v879 = vpop.f32.mrf.mxu0
    %v880 = vadd.f32 0.0, %v879
    %881 = vdwg.mxu0
    %v882 = vadd.f32 %v861, %v880
    %v883 = vxor.u32 %v882, 2147483648
    %v884 = vmul.f32 %v883, 1.442695
    %v885 = vpow.pop %v884
    %v886 = vadd.f32 %v885, 1.0
    %v887 = vrcp.pop %v886
    %v888 = vmul.f32 %v886, %v887
    %v889 = vsub.f32 1.0, %v888
    %v890 = vmul.f32 %v887, %v889
    %v891 = vadd.f32 %v887, %v890
    %vm892 = vweird.f32 %v886
    %vm893 = vweird.f32 %v887
    %vm894 = vmor %vm892, %vm893
    %v895 = vsel %vm894, %v887, %v891
    %v896 = vand.u32 2147483647, %v886
    %vm897 = vcmp.eq.f32.partialorder %v896, 8.507059e+37
    %v898 = vand.u32 %v886, 2147483648
    %v899 = vor.u32 1.1754944e-38, %v898
    %v900 = vsel %vm897, %v899, %v895
    %v901 = vmul.f32 1.0, %v900
    %s902 = scalar_lea.vmem [#allocation4], 8
    %v903 = vld [vmem:[%s902] sm:$0xf]
    %904 = vmatpush.msra.mxu0 0.0
    %905 = vmatpush.msra.mxu0 0.0
    %906 = vmatpush.msra.mxu0 0.0
    %907 = vmatpush.msra.mxu0 0.0
    %908 = vmatpush.msra.mxu0 0.0
    %909 = vmatpush.msra.mxu0 0.0
    %910 = vmatpush.msra.mxu0 0.0
    %911 = vmatpush.msra.mxu0 0.0
    %912 = vmatpush.msra.mxu0 0.0
    %913 = vmatpush.msra.mxu0 0.0
    %914 = vmatpush.msra.mxu0 0.0
    %915 = vmatpush.msra.mxu0 0.0
    %916 = vmatpush.msra.mxu0 %v466
    %917 = vmatpush.msra.mxu0 %v465
    %918 = vmatpush.msra.mxu0 %v464
    %919 = vmatpush.msra.mxu0 %v463
    %920 = vmatmul.f32.gmra.mxu0 %v818
    %v921 = vpop.f32.mrf.mxu0
    %v922 = vadd.f32 0.0, %v921
    %923 = vdwg.mxu0
    %v924 = vadd.f32 %v903, %v922
    %v925 = vtanh.pop %v924
    %s926 = scalar_lea.vmem [#allocation5], 8
    %v927 = vld [vmem:[%s926] sm:$0xf]
    %928 = vmatpush.msra.mxu0 0.0
    %929 = vmatpush.msra.mxu0 0.0
    %930 = vmatpush.msra.mxu0 0.0
    %931 = vmatpush.msra.mxu0 0.0
    %932 = vmatpush.msra.mxu0 0.0
    %933 = vmatpush.msra.mxu0 0.0
    %934 = vmatpush.msra.mxu0 0.0
    %935 = vmatpush.msra.mxu0 0.0
    %936 = vmatpush.msra.mxu0 0.0
    %937 = vmatpush.msra.mxu0 0.0
    %938 = vmatpush.msra.mxu0 0.0
    %939 = vmatpush.msra.mxu0 0.0
    %940 = vmatpush.msra.mxu0 %v471
    %941 = vmatpush.msra.mxu0 %v470
    %942 = vmatpush.msra.mxu0 %v469
    %943 = vmatpush.msra.mxu0 %v468
    %944 = vmatmul.f32.gmra.mxu0 %v818
    %v945 = vpop.f32.mrf.mxu0
    %v946 = vadd.f32 0.0, %v945
    %947 = vdwg.mxu0
    %v948 = vadd.f32 %v927, %v946
    %v949 = vxor.u32 %v948, 2147483648
    %v950 = vmul.f32 %v949, 1.442695
    %v951 = vpow.pop %v950
    %v952 = vadd.f32 %v951, 1.0
    %v953 = vrcp.pop %v952
    %v954 = vmul.f32 %v952, %v953
    %v955 = vsub.f32 1.0, %v954
    %v956 = vmul.f32 %v953, %v955
    %v957 = vadd.f32 %v953, %v956
    %vm958 = vweird.f32 %v952
    %vm959 = vweird.f32 %v953
    %vm960 = vmor %vm958, %vm959
    %v961 = vsel %vm960, %v953, %v957
    %v962 = vand.u32 2147483647, %v952
    %vm963 = vcmp.eq.f32.partialorder %v962, 8.507059e+37
    %v964 = vand.u32 %v952, 2147483648
    %v965 = vor.u32 1.1754944e-38, %v964
    %v966 = vsel %vm963, %v965, %v961
    %v967 = vmul.f32 1.0, %v966
    %v968 = vmul.f32 %v901, %v814
    %v969 = vmul.f32 %v859, %v925
    %v970 = vadd.f32 %v968, %v969
    %v971 = vtanh.pop %v970
    %v972 = vmul.f32 %v967, %v971
    %vm973 = vcmp.gt.s32.totalorder %v452, 2
    %v974 = vsel %vm973, 1, 0
    %975 = vset.pattern.permute.xlu0 0
    %976 = vperm.xlu0 %975, %v974
    %v977 = vpop.permute.xlu0 %976
    %vm978 = vcmp.eq.s32.totalorder %v977, 1
    %v979 = vsel %vm978, %v972, %v813
    %980 = vst.msk [vmem:[#allocation6] sm:$0xf] %vm181, %v979
    %v981 = vsel %vm978, %v970, %v814
    %982 = vst.msk [vmem:[#allocation7] sm:$0xf] %vm181, %v981
    %v983 = vsel %vm978, %v972, 0.0
    %s984 = scalar_lea.vmem [#allocation16], 8
    %985 = vst.msk [vmem:[%s984] sm:$0xf] %vm181, %v983
    %v986 = vld [vmem:[#allocation6] sm:$0xf]
    %v987 = vld [vmem:[#allocation7] sm:$0xf]
    %s988 = scalar_lea.vmem [#allocation2], 12
    %v989 = vld [vmem:[%s988] sm:$0xf]
    %v991 = vsel %vm131, %v986, 0
    %993 = vmatpush.msra.mxu0 0.0
    %994 = vmatpush.msra.mxu0 0.0
    %995 = vmatpush.msra.mxu0 0.0
    %996 = vmatpush.msra.mxu0 0.0
    %997 = vmatpush.msra.mxu0 0.0
    %998 = vmatpush.msra.mxu0 0.0
    %999 = vmatpush.msra.mxu0 0.0
    %1000 = vmatpush.msra.mxu0 0.0
    %1001 = vmatpush.msra.mxu0 0.0
    %1002 = vmatpush.msra.mxu0 0.0
    %1003 = vmatpush.msra.mxu0 0.0
    %1004 = vmatpush.msra.mxu0 0.0
    %1005 = vmatpush.msra.mxu0 %v456
    %1006 = vmatpush.msra.mxu0 %v455
    %1007 = vmatpush.msra.mxu0 %v454
    %1008 = vmatpush.msra.mxu0 %v453
    %1009 = vmatmul.f32.gmra.mxu0 %v991
    %v1010 = vpop.f32.mrf.mxu0
    %v1011 = vadd.f32 0.0, %v1010
    %1012 = vdwg.mxu0
    %v1013 = vadd.f32 %v989, %v1011
    %v1014 = vxor.u32 %v1013, 2147483648
    %v1015 = vmul.f32 %v1014, 1.442695
    %v1016 = vpow.pop %v1015
    %v1017 = vadd.f32 %v1016, 1.0
    %v1018 = vrcp.pop %v1017
    %v1019 = vmul.f32 %v1017, %v1018
    %v1020 = vsub.f32 1.0, %v1019
    %v1021 = vmul.f32 %v1018, %v1020
    %v1022 = vadd.f32 %v1018, %v1021
    %vm1023 = vweird.f32 %v1017
    %vm1024 = vweird.f32 %v1018
    %vm1025 = vmor %vm1023, %vm1024
    %v1026 = vsel %vm1025, %v1018, %v1022
    %v1027 = vand.u32 2147483647, %v1017
    %vm1028 = vcmp.eq.f32.partialorder %v1027, 8.507059e+37
    %v1029 = vand.u32 %v1017, 2147483648
    %v1030 = vor.u32 1.1754944e-38, %v1029
    %v1031 = vsel %vm1028, %v1030, %v1026
    %v1032 = vmul.f32 1.0, %v1031
    %s1033 = scalar_lea.vmem [#allocation3], 12
    %v1034 = vld [vmem:[%s1033] sm:$0xf]
    %1035 = vmatpush.msra.mxu0 0.0
    %1036 = vmatpush.msra.mxu0 0.0
    %1037 = vmatpush.msra.mxu0 0.0
    %1038 = vmatpush.msra.mxu0 0.0
    %1039 = vmatpush.msra.mxu0 0.0
    %1040 = vmatpush.msra.mxu0 0.0
    %1041 = vmatpush.msra.mxu0 0.0
    %1042 = vmatpush.msra.mxu0 0.0
    %1043 = vmatpush.msra.mxu0 0.0
    %1044 = vmatpush.msra.mxu0 0.0
    %1045 = vmatpush.msra.mxu0 0.0
    %1046 = vmatpush.msra.mxu0 0.0
    %1047 = vmatpush.msra.mxu0 %v461
    %1048 = vmatpush.msra.mxu0 %v460
    %1049 = vmatpush.msra.mxu0 %v459
    %1050 = vmatpush.msra.mxu0 %v458
    %1051 = vmatmul.f32.gmra.mxu0 %v991
    %v1052 = vpop.f32.mrf.mxu0
    %v1053 = vadd.f32 0.0, %v1052
    %1054 = vdwg.mxu0
    %v1055 = vadd.f32 %v1034, %v1053
    %v1056 = vxor.u32 %v1055, 2147483648
    %v1057 = vmul.f32 %v1056, 1.442695
    %v1058 = vpow.pop %v1057
    %v1059 = vadd.f32 %v1058, 1.0
    %v1060 = vrcp.pop %v1059
    %v1061 = vmul.f32 %v1059, %v1060
    %v1062 = vsub.f32 1.0, %v1061
    %v1063 = vmul.f32 %v1060, %v1062
    %v1064 = vadd.f32 %v1060, %v1063
    %vm1065 = vweird.f32 %v1059
    %vm1066 = vweird.f32 %v1060
    %vm1067 = vmor %vm1065, %vm1066
    %v1068 = vsel %vm1067, %v1060, %v1064
    %v1069 = vand.u32 2147483647, %v1059
    %vm1070 = vcmp.eq.f32.partialorder %v1069, 8.507059e+37
    %v1071 = vand.u32 %v1059, 2147483648
    %v1072 = vor.u32 1.1754944e-38, %v1071
    %v1073 = vsel %vm1070, %v1072, %v1068
    %v1074 = vmul.f32 1.0, %v1073
    %s1075 = scalar_lea.vmem [#allocation4], 12
    %v1076 = vld [vmem:[%s1075] sm:$0xf]
    %1077 = vmatpush.msra.mxu0 0.0
    %1078 = vmatpush.msra.mxu0 0.0
    %1079 = vmatpush.msra.mxu0 0.0
    %1080 = vmatpush.msra.mxu0 0.0
    %1081 = vmatpush.msra.mxu0 0.0
    %1082 = vmatpush.msra.mxu0 0.0
    %1083 = vmatpush.msra.mxu0 0.0
    %1084 = vmatpush.msra.mxu0 0.0
    %1085 = vmatpush.msra.mxu0 0.0
    %1086 = vmatpush.msra.mxu0 0.0
    %1087 = vmatpush.msra.mxu0 0.0
    %1088 = vmatpush.msra.mxu0 0.0
    %1089 = vmatpush.msra.mxu0 %v466
    %1090 = vmatpush.msra.mxu0 %v465
    %1091 = vmatpush.msra.mxu0 %v464
    %1092 = vmatpush.msra.mxu0 %v463
    %1093 = vmatmul.f32.gmra.mxu0 %v991
    %v1094 = vpop.f32.mrf.mxu0
    %v1095 = vadd.f32 0.0, %v1094
    %1096 = vdwg.mxu0
    %v1097 = vadd.f32 %v1076, %v1095
    %v1098 = vtanh.pop %v1097
    %s1099 = scalar_lea.vmem [#allocation5], 12
    %v1100 = vld [vmem:[%s1099] sm:$0xf]
    %1101 = vmatpush.msra.mxu0 0.0
    %1102 = vmatpush.msra.mxu0 0.0
    %1103 = vmatpush.msra.mxu0 0.0
    %1104 = vmatpush.msra.mxu0 0.0
    %1105 = vmatpush.msra.mxu0 0.0
    %1106 = vmatpush.msra.mxu0 0.0
    %1107 = vmatpush.msra.mxu0 0.0
    %1108 = vmatpush.msra.mxu0 0.0
    %1109 = vmatpush.msra.mxu0 0.0
    %1110 = vmatpush.msra.mxu0 0.0
    %1111 = vmatpush.msra.mxu0 0.0
    %1112 = vmatpush.msra.mxu0 0.0
    %1113 = vmatpush.msra.mxu0 %v471
    %1114 = vmatpush.msra.mxu0 %v470
    %1115 = vmatpush.msra.mxu0 %v469
    %1116 = vmatpush.msra.mxu0 %v468
    %1117 = vmatmul.f32.gmra.mxu0 %v991
    %v1118 = vpop.f32.mrf.mxu0
    %v1119 = vadd.f32 0.0, %v1118
    %1120 = vdwg.mxu0
    %v1121 = vadd.f32 %v1100, %v1119
    %v1122 = vxor.u32 %v1121, 2147483648
    %v1123 = vmul.f32 %v1122, 1.442695
    %v1124 = vpow.pop %v1123
    %v1125 = vadd.f32 %v1124, 1.0
    %v1126 = vrcp.pop %v1125
    %v1127 = vmul.f32 %v1125, %v1126
    %v1128 = vsub.f32 1.0, %v1127
    %v1129 = vmul.f32 %v1126, %v1128
    %v1130 = vadd.f32 %v1126, %v1129
    %vm1131 = vweird.f32 %v1125
    %vm1132 = vweird.f32 %v1126
    %vm1133 = vmor %vm1131, %vm1132
    %v1134 = vsel %vm1133, %v1126, %v1130
    %v1135 = vand.u32 2147483647, %v1125
    %vm1136 = vcmp.eq.f32.partialorder %v1135, 8.507059e+37
    %v1137 = vand.u32 %v1125, 2147483648
    %v1138 = vor.u32 1.1754944e-38, %v1137
    %v1139 = vsel %vm1136, %v1138, %v1134
    %v1140 = vmul.f32 1.0, %v1139
    %v1141 = vmul.f32 %v1074, %v987
    %v1142 = vmul.f32 %v1032, %v1098
    %v1143 = vadd.f32 %v1141, %v1142
    %v1144 = vtanh.pop %v1143
    %v1145 = vmul.f32 %v1140, %v1144
    %vm1146 = vcmp.gt.s32.totalorder %v452, 3
    %v1147 = vsel %vm1146, 1, 0
    %1148 = vset.pattern.permute.xlu0 0
    %1149 = vperm.xlu0 %1148, %v1147
    %v1150 = vpop.permute.xlu0 %1149
    %vm1151 = vcmp.eq.s32.totalorder %v1150, 1
    %v1152 = vsel %vm1151, %v1145, %v986
    %1153 = vst.msk [vmem:[#allocation6] sm:$0xf] %vm181, %v1152
    %v1154 = vsel %vm1151, %v1143, %v987
    %1155 = vst.msk [vmem:[#allocation7] sm:$0xf] %vm181, %v1154
    %v1156 = vsel %vm1151, %v1145, 0.0
    %s1157 = scalar_lea.vmem [#allocation16], 12
    %1158 = vst.msk [vmem:[%s1157] sm:$0xf] %vm181, %v1156
    %v1159 = vld [vmem:[#allocation6] sm:$0xf]
    %v1160 = vld [vmem:[#allocation7] sm:$0xf]
    %s1161 = scalar_lea.vmem [#allocation2], 16
    %v1162 = vld [vmem:[%s1161] sm:$0xf]
    %v1164 = vsel %vm131, %v1159, 0
    %1166 = vmatpush.msra.mxu0 0.0
    %1167 = vmatpush.msra.mxu0 0.0
    %1168 = vmatpush.msra.mxu0 0.0
    %1169 = vmatpush.msra.mxu0 0.0
    %1170 = vmatpush.msra.mxu0 0.0
    %1171 = vmatpush.msra.mxu0 0.0
    %1172 = vmatpush.msra.mxu0 0.0
    %1173 = vmatpush.msra.mxu0 0.0
    %1174 = vmatpush.msra.mxu0 0.0
    %1175 = vmatpush.msra.mxu0 0.0
    %1176 = vmatpush.msra.mxu0 0.0
    %1177 = vmatpush.msra.mxu0 0.0
    %1178 = vmatpush.msra.mxu0 %v456
    %1179 = vmatpush.msra.mxu0 %v455
    %1180 = vmatpush.msra.mxu0 %v454
    %1181 = vmatpush.msra.mxu0 %v453
    %1182 = vmatmul.f32.gmra.mxu0 %v1164
    %v1183 = vpop.f32.mrf.mxu0
    %v1184 = vadd.f32 0.0, %v1183
    %1185 = vdwg.mxu0
    %v1186 = vadd.f32 %v1162, %v1184
    %v1187 = vxor.u32 %v1186, 2147483648
    %v1188 = vmul.f32 %v1187, 1.442695
    %v1189 = vpow.pop %v1188
    %v1190 = vadd.f32 %v1189, 1.0
    %v1191 = vrcp.pop %v1190
    %v1192 = vmul.f32 %v1190, %v1191
    %v1193 = vsub.f32 1.0, %v1192
    %v1194 = vmul.f32 %v1191, %v1193
    %v1195 = vadd.f32 %v1191, %v1194
    %vm1196 = vweird.f32 %v1190
    %vm1197 = vweird.f32 %v1191
    %vm1198 = vmor %vm1196, %vm1197
    %v1199 = vsel %vm1198, %v1191, %v1195
    %v1200 = vand.u32 2147483647, %v1190
    %vm1201 = vcmp.eq.f32.partialorder %v1200, 8.507059e+37
    %v1202 = vand.u32 %v1190, 2147483648
    %v1203 = vor.u32 1.1754944e-38, %v1202
    %v1204 = vsel %vm1201, %v1203, %v1199
    %v1205 = vmul.f32 1.0, %v1204
    %s1206 = scalar_lea.vmem [#allocation3], 16
    %v1207 = vld [vmem:[%s1206] sm:$0xf]
    %1208 = vmatpush.msra.mxu0 0.0
    %1209 = vmatpush.msra.mxu0 0.0
    %1210 = vmatpush.msra.mxu0 0.0
    %1211 = vmatpush.msra.mxu0 0.0
    %1212 = vmatpush.msra.mxu0 0.0
    %1213 = vmatpush.msra.mxu0 0.0
    %1214 = vmatpush.msra.mxu0 0.0
    %1215 = vmatpush.msra.mxu0 0.0
    %1216 = vmatpush.msra.mxu0 0.0
    %1217 = vmatpush.msra.mxu0 0.0
    %1218 = vmatpush.msra.mxu0 0.0
    %1219 = vmatpush.msra.mxu0 0.0
    %1220 = vmatpush.msra.mxu0 %v461
    %1221 = vmatpush.msra.mxu0 %v460
    %1222 = vmatpush.msra.mxu0 %v459
    %1223 = vmatpush.msra.mxu0 %v458
    %1224 = vmatmul.f32.gmra.mxu0 %v1164
    %v1225 = vpop.f32.mrf.mxu0
    %v1226 = vadd.f32 0.0, %v1225
    %1227 = vdwg.mxu0
    %v1228 = vadd.f32 %v1207, %v1226
    %v1229 = vxor.u32 %v1228, 2147483648
    %v1230 = vmul.f32 %v1229, 1.442695
    %v1231 = vpow.pop %v1230
    %v1232 = vadd.f32 %v1231, 1.0
    %v1233 = vrcp.pop %v1232
    %v1234 = vmul.f32 %v1232, %v1233
    %v1235 = vsub.f32 1.0, %v1234
    %v1236 = vmul.f32 %v1233, %v1235
    %v1237 = vadd.f32 %v1233, %v1236
    %vm1238 = vweird.f32 %v1232
    %vm1239 = vweird.f32 %v1233
    %vm1240 = vmor %vm1238, %vm1239
    %v1241 = vsel %vm1240, %v1233, %v1237
    %v1242 = vand.u32 2147483647, %v1232
    %vm1243 = vcmp.eq.f32.partialorder %v1242, 8.507059e+37
    %v1244 = vand.u32 %v1232, 2147483648
    %v1245 = vor.u32 1.1754944e-38, %v1244
    %v1246 = vsel %vm1243, %v1245, %v1241
    %v1247 = vmul.f32 1.0, %v1246
    %s1248 = scalar_lea.vmem [#allocation4], 16
    %v1249 = vld [vmem:[%s1248] sm:$0xf]
    %1250 = vmatpush.msra.mxu0 0.0
    %1251 = vmatpush.msra.mxu0 0.0
    %1252 = vmatpush.msra.mxu0 0.0
    %1253 = vmatpush.msra.mxu0 0.0
    %1254 = vmatpush.msra.mxu0 0.0
    %1255 = vmatpush.msra.mxu0 0.0
    %1256 = vmatpush.msra.mxu0 0.0
    %1257 = vmatpush.msra.mxu0 0.0
    %1258 = vmatpush.msra.mxu0 0.0
    %1259 = vmatpush.msra.mxu0 0.0
    %1260 = vmatpush.msra.mxu0 0.0
    %1261 = vmatpush.msra.mxu0 0.0
    %1262 = vmatpush.msra.mxu0 %v466
    %1263 = vmatpush.msra.mxu0 %v465
    %1264 = vmatpush.msra.mxu0 %v464
    %1265 = vmatpush.msra.mxu0 %v463
    %1266 = vmatmul.f32.gmra.mxu0 %v1164
    %v1267 = vpop.f32.mrf.mxu0
    %v1268 = vadd.f32 0.0, %v1267
    %1269 = vdwg.mxu0
    %v1270 = vadd.f32 %v1249, %v1268
    %v1271 = vtanh.pop %v1270
    %s1272 = scalar_lea.vmem [#allocation5], 16
    %v1273 = vld [vmem:[%s1272] sm:$0xf]
    %1274 = vmatpush.msra.mxu0 0.0
    %1275 = vmatpush.msra.mxu0 0.0
    %1276 = vmatpush.msra.mxu0 0.0
    %1277 = vmatpush.msra.mxu0 0.0
    %1278 = vmatpush.msra.mxu0 0.0
    %1279 = vmatpush.msra.mxu0 0.0
    %1280 = vmatpush.msra.mxu0 0.0
    %1281 = vmatpush.msra.mxu0 0.0
    %1282 = vmatpush.msra.mxu0 0.0
    %1283 = vmatpush.msra.mxu0 0.0
    %1284 = vmatpush.msra.mxu0 0.0
    %1285 = vmatpush.msra.mxu0 0.0
    %1286 = vmatpush.msra.mxu0 %v471
    %1287 = vmatpush.msra.mxu0 %v470
    %1288 = vmatpush.msra.mxu0 %v469
    %1289 = vmatpush.msra.mxu0 %v468
    %1290 = vmatmul.f32.gmra.mxu0 %v1164
    %v1291 = vpop.f32.mrf.mxu0
    %v1292 = vadd.f32 0.0, %v1291
    %1293 = vdwg.mxu0
    %v1294 = vadd.f32 %v1273, %v1292
    %v1295 = vxor.u32 %v1294, 2147483648
    %v1296 = vmul.f32 %v1295, 1.442695
    %v1297 = vpow.pop %v1296
    %v1298 = vadd.f32 %v1297, 1.0
    %v1299 = vrcp.pop %v1298
    %v1300 = vmul.f32 %v1298, %v1299
    %v1301 = vsub.f32 1.0, %v1300
    %v1302 = vmul.f32 %v1299, %v1301
    %v1303 = vadd.f32 %v1299, %v1302
    %vm1304 = vweird.f32 %v1298
    %vm1305 = vweird.f32 %v1299
    %vm1306 = vmor %vm1304, %vm1305
    %v1307 = vsel %vm1306, %v1299, %v1303
    %v1308 = vand.u32 2147483647, %v1298
    %vm1309 = vcmp.eq.f32.partialorder %v1308, 8.507059e+37
    %v1310 = vand.u32 %v1298, 2147483648
    %v1311 = vor.u32 1.1754944e-38, %v1310
    %v1312 = vsel %vm1309, %v1311, %v1307
    %v1313 = vmul.f32 1.0, %v1312
    %v1314 = vmul.f32 %v1247, %v1160
    %v1315 = vmul.f32 %v1205, %v1271
    %v1316 = vadd.f32 %v1314, %v1315
    %v1317 = vtanh.pop %v1316
    %v1318 = vmul.f32 %v1313, %v1317
    %vm1319 = vcmp.gt.s32.totalorder %v452, 4
    %v1320 = vsel %vm1319, 1, 0
    %1321 = vset.pattern.permute.xlu0 0
    %1322 = vperm.xlu0 %1321, %v1320
    %v1323 = vpop.permute.xlu0 %1322
    %vm1324 = vcmp.eq.s32.totalorder %v1323, 1
    %v1325 = vsel %vm1324, %v1318, %v1159
    %1326 = vst.msk [vmem:[#allocation6] sm:$0xf] %vm181, %v1325
    %v1327 = vsel %vm1324, %v1316, %v1160
    %1328 = vst.msk [vmem:[#allocation7] sm:$0xf] %vm181, %v1327
    %v1329 = vsel %vm1324, %v1318, 0.0
    %s1330 = scalar_lea.vmem [#allocation16], 16
    %1331 = vst.msk [vmem:[%s1330] sm:$0xf] %vm181, %v1329
    %v1332 = vld [vmem:[#allocation6] sm:$0xf]
    %v1333 = vld [vmem:[#allocation7] sm:$0xf]
    %s1334 = scalar_lea.vmem [#allocation2], 20
    %v1335 = vld [vmem:[%s1334] sm:$0xf]
    %v1337 = vsel %vm131, %v1332, 0
    %1339 = vmatpush.msra.mxu0 0.0
    %1340 = vmatpush.msra.mxu0 0.0
    %1341 = vmatpush.msra.mxu0 0.0
    %1342 = vmatpush.msra.mxu0 0.0
    %1343 = vmatpush.msra.mxu0 0.0
    %1344 = vmatpush.msra.mxu0 0.0
    %1345 = vmatpush.msra.mxu0 0.0
    %1346 = vmatpush.msra.mxu0 0.0
    %1347 = vmatpush.msra.mxu0 0.0
    %1348 = vmatpush.msra.mxu0 0.0
    %1349 = vmatpush.msra.mxu0 0.0
    %1350 = vmatpush.msra.mxu0 0.0
    %1351 = vmatpush.msra.mxu0 %v456
    %1352 = vmatpush.msra.mxu0 %v455
    %1353 = vmatpush.msra.mxu0 %v454
    %1354 = vmatpush.msra.mxu0 %v453
    %1355 = vmatmul.f32.gmra.mxu0 %v1337
    %v1356 = vpop.f32.mrf.mxu0
    %v1357 = vadd.f32 0.0, %v1356
    %1358 = vdwg.mxu0
    %v1359 = vadd.f32 %v1335, %v1357
    %v1360 = vxor.u32 %v1359, 2147483648
    %v1361 = vmul.f32 %v1360, 1.442695
    %v1362 = vpow.pop %v1361
    %v1363 = vadd.f32 %v1362, 1.0
    %v1364 = vrcp.pop %v1363
    %v1365 = vmul.f32 %v1363, %v1364
    %v1366 = vsub.f32 1.0, %v1365
    %v1367 = vmul.f32 %v1364, %v1366
    %v1368 = vadd.f32 %v1364, %v1367
    %vm1369 = vweird.f32 %v1363
    %vm1370 = vweird.f32 %v1364
    %vm1371 = vmor %vm1369, %vm1370
    %v1372 = vsel %vm1371, %v1364, %v1368
    %v1373 = vand.u32 2147483647, %v1363
    %vm1374 = vcmp.eq.f32.partialorder %v1373, 8.507059e+37
    %v1375 = vand.u32 %v1363, 2147483648
    %v1376 = vor.u32 1.1754944e-38, %v1375
    %v1377 = vsel %vm1374, %v1376, %v1372
    %v1378 = vmul.f32 1.0, %v1377
    %s1379 = scalar_lea.vmem [#allocation3], 20
    %v1380 = vld [vmem:[%s1379] sm:$0xf]
    %1381 = vmatpush.msra.mxu0 0.0
    %1382 = vmatpush.msra.mxu0 0.0
    %1383 = vmatpush.msra.mxu0 0.0
    %1384 = vmatpush.msra.mxu0 0.0
    %1385 = vmatpush.msra.mxu0 0.0
    %1386 = vmatpush.msra.mxu0 0.0
    %1387 = vmatpush.msra.mxu0 0.0
    %1388 = vmatpush.msra.mxu0 0.0
    %1389 = vmatpush.msra.mxu0 0.0
    %1390 = vmatpush.msra.mxu0 0.0
    %1391 = vmatpush.msra.mxu0 0.0
    %1392 = vmatpush.msra.mxu0 0.0
    %1393 = vmatpush.msra.mxu0 %v461
    %1394 = vmatpush.msra.mxu0 %v460
    %1395 = vmatpush.msra.mxu0 %v459
    %1396 = vmatpush.msra.mxu0 %v458
    %1397 = vmatmul.f32.gmra.mxu0 %v1337
    %v1398 = vpop.f32.mrf.mxu0
    %v1399 = vadd.f32 0.0, %v1398
    %1400 = vdwg.mxu0
    %v1401 = vadd.f32 %v1380, %v1399
    %v1402 = vxor.u32 %v1401, 2147483648
    %v1403 = vmul.f32 %v1402, 1.442695
    %v1404 = vpow.pop %v1403
    %v1405 = vadd.f32 %v1404, 1.0
    %v1406 = vrcp.pop %v1405
    %v1407 = vmul.f32 %v1405, %v1406
    %v1408 = vsub.f32 1.0, %v1407
    %v1409 = vmul.f32 %v1406, %v1408
    %v1410 = vadd.f32 %v1406, %v1409
    %vm1411 = vweird.f32 %v1405
    %vm1412 = vweird.f32 %v1406
    %vm1413 = vmor %vm1411, %vm1412
    %v1414 = vsel %vm1413, %v1406, %v1410
    %v1415 = vand.u32 2147483647, %v1405
    %vm1416 = vcmp.eq.f32.partialorder %v1415, 8.507059e+37
    %v1417 = vand.u32 %v1405, 2147483648
    %v1418 = vor.u32 1.1754944e-38, %v1417
    %v1419 = vsel %vm1416, %v1418, %v1414
    %v1420 = vmul.f32 1.0, %v1419
    %s1421 = scalar_lea.vmem [#allocation4], 20
    %v1422 = vld [vmem:[%s1421] sm:$0xf]
    %1423 = vmatpush.msra.mxu0 0.0
    %1424 = vmatpush.msra.mxu0 0.0
    %1425 = vmatpush.msra.mxu0 0.0
    %1426 = vmatpush.msra.mxu0 0.0
    %1427 = vmatpush.msra.mxu0 0.0
    %1428 = vmatpush.msra.mxu0 0.0
    %1429 = vmatpush.msra.mxu0 0.0
    %1430 = vmatpush.msra.mxu0 0.0
    %1431 = vmatpush.msra.mxu0 0.0
    %1432 = vmatpush.msra.mxu0 0.0
    %1433 = vmatpush.msra.mxu0 0.0
    %1434 = vmatpush.msra.mxu0 0.0
    %1435 = vmatpush.msra.mxu0 %v466
    %1436 = vmatpush.msra.mxu0 %v465
    %1437 = vmatpush.msra.mxu0 %v464
    %1438 = vmatpush.msra.mxu0 %v463
    %1439 = vmatmul.f32.gmra.mxu0 %v1337
    %v1440 = vpop.f32.mrf.mxu0
    %v1441 = vadd.f32 0.0, %v1440
    %1442 = vdwg.mxu0
    %v1443 = vadd.f32 %v1422, %v1441
    %v1444 = vtanh.pop %v1443
    %s1445 = scalar_lea.vmem [#allocation5], 20
    %v1446 = vld [vmem:[%s1445] sm:$0xf]
    %1447 = vmatpush.msra.mxu0 0.0
    %1448 = vmatpush.msra.mxu0 0.0
    %1449 = vmatpush.msra.mxu0 0.0
    %1450 = vmatpush.msra.mxu0 0.0
    %1451 = vmatpush.msra.mxu0 0.0
    %1452 = vmatpush.msra.mxu0 0.0
    %1453 = vmatpush.msra.mxu0 0.0
    %1454 = vmatpush.msra.mxu0 0.0
    %1455 = vmatpush.msra.mxu0 0.0
    %1456 = vmatpush.msra.mxu0 0.0
    %1457 = vmatpush.msra.mxu0 0.0
    %1458 = vmatpush.msra.mxu0 0.0
    %1459 = vmatpush.msra.mxu0 %v471
    %1460 = vmatpush.msra.mxu0 %v470
    %1461 = vmatpush.msra.mxu0 %v469
    %1462 = vmatpush.msra.mxu0 %v468
    %1463 = vmatmul.f32.gmra.mxu0 %v1337
    %v1464 = vpop.f32.mrf.mxu0
    %v1465 = vadd.f32 0.0, %v1464
    %1466 = vdwg.mxu0
    %v1467 = vadd.f32 %v1446, %v1465
    %v1468 = vxor.u32 %v1467, 2147483648
    %v1469 = vmul.f32 %v1468, 1.442695
    %v1470 = vpow.pop %v1469
    %v1471 = vadd.f32 %v1470, 1.0
    %v1472 = vrcp.pop %v1471
    %v1473 = vmul.f32 %v1471, %v1472
    %v1474 = vsub.f32 1.0, %v1473
    %v1475 = vmul.f32 %v1472, %v1474
    %v1476 = vadd.f32 %v1472, %v1475
    %vm1477 = vweird.f32 %v1471
    %vm1478 = vweird.f32 %v1472
    %vm1479 = vmor %vm1477, %vm1478
    %v1480 = vsel %vm1479, %v1472, %v1476
    %v1481 = vand.u32 2147483647, %v1471
    %vm1482 = vcmp.eq.f32.partialorder %v1481, 8.507059e+37
    %v1483 = vand.u32 %v1471, 2147483648
    %v1484 = vor.u32 1.1754944e-38, %v1483
    %v1485 = vsel %vm1482, %v1484, %v1480
    %v1486 = vmul.f32 1.0, %v1485
    %v1487 = vmul.f32 %v1420, %v1333
    %v1488 = vmul.f32 %v1378, %v1444
    %v1489 = vadd.f32 %v1487, %v1488
    %v1490 = vtanh.pop %v1489
    %v1491 = vmul.f32 %v1486, %v1490
    %vm1492 = vcmp.gt.s32.totalorder %v452, 5
    %v1493 = vsel %vm1492, 1, 0
    %1494 = vset.pattern.permute.xlu0 0
    %1495 = vperm.xlu0 %1494, %v1493
    %v1496 = vpop.permute.xlu0 %1495
    %vm1497 = vcmp.eq.s32.totalorder %v1496, 1
    %v1498 = vsel %vm1497, %v1491, %v1332
    %1499 = vst.msk [vmem:[#allocation6] sm:$0xf] %vm181, %v1498
    %v1500 = vsel %vm1497, %v1489, %v1333
    %1501 = vst.msk [vmem:[#allocation7] sm:$0xf] %vm181, %v1500
    %v1502 = vsel %vm1497, %v1491, 0.0
    %s1503 = scalar_lea.vmem [#allocation16], 20
    %1504 = vst.msk [vmem:[%s1503] sm:$0xf] %vm181, %v1502
    %v1505 = vld [vmem:[#allocation6] sm:$0xf]
    %v1506 = vld [vmem:[#allocation7] sm:$0xf]
    %s1507 = scalar_lea.vmem [#allocation2], 24
    %v1508 = vld [vmem:[%s1507] sm:$0xf]
    %v1510 = vsel %vm131, %v1505, 0
    %1512 = vmatpush.msra.mxu0 0.0
    %1513 = vmatpush.msra.mxu0 0.0
    %1514 = vmatpush.msra.mxu0 0.0
    %1515 = vmatpush.msra.mxu0 0.0
    %1516 = vmatpush.msra.mxu0 0.0
    %1517 = vmatpush.msra.mxu0 0.0
    %1518 = vmatpush.msra.mxu0 0.0
    %1519 = vmatpush.msra.mxu0 0.0
    %1520 = vmatpush.msra.mxu0 0.0
    %1521 = vmatpush.msra.mxu0 0.0
    %1522 = vmatpush.msra.mxu0 0.0
    %1523 = vmatpush.msra.mxu0 0.0
    %1524 = vmatpush.msra.mxu0 %v456
    %1525 = vmatpush.msra.mxu0 %v455
    %1526 = vmatpush.msra.mxu0 %v454
    %1527 = vmatpush.msra.mxu0 %v453
    %1528 = vmatmul.f32.gmra.mxu0 %v1510
    %v1529 = vpop.f32.mrf.mxu0
    %v1530 = vadd.f32 0.0, %v1529
    %1531 = vdwg.mxu0
    %v1532 = vadd.f32 %v1508, %v1530
    %v1533 = vxor.u32 %v1532, 2147483648
    %v1534 = vmul.f32 %v1533, 1.442695
    %v1535 = vpow.pop %v1534
    %v1536 = vadd.f32 %v1535, 1.0
    %v1537 = vrcp.pop %v1536
    %v1538 = vmul.f32 %v1536, %v1537
    %v1539 = vsub.f32 1.0, %v1538
    %v1540 = vmul.f32 %v1537, %v1539
    %v1541 = vadd.f32 %v1537, %v1540
    %vm1542 = vweird.f32 %v1536
    %vm1543 = vweird.f32 %v1537
    %vm1544 = vmor %vm1542, %vm1543
    %v1545 = vsel %vm1544, %v1537, %v1541
    %v1546 = vand.u32 2147483647, %v1536
    %vm1547 = vcmp.eq.f32.partialorder %v1546, 8.507059e+37
    %v1548 = vand.u32 %v1536, 2147483648
    %v1549 = vor.u32 1.1754944e-38, %v1548
    %v1550 = vsel %vm1547, %v1549, %v1545
    %v1551 = vmul.f32 1.0, %v1550
    %s1552 = scalar_lea.vmem [#allocation3], 24
    %v1553 = vld [vmem:[%s1552] sm:$0xf]
    %1554 = vmatpush.msra.mxu0 0.0
    %1555 = vmatpush.msra.mxu0 0.0
    %1556 = vmatpush.msra.mxu0 0.0
    %1557 = vmatpush.msra.mxu0 0.0
    %1558 = vmatpush.msra.mxu0 0.0
    %1559 = vmatpush.msra.mxu0 0.0
    %1560 = vmatpush.msra.mxu0 0.0
    %1561 = vmatpush.msra.mxu0 0.0
    %1562 = vmatpush.msra.mxu0 0.0
    %1563 = vmatpush.msra.mxu0 0.0
    %1564 = vmatpush.msra.mxu0 0.0
    %1565 = vmatpush.msra.mxu0 0.0
    %1566 = vmatpush.msra.mxu0 %v461
    %1567 = vmatpush.msra.mxu0 %v460
    %1568 = vmatpush.msra.mxu0 %v459
    %1569 = vmatpush.msra.mxu0 %v458
    %1570 = vmatmul.f32.gmra.mxu0 %v1510
    %v1571 = vpop.f32.mrf.mxu0
    %v1572 = vadd.f32 0.0, %v1571
    %1573 = vdwg.mxu0
    %v1574 = vadd.f32 %v1553, %v1572
    %v1575 = vxor.u32 %v1574, 2147483648
    %v1576 = vmul.f32 %v1575, 1.442695
    %v1577 = vpow.pop %v1576
    %v1578 = vadd.f32 %v1577, 1.0
    %v1579 = vrcp.pop %v1578
    %v1580 = vmul.f32 %v1578, %v1579
    %v1581 = vsub.f32 1.0, %v1580
    %v1582 = vmul.f32 %v1579, %v1581
    %v1583 = vadd.f32 %v1579, %v1582
    %vm1584 = vweird.f32 %v1578
    %vm1585 = vweird.f32 %v1579
    %vm1586 = vmor %vm1584, %vm1585
    %v1587 = vsel %vm1586, %v1579, %v1583
    %v1588 = vand.u32 2147483647, %v1578
    %vm1589 = vcmp.eq.f32.partialorder %v1588, 8.507059e+37
    %v1590 = vand.u32 %v1578, 2147483648
    %v1591 = vor.u32 1.1754944e-38, %v1590
    %v1592 = vsel %vm1589, %v1591, %v1587
    %v1593 = vmul.f32 1.0, %v1592
    %s1594 = scalar_lea.vmem [#allocation4], 24
    %v1595 = vld [vmem:[%s1594] sm:$0xf]
    %1596 = vmatpush.msra.mxu0 0.0
    %1597 = vmatpush.msra.mxu0 0.0
    %1598 = vmatpush.msra.mxu0 0.0
    %1599 = vmatpush.msra.mxu0 0.0
    %1600 = vmatpush.msra.mxu0 0.0
    %1601 = vmatpush.msra.mxu0 0.0
    %1602 = vmatpush.msra.mxu0 0.0
    %1603 = vmatpush.msra.mxu0 0.0
    %1604 = vmatpush.msra.mxu0 0.0
    %1605 = vmatpush.msra.mxu0 0.0
    %1606 = vmatpush.msra.mxu0 0.0
    %1607 = vmatpush.msra.mxu0 0.0
    %1608 = vmatpush.msra.mxu0 %v466
    %1609 = vmatpush.msra.mxu0 %v465
    %1610 = vmatpush.msra.mxu0 %v464
    %1611 = vmatpush.msra.mxu0 %v463
    %1612 = vmatmul.f32.gmra.mxu0 %v1510
    %v1613 = vpop.f32.mrf.mxu0
    %v1614 = vadd.f32 0.0, %v1613
    %1615 = vdwg.mxu0
    %v1616 = vadd.f32 %v1595, %v1614
    %v1617 = vtanh.pop %v1616
    %s1618 = scalar_lea.vmem [#allocation5], 24
    %v1619 = vld [vmem:[%s1618] sm:$0xf]
    %1620 = vmatpush.msra.mxu0 0.0
    %1621 = vmatpush.msra.mxu0 0.0
    %1622 = vmatpush.msra.mxu0 0.0
    %1623 = vmatpush.msra.mxu0 0.0
    %1624 = vmatpush.msra.mxu0 0.0
    %1625 = vmatpush.msra.mxu0 0.0
    %1626 = vmatpush.msra.mxu0 0.0
    %1627 = vmatpush.msra.mxu0 0.0
    %1628 = vmatpush.msra.mxu0 0.0
    %1629 = vmatpush.msra.mxu0 0.0
    %1630 = vmatpush.msra.mxu0 0.0
    %1631 = vmatpush.msra.mxu0 0.0
    %1632 = vmatpush.msra.mxu0 %v471
    %1633 = vmatpush.msra.mxu0 %v470
    %1634 = vmatpush.msra.mxu0 %v469
    %1635 = vmatpush.msra.mxu0 %v468
    %1636 = vmatmul.f32.gmra.mxu0 %v1510
    %v1637 = vpop.f32.mrf.mxu0
    %v1638 = vadd.f32 0.0, %v1637
    %1639 = vdwg.mxu0
    %v1640 = vadd.f32 %v1619, %v1638
    %v1641 = vxor.u32 %v1640, 2147483648
    %v1642 = vmul.f32 %v1641, 1.442695
    %v1643 = vpow.pop %v1642
    %v1644 = vadd.f32 %v1643, 1.0
    %v1645 = vrcp.pop %v1644
    %v1646 = vmul.f32 %v1644, %v1645
    %v1647 = vsub.f32 1.0, %v1646
    %v1648 = vmul.f32 %v1645, %v1647
    %v1649 = vadd.f32 %v1645, %v1648
    %vm1650 = vweird.f32 %v1644
    %vm1651 = vweird.f32 %v1645
    %vm1652 = vmor %vm1650, %vm1651
    %v1653 = vsel %vm1652, %v1645, %v1649
    %v1654 = vand.u32 2147483647, %v1644
    %vm1655 = vcmp.eq.f32.partialorder %v1654, 8.507059e+37
    %v1656 = vand.u32 %v1644, 2147483648
    %v1657 = vor.u32 1.1754944e-38, %v1656
    %v1658 = vsel %vm1655, %v1657, %v1653
    %v1659 = vmul.f32 1.0, %v1658
    %v1660 = vmul.f32 %v1593, %v1506
    %v1661 = vmul.f32 %v1551, %v1617
    %v1662 = vadd.f32 %v1660, %v1661
    %v1663 = vtanh.pop %v1662
    %v1664 = vmul.f32 %v1659, %v1663
    %vm1665 = vcmp.gt.s32.totalorder %v452, 6
    %v1666 = vsel %vm1665, 1, 0
    %1667 = vset.pattern.permute.xlu0 0
    %1668 = vperm.xlu0 %1667, %v1666
    %v1669 = vpop.permute.xlu0 %1668
    %vm1670 = vcmp.eq.s32.totalorder %v1669, 1
    %v1671 = vsel %vm1670, %v1664, %v1505
    %1672 = vst.msk [vmem:[#allocation6] sm:$0xf] %vm181, %v1671
    %v1673 = vsel %vm1670, %v1662, %v1506
    %1674 = vst.msk [vmem:[#allocation7] sm:$0xf] %vm181, %v1673
    %v1675 = vsel %vm1670, %v1664, 0.0
    %s1676 = scalar_lea.vmem [#allocation16], 24
    %1677 = vst.msk [vmem:[%s1676] sm:$0xf] %vm181, %v1675
    %v1678 = vld [vmem:[#allocation6] sm:$0xf]
    %v1679 = vld [vmem:[#allocation7] sm:$0xf]
    %s1680 = scalar_lea.vmem [#allocation2], 28
    %v1681 = vld [vmem:[%s1680] sm:$0xf]
    %v1683 = vsel %vm131, %v1678, 0
    %1685 = vmatpush.msra.mxu0 0.0
    %1686 = vmatpush.msra.mxu0 0.0
    %1687 = vmatpush.msra.mxu0 0.0
    %1688 = vmatpush.msra.mxu0 0.0
    %1689 = vmatpush.msra.mxu0 0.0
    %1690 = vmatpush.msra.mxu0 0.0
    %1691 = vmatpush.msra.mxu0 0.0
    %1692 = vmatpush.msra.mxu0 0.0
    %1693 = vmatpush.msra.mxu0 0.0
    %1694 = vmatpush.msra.mxu0 0.0
    %1695 = vmatpush.msra.mxu0 0.0
    %1696 = vmatpush.msra.mxu0 0.0
    %1697 = vmatpush.msra.mxu0 %v456
    %1698 = vmatpush.msra.mxu0 %v455
    %1699 = vmatpush.msra.mxu0 %v454
    %1700 = vmatpush.msra.mxu0 %v453
    %1701 = vmatmul.f32.gmra.mxu0 %v1683
    %v1702 = vpop.f32.mrf.mxu0
    %v1703 = vadd.f32 0.0, %v1702
    %1704 = vdwg.mxu0
    %v1705 = vadd.f32 %v1681, %v1703
    %v1706 = vxor.u32 %v1705, 2147483648
    %v1707 = vmul.f32 %v1706, 1.442695
    %v1708 = vpow.pop %v1707
    %v1709 = vadd.f32 %v1708, 1.0
    %v1710 = vrcp.pop %v1709
    %v1711 = vmul.f32 %v1709, %v1710
    %v1712 = vsub.f32 1.0, %v1711
    %v1713 = vmul.f32 %v1710, %v1712
    %v1714 = vadd.f32 %v1710, %v1713
    %vm1715 = vweird.f32 %v1709
    %vm1716 = vweird.f32 %v1710
    %vm1717 = vmor %vm1715, %vm1716
    %v1718 = vsel %vm1717, %v1710, %v1714
    %v1719 = vand.u32 2147483647, %v1709
    %vm1720 = vcmp.eq.f32.partialorder %v1719, 8.507059e+37
    %v1721 = vand.u32 %v1709, 2147483648
    %v1722 = vor.u32 1.1754944e-38, %v1721
    %v1723 = vsel %vm1720, %v1722, %v1718
    %v1724 = vmul.f32 1.0, %v1723
    %s1725 = scalar_lea.vmem [#allocation3], 28
    %v1726 = vld [vmem:[%s1725] sm:$0xf]
    %1727 = vmatpush.msra.mxu0 0.0
    %1728 = vmatpush.msra.mxu0 0.0
    %1729 = vmatpush.msra.mxu0 0.0
    %1730 = vmatpush.msra.mxu0 0.0
    %1731 = vmatpush.msra.mxu0 0.0
    %1732 = vmatpush.msra.mxu0 0.0
    %1733 = vmatpush.msra.mxu0 0.0
    %1734 = vmatpush.msra.mxu0 0.0
    %1735 = vmatpush.msra.mxu0 0.0
    %1736 = vmatpush.msra.mxu0 0.0
    %1737 = vmatpush.msra.mxu0 0.0
    %1738 = vmatpush.msra.mxu0 0.0
    %1739 = vmatpush.msra.mxu0 %v461
    %1740 = vmatpush.msra.mxu0 %v460
    %1741 = vmatpush.msra.mxu0 %v459
    %1742 = vmatpush.msra.mxu0 %v458
    %1743 = vmatmul.f32.gmra.mxu0 %v1683
    %v1744 = vpop.f32.mrf.mxu0
    %v1745 = vadd.f32 0.0, %v1744
    %1746 = vdwg.mxu0
    %v1747 = vadd.f32 %v1726, %v1745
    %v1748 = vxor.u32 %v1747, 2147483648
    %v1749 = vmul.f32 %v1748, 1.442695
    %v1750 = vpow.pop %v1749
    %v1751 = vadd.f32 %v1750, 1.0
    %v1752 = vrcp.pop %v1751
    %v1753 = vmul.f32 %v1751, %v1752
    %v1754 = vsub.f32 1.0, %v1753
    %v1755 = vmul.f32 %v1752, %v1754
    %v1756 = vadd.f32 %v1752, %v1755
    %vm1757 = vweird.f32 %v1751
    %vm1758 = vweird.f32 %v1752
    %vm1759 = vmor %vm1757, %vm1758
    %v1760 = vsel %vm1759, %v1752, %v1756
    %v1761 = vand.u32 2147483647, %v1751
    %vm1762 = vcmp.eq.f32.partialorder %v1761, 8.507059e+37
    %v1763 = vand.u32 %v1751, 2147483648
    %v1764 = vor.u32 1.1754944e-38, %v1763
    %v1765 = vsel %vm1762, %v1764, %v1760
    %v1766 = vmul.f32 1.0, %v1765
    %s1767 = scalar_lea.vmem [#allocation4], 28
    %v1768 = vld [vmem:[%s1767] sm:$0xf]
    %1769 = vmatpush.msra.mxu0 0.0
    %1770 = vmatpush.msra.mxu0 0.0
    %1771 = vmatpush.msra.mxu0 0.0
    %1772 = vmatpush.msra.mxu0 0.0
    %1773 = vmatpush.msra.mxu0 0.0
    %1774 = vmatpush.msra.mxu0 0.0
    %1775 = vmatpush.msra.mxu0 0.0
    %1776 = vmatpush.msra.mxu0 0.0
    %1777 = vmatpush.msra.mxu0 0.0
    %1778 = vmatpush.msra.mxu0 0.0
    %1779 = vmatpush.msra.mxu0 0.0
    %1780 = vmatpush.msra.mxu0 0.0
    %1781 = vmatpush.msra.mxu0 %v466
    %1782 = vmatpush.msra.mxu0 %v465
    %1783 = vmatpush.msra.mxu0 %v464
    %1784 = vmatpush.msra.mxu0 %v463
    %1785 = vmatmul.f32.gmra.mxu0 %v1683
    %v1786 = vpop.f32.mrf.mxu0
    %v1787 = vadd.f32 0.0, %v1786
    %1788 = vdwg.mxu0
    %v1789 = vadd.f32 %v1768, %v1787
    %v1790 = vtanh.pop %v1789
    %s1791 = scalar_lea.vmem [#allocation5], 28
    %v1792 = vld [vmem:[%s1791] sm:$0xf]
    %1793 = vmatpush.msra.mxu0 0.0
    %1794 = vmatpush.msra.mxu0 0.0
    %1795 = vmatpush.msra.mxu0 0.0
    %1796 = vmatpush.msra.mxu0 0.0
    %1797 = vmatpush.msra.mxu0 0.0
    %1798 = vmatpush.msra.mxu0 0.0
    %1799 = vmatpush.msra.mxu0 0.0
    %1800 = vmatpush.msra.mxu0 0.0
    %1801 = vmatpush.msra.mxu0 0.0
    %1802 = vmatpush.msra.mxu0 0.0
    %1803 = vmatpush.msra.mxu0 0.0
    %1804 = vmatpush.msra.mxu0 0.0
    %1805 = vmatpush.msra.mxu0 %v471
    %1806 = vmatpush.msra.mxu0 %v470
    %1807 = vmatpush.msra.mxu0 %v469
    %1808 = vmatpush.msra.mxu0 %v468
    %1809 = vmatmul.f32.gmra.mxu0 %v1683
    %v1810 = vpop.f32.mrf.mxu0
    %v1811 = vadd.f32 0.0, %v1810
    %1812 = vdwg.mxu0
    %v1813 = vadd.f32 %v1792, %v1811
    %v1814 = vxor.u32 %v1813, 2147483648
    %v1815 = vmul.f32 %v1814, 1.442695
    %v1816 = vpow.pop %v1815
    %v1817 = vadd.f32 %v1816, 1.0
    %v1818 = vrcp.pop %v1817
    %v1819 = vmul.f32 %v1817, %v1818
    %v1820 = vsub.f32 1.0, %v1819
    %v1821 = vmul.f32 %v1818, %v1820
    %v1822 = vadd.f32 %v1818, %v1821
    %vm1823 = vweird.f32 %v1817
    %vm1824 = vweird.f32 %v1818
    %vm1825 = vmor %vm1823, %vm1824
    %v1826 = vsel %vm1825, %v1818, %v1822
    %v1827 = vand.u32 2147483647, %v1817
    %vm1828 = vcmp.eq.f32.partialorder %v1827, 8.507059e+37
    %v1829 = vand.u32 %v1817, 2147483648
    %v1830 = vor.u32 1.1754944e-38, %v1829
    %v1831 = vsel %vm1828, %v1830, %v1826
    %v1832 = vmul.f32 1.0, %v1831
    %v1833 = vmul.f32 %v1766, %v1679
    %v1834 = vmul.f32 %v1724, %v1790
    %v1835 = vadd.f32 %v1833, %v1834
    %v1836 = vtanh.pop %v1835
    %v1837 = vmul.f32 %v1832, %v1836
    %vm1838 = vcmp.gt.s32.totalorder %v452, 7
    %v1839 = vsel %vm1838, 1, 0
    %1840 = vset.pattern.permute.xlu0 0
    %1841 = vperm.xlu0 %1840, %v1839
    %v1842 = vpop.permute.xlu0 %1841
    %vm1843 = vcmp.eq.s32.totalorder %v1842, 1
    %v1844 = vsel %vm1843, %v1837, %v1678
    %1845 = vst.msk [vmem:[#allocation6] sm:$0xf] %vm181, %v1844
    %v1846 = vsel %vm1843, %v1835, %v1679
    %1847 = vst.msk [vmem:[#allocation7] sm:$0xf] %vm181, %v1846
    %v1848 = vsel %vm1843, %v1837, 0.0
    %s1849 = scalar_lea.vmem [#allocation16], 28
    %1850 = vst.msk [vmem:[%s1849] sm:$0xf] %vm181, %v1848
    // Predicated region
    $region46: #{tpu_custom_call.1} parent=1 // pred_check
      _
    $region47: #{tpu_custom_call.1} parent=1 // pred_check_branch
      %1852 = sbr.rel (0) target = $region49
    $region48: #{tpu_custom_call.1} parent=1 // pred_region
      %1854 = vsyncadd [#allocation10], 0
      %s1855 = sshll.u32 [#allocation16], 4
      %s1856 = int_to_ptr.vmem [resolvable:$true] %s1855
      %s1857 = sshll.u32 %s7, 4
      %s1858 = int_to_ptr.hbm [resolvable:$true] %s1857
      %1863 = dma.vmem_to_hbm [thread:$0]  %s1856, 512, %s1858, [#allocation10], 64, 64, 4
    $region49: #{tpu_custom_call.1} parent=1 // pred_fallthru
      _
    // Predicated region
    $region50: #{tpu_custom_call.1} parent=1 // pred_check
      _
    $region51: #{tpu_custom_call.1} parent=1 // pred_check_branch
      %1865 = sbr.rel (0) target = $region53
    $region52: #{tpu_custom_call.1} parent=1 // pred_region
      %1867 = dma.done [#allocation10], 512
    $region53: #{tpu_custom_call.1} parent=1 // pred_fallthru
      _
    %1868 = vsyncpa [#allocation9], 1
    %1869 = vsyncpa [#allocation12], 1
    %1870 = vsyncpa [#allocation15], 1
    %1871 = vsyncpa [#allocation10], 1

</llo_original>
